<compile_context>
chip_gen: v7x
topology: tpu7x:2x2x1
jax: 0.10.0
libtpu: 0.0.40
codegen_flags: <defaults>
</compile_context>

<pallas_src>
import functools

import jax
import jax.numpy as jnp
import numpy as np
from jax.experimental import pallas as pl
from jax.experimental.pallas import tpu as pltpu

INPUT_SIZE = 64
HIDDEN = 128
NUM_CLASSES = 40
FC_PAD = 128        # pad FC output lanes to 128 -> unmasked vector stores
B_SUBLANE = 8       # f32 sublane width


# ----------------------------------------------------------------------------
# Fused kernel: layer-1 LSTM -> layer-2 LSTM -> FC, all VMEM-resident.
# ----------------------------------------------------------------------------
def _fused_rnn_classifier_kernel(
    x_ref,       # (T*Bp, 64)   time-major, batch-padded, flattened
    wih0_ref,    # (64, 4H)
    whh0_ref,    # (H, 4H)
    b0_ref,      # (1, 4H)      b_ih + b_hh (layer 0)
    wih1_ref,    # (H, 4H)
    whh1_ref,    # (H, 4H)
    b1_ref,      # (1, 4H)      b_ih + b_hh (layer 1)
    fcw_ref,     # (H, FC_PAD)  fc weight^T, zero-padded past NUM_CLASSES
    fcb_ref,     # (1, FC_PAD)
    out_ref,     # (Bp, FC_PAD) padded logits
    h1_scr,      # VMEM scratch (T*Bp, H): layer-1 output sequence
    *, T, Bp,
):
    H = HIDDEN

    def run_layer(xproj, whh, store_seq):
        h = jnp.zeros((Bp, H), jnp.float32)
        c = jnp.zeros((Bp, H), jnp.float32)
        # T is small & static: fully unroll so the LLO scheduler can overlap
        # the MXU recurrent matmul with the VPU/EUP gate math across steps.
        for t in range(T):
            gates = xproj[t * Bp:(t + 1) * Bp, :] + jnp.dot(
                h, whh, preferred_element_type=jnp.float32)
            i_g = jax.nn.sigmoid(gates[:, 0 * H:1 * H])
            f_g = jax.nn.sigmoid(gates[:, 1 * H:2 * H])
            g_g = jnp.tanh(gates[:, 2 * H:3 * H])
            o_g = jax.nn.sigmoid(gates[:, 3 * H:4 * H])
            c = f_g * c + i_g * g_g
            h = o_g * jnp.tanh(c)
            if store_seq:
                h1_scr[t * Bp:(t + 1) * Bp, :] = h
        return h

    # Layer 1: one batched input projection for ALL timesteps (bias folded in).
    xproj0 = jnp.dot(x_ref[...], wih0_ref[...],
                     preferred_element_type=jnp.float32) + b0_ref[...]
    run_layer(xproj0, whh0_ref[...], store_seq=True)

    # Layer 2: batched input projection over the layer-1 output sequence.
    xproj1 = jnp.dot(h1_scr[...], wih1_ref[...],
                     preferred_element_type=jnp.float32) + b1_ref[...]
    h_last = run_layer(xproj1, whh1_ref[...], store_seq=False)

    # FC head on the last timestep only -> the kernel's single output.
    out_ref[...] = jnp.dot(h_last, fcw_ref[...],
                           preferred_element_type=jnp.float32) + fcb_ref[...]


# ----------------------------------------------------------------------------
# One-time parameter layout prep (outside the per-call path).
# ----------------------------------------------------------------------------
def prepare_params(params):
    H = HIDDEN
    fcw_t = jnp.transpose(params["fc_w"]).astype(jnp.float32)      # (H, 40)
    fcw_pad = jnp.zeros((H, FC_PAD), jnp.float32).at[:, :NUM_CLASSES].set(fcw_t)
    fcb_pad = jnp.zeros((1, FC_PAD), jnp.float32).at[0, :NUM_CLASSES].set(
        params["fc_b"].astype(jnp.float32))
    return {
        "wih0_t": jnp.transpose(params["w_ih_l0"]),                 # (64, 4H)
        "whh0_t": jnp.transpose(params["w_hh_l0"]),                 # (H, 4H)
        "b0": (params["b_ih_l0"] + params["b_hh_l0"]).reshape(1, 4 * H),
        "wih1_t": jnp.transpose(params["w_ih_l1"]),                 # (H, 4H)
        "whh1_t": jnp.transpose(params["w_hh_l1"]),                 # (H, 4H)
        "b1": (params["b_ih_l1"] + params["b_hh_l1"]).reshape(1, 4 * H),
        "fc_w_t": fcw_pad,                                          # (H, 128)
        "fc_b": fcb_pad,                                            # (1, 128)
    }


# ----------------------------------------------------------------------------
# Forward pass wrapper: one pallas_call, no grid, everything VMEM-resident.
# ----------------------------------------------------------------------------
@jax.jit
def rnn_classifier_forward(x, prepped):
    B, T, D = x.shape
    Bp = max(B_SUBLANE, ((B + B_SUBLANE - 1) // B_SUBLANE) * B_SUBLANE)
    H = HIDDEN

    # batch-first -> time-major, pad batch to sublane width, flatten time.
    x_t = jnp.transpose(x.astype(jnp.float32), (1, 0, 2))           # (T, B, D)
    x_t = jnp.pad(x_t, ((0, 0), (0, Bp - B), (0, 0)))               # (T, Bp, D)
    x_flat = x_t.reshape(T * Bp, D)                                 # (T*Bp, D)

    def full(shape):
        return pl.BlockSpec(shape, lambda: (0,) * len(shape))

    kernel = functools.partial(_fused_rnn_classifier_kernel, T=T, Bp=Bp)

    out_pad = pl.pallas_call(
        kernel,
        out_shape=jax.ShapeDtypeStruct((Bp, FC_PAD), jnp.float32),
        in_specs=[
            full((T * Bp, D)),
            full((D, 4 * H)),
            full((H, 4 * H)),
            full((1, 4 * H)),
            full((H, 4 * H)),
            full((H, 4 * H)),
            full((1, 4 * H)),
            full((H, FC_PAD)),
            full((1, FC_PAD)),
        ],
        out_specs=full((Bp, FC_PAD)),
        scratch_shapes=[pltpu.VMEM((T * Bp, H), jnp.float32)],
    )(x_flat, prepped["wih0_t"], prepped["whh0_t"], prepped["b0"],
      prepped["wih1_t"], prepped["whh1_t"], prepped["b1"],
      prepped["fc_w_t"], prepped["fc_b"])

    return out_pad[:B, :NUM_CLASSES]


# ----------------------------------------------------------------------------
# Pure-JAX reference (for correctness check)
# ----------------------------------------------------------------------------
def _lstm_layer_ref(x_tbd, w_ih, w_hh, b_ih, b_hh):
    T, B, _ = x_tbd.shape
    H = w_hh.shape[1]

    def step(carry, x_t):
        h, c = carry
        gates = x_t @ w_ih.T + h @ w_hh.T + b_ih + b_hh
        i = jax.nn.sigmoid(gates[:, 0 * H:1 * H])
        f = jax.nn.sigmoid(gates[:, 1 * H:2 * H])
        g = jnp.tanh(gates[:, 2 * H:3 * H])
        o = jax.nn.sigmoid(gates[:, 3 * H:4 * H])
        c = f * c + i * g
        h = o * jnp.tanh(c)
        return (h, c), h

    init = (jnp.zeros((B, H), jnp.float32), jnp.zeros((B, H), jnp.float32))
    _, hs = jax.lax.scan(step, init, x_tbd)
    return hs


def rnn_classifier_forward_ref(x, params):
    x_t = jnp.transpose(x, (1, 0, 2)).astype(jnp.float32)
    h1 = _lstm_layer_ref(x_t, params["w_ih_l0"], params["w_hh_l0"],
                         params["b_ih_l0"], params["b_hh_l0"])
    h2 = _lstm_layer_ref(h1, params["w_ih_l1"], params["w_hh_l1"],
                         params["b_ih_l1"], params["b_hh_l1"])
    return h2[-1] @ params["fc_w"].T + params["fc_b"]


# ----------------------------------------------------------------------------
# Deterministic parameter init (PyTorch-style uniform(-1/sqrt(H), 1/sqrt(H)))
# ----------------------------------------------------------------------------
def init_params(key):
    k = 1.0 / np.sqrt(HIDDEN)
    keys = jax.random.split(key, 12)

    def u(kk, shape):
        return jax.random.uniform(kk, shape, jnp.float32, minval=-k, maxval=k)

    return {
        "w_ih_l0": u(keys[0], (4 * HIDDEN, INPUT_SIZE)),
        "w_hh_l0": u(keys[1], (4 * HIDDEN, HIDDEN)),
        "b_ih_l0": u(keys[2], (4 * HIDDEN,)),
        "b_hh_l0": u(keys[3], (4 * HIDDEN,)),
        "w_ih_l1": u(keys[4], (4 * HIDDEN, HIDDEN)),
        "w_hh_l1": u(keys[5], (4 * HIDDEN, HIDDEN)),
        "b_ih_l1": u(keys[6], (4 * HIDDEN,)),
        "b_hh_l1": u(keys[7], (4 * HIDDEN,)),
        "fc_w": u(keys[8], (NUM_CLASSES, HIDDEN)),
        "fc_b": u(keys[9], (NUM_CLASSES,)),
    }


if __name__ == "__main__":
    B, T = 2, 8
    root = jax.random.PRNGKey(0)
    k_x, k_p = jax.random.split(root)

    x = jax.random.normal(k_x, (B, T, INPUT_SIZE), jnp.float32)
    params = init_params(k_p)
    prepped = prepare_params(params)      # one-time weight layout prep

    out = rnn_classifier_forward(x, prepped)
    out = jax.block_until_ready(out)
    assert out.shape == (B, NUM_CLASSES), out.shape

    ref = jax.block_until_ready(rnn_classifier_forward_ref(x, params))
    np.testing.assert_allclose(np.asarray(out), np.asarray(ref),
                               rtol=2e-4, atol=2e-4)

    print("KERNEL_OK")
</pallas_src>

<mosaic_0001>
module attributes {stable_mosaic.version = 11 : i64} {
  func.func @_fused_rnn_classifier_kernel(%arg0: memref<64x64xf32, #tpu.memory_space<vmem>>, %arg1: memref<64x512xf32, #tpu.memory_space<vmem>>, %arg2: memref<128x512xf32, #tpu.memory_space<vmem>>, %arg3: memref<1x512xf32, #tpu.memory_space<vmem>>, %arg4: memref<128x512xf32, #tpu.memory_space<vmem>>, %arg5: memref<128x512xf32, #tpu.memory_space<vmem>>, %arg6: memref<1x512xf32, #tpu.memory_space<vmem>>, %arg7: memref<128x128xf32, #tpu.memory_space<vmem>>, %arg8: memref<1x128xf32, #tpu.memory_space<vmem>>, %arg9: memref<8x128xf32, #tpu.memory_space<vmem>>, %arg10: memref<64x128xf32, #tpu.memory_space<vmem>>) attributes {dimension_semantics = [], scalar_prefetch = 0 : i64, scratch_operands = 1 : i64, tpu.core_type = #tpu.core_type<tc>} {
    %c0 = arith.constant 0 : index
    %c0_0 = arith.constant 0 : index
    %0 = vector.load %arg0[%c0, %c0_0] : memref<64x64xf32, #tpu.memory_space<vmem>>, vector<64x64xf32>
    %c0_1 = arith.constant 0 : index
    %c0_2 = arith.constant 0 : index
    %1 = vector.load %arg1[%c0_1, %c0_2] : memref<64x512xf32, #tpu.memory_space<vmem>>, vector<64x512xf32>
    %cst = arith.constant dense<0.000000e+00> : vector<64x512xf32>
    %2 = tpu.matmul %0, %1, %cst {dimension_numbers = #tpu.dot_dimension_numbers<[1], [0], [0], [1], [0, 0, 1, 1], [], []>} : vector<64x64xf32>, vector<64x512xf32>, vector<64x512xf32> -> vector<64x512xf32>
    %c0_3 = arith.constant 0 : index
    %c0_4 = arith.constant 0 : index
    %3 = vector.load %arg3[%c0_3, %c0_4] : memref<1x512xf32, #tpu.memory_space<vmem>>, vector<1x512xf32>
    %4 = vector.broadcast %3 : vector<1x512xf32> to vector<64x512xf32>
    %5 = arith.addf %2, %4 : vector<64x512xf32>
    %c0_5 = arith.constant 0 : index
    %c0_6 = arith.constant 0 : index
    %6 = vector.load %arg2[%c0_5, %c0_6] : memref<128x512xf32, #tpu.memory_space<vmem>>, vector<128x512xf32>
    %cst_7 = arith.constant 0.000000e+00 : f32
    %7 = vector.broadcast %cst_7 : f32 to vector<8x128xf32>
    %cst_8 = arith.constant 0.000000e+00 : f32
    %8 = vector.broadcast %cst_8 : f32 to vector<8x128xf32>
    %9 = vector.extract_strided_slice %5 {offsets = [0, 0], sizes = [8, 512], strides = [1, 1]} : vector<64x512xf32> to vector<8x512xf32>
    %cst_9 = arith.constant dense<0.000000e+00> : vector<8x512xf32>
    %10 = tpu.matmul %7, %6, %cst_9 {dimension_numbers = #tpu.dot_dimension_numbers<[1], [0], [0], [1], [0, 0, 1, 1], [], []>} : vector<8x128xf32>, vector<128x512xf32>, vector<8x512xf32> -> vector<8x512xf32>
    %11 = arith.addf %9, %10 : vector<8x512xf32>
    %12 = vector.extract_strided_slice %11 {offsets = [0, 0], sizes = [8, 128], strides = [1, 1]} : vector<8x512xf32> to vector<8x128xf32>
    %13 = arith.negf %12 : vector<8x128xf32>
    %14 = math.exp %13 : vector<8x128xf32>
    %cst_10 = arith.constant 1.000000e+00 : f32
    %15 = vector.broadcast %cst_10 : f32 to vector<8x128xf32>
    %16 = arith.addf %15, %14 : vector<8x128xf32>
    %17 = arith.divf %15, %16 : vector<8x128xf32>
    %18 = vector.extract_strided_slice %11 {offsets = [0, 128], sizes = [8, 128], strides = [1, 1]} : vector<8x512xf32> to vector<8x128xf32>
    %19 = arith.negf %18 : vector<8x128xf32>
    %20 = math.exp %19 : vector<8x128xf32>
    %cst_11 = arith.constant 1.000000e+00 : f32
    %21 = vector.broadcast %cst_11 : f32 to vector<8x128xf32>
    %22 = arith.addf %21, %20 : vector<8x128xf32>
    %23 = arith.divf %21, %22 : vector<8x128xf32>
    %24 = vector.extract_strided_slice %11 {offsets = [0, 256], sizes = [8, 128], strides = [1, 1]} : vector<8x512xf32> to vector<8x128xf32>
    %25 = math.tanh %24 : vector<8x128xf32>
    %26 = vector.extract_strided_slice %11 {offsets = [0, 384], sizes = [8, 128], strides = [1, 1]} : vector<8x512xf32> to vector<8x128xf32>
    %27 = arith.negf %26 : vector<8x128xf32>
    %28 = math.exp %27 : vector<8x128xf32>
    %cst_12 = arith.constant 1.000000e+00 : f32
    %29 = vector.broadcast %cst_12 : f32 to vector<8x128xf32>
    %30 = arith.addf %29, %28 : vector<8x128xf32>
    %31 = arith.divf %29, %30 : vector<8x128xf32>
    %32 = arith.mulf %23, %8 : vector<8x128xf32>
    %33 = arith.mulf %17, %25 : vector<8x128xf32>
    %34 = arith.addf %32, %33 : vector<8x128xf32>
    %35 = math.tanh %34 : vector<8x128xf32>
    %36 = arith.mulf %31, %35 : vector<8x128xf32>
    %c0_13 = arith.constant 0 : index
    %c0_14 = arith.constant 0 : index
    %37 = vector.load %arg10[%c0_13, %c0_14] : memref<64x128xf32, #tpu.memory_space<vmem>>, vector<8x128xf32>
    tpu.vector_store %arg10[%c0_13, %c0_14], %36 {strides = array<i32>} : memref<64x128xf32, #tpu.memory_space<vmem>>, vector<8x128xf32>,
    %38 = vector.extract_strided_slice %5 {offsets = [8, 0], sizes = [8, 512], strides = [1, 1]} : vector<64x512xf32> to vector<8x512xf32>
    %cst_15 = arith.constant dense<0.000000e+00> : vector<8x512xf32>
    %39 = tpu.matmul %36, %6, %cst_15 {dimension_numbers = #tpu.dot_dimension_numbers<[1], [0], [0], [1], [0, 0, 1, 1], [], []>} : vector<8x128xf32>, vector<128x512xf32>, vector<8x512xf32> -> vector<8x512xf32>
    %40 = arith.addf %38, %39 : vector<8x512xf32>
    %41 = vector.extract_strided_slice %40 {offsets = [0, 0], sizes = [8, 128], strides = [1, 1]} : vector<8x512xf32> to vector<8x128xf32>
    %42 = arith.negf %41 : vector<8x128xf32>
    %43 = math.exp %42 : vector<8x128xf32>
    %cst_16 = arith.constant 1.000000e+00 : f32
    %44 = vector.broadcast %cst_16 : f32 to vector<8x128xf32>
    %45 = arith.addf %44, %43 : vector<8x128xf32>
    %46 = arith.divf %44, %45 : vector<8x128xf32>
    %47 = vector.extract_strided_slice %40 {offsets = [0, 128], sizes = [8, 128], strides = [1, 1]} : vector<8x512xf32> to vector<8x128xf32>
    %48 = arith.negf %47 : vector<8x128xf32>
    %49 = math.exp %48 : vector<8x128xf32>
    %cst_17 = arith.constant 1.000000e+00 : f32
    %50 = vector.broadcast %cst_17 : f32 to vector<8x128xf32>
    %51 = arith.addf %50, %49 : vector<8x128xf32>
    %52 = arith.divf %50, %51 : vector<8x128xf32>
    %53 = vector.extract_strided_slice %40 {offsets = [0, 256], sizes = [8, 128], strides = [1, 1]} : vector<8x512xf32> to vector<8x128xf32>
    %54 = math.tanh %53 : vector<8x128xf32>
    %55 = vector.extract_strided_slice %40 {offsets = [0, 384], sizes = [8, 128], strides = [1, 1]} : vector<8x512xf32> to vector<8x128xf32>
    %56 = arith.negf %55 : vector<8x128xf32>
    %57 = math.exp %56 : vector<8x128xf32>
    %cst_18 = arith.constant 1.000000e+00 : f32
    %58 = vector.broadcast %cst_18 : f32 to vector<8x128xf32>
    %59 = arith.addf %58, %57 : vector<8x128xf32>
    %60 = arith.divf %58, %59 : vector<8x128xf32>
    %61 = arith.mulf %52, %34 : vector<8x128xf32>
    %62 = arith.mulf %46, %54 : vector<8x128xf32>
    %63 = arith.addf %61, %62 : vector<8x128xf32>
    %64 = math.tanh %63 : vector<8x128xf32>
    %65 = arith.mulf %60, %64 : vector<8x128xf32>
    %c8 = arith.constant 8 : index
    %c0_19 = arith.constant 0 : index
    %66 = vector.load %arg10[%c8, %c0_19] : memref<64x128xf32, #tpu.memory_space<vmem>>, vector<8x128xf32>
    tpu.vector_store %arg10[%c8, %c0_19], %65 {strides = array<i32>} : memref<64x128xf32, #tpu.memory_space<vmem>>, vector<8x128xf32>,
    %67 = vector.extract_strided_slice %5 {offsets = [16, 0], sizes = [8, 512], strides = [1, 1]} : vector<64x512xf32> to vector<8x512xf32>
    %cst_20 = arith.constant dense<0.000000e+00> : vector<8x512xf32>
    %68 = tpu.matmul %65, %6, %cst_20 {dimension_numbers = #tpu.dot_dimension_numbers<[1], [0], [0], [1], [0, 0, 1, 1], [], []>} : vector<8x128xf32>, vector<128x512xf32>, vector<8x512xf32> -> vector<8x512xf32>
    %69 = arith.addf %67, %68 : vector<8x512xf32>
    %70 = vector.extract_strided_slice %69 {offsets = [0, 0], sizes = [8, 128], strides = [1, 1]} : vector<8x512xf32> to vector<8x128xf32>
    %71 = arith.negf %70 : vector<8x128xf32>
    %72 = math.exp %71 : vector<8x128xf32>
    %cst_21 = arith.constant 1.000000e+00 : f32
    %73 = vector.broadcast %cst_21 : f32 to vector<8x128xf32>
    %74 = arith.addf %73, %72 : vector<8x128xf32>
    %75 = arith.divf %73, %74 : vector<8x128xf32>
    %76 = vector.extract_strided_slice %69 {offsets = [0, 128], sizes = [8, 128], strides = [1, 1]} : vector<8x512xf32> to vector<8x128xf32>
    %77 = arith.negf %76 : vector<8x128xf32>
    %78 = math.exp %77 : vector<8x128xf32>
    %cst_22 = arith.constant 1.000000e+00 : f32
    %79 = vector.broadcast %cst_22 : f32 to vector<8x128xf32>
    %80 = arith.addf %79, %78 : vector<8x128xf32>
    %81 = arith.divf %79, %80 : vector<8x128xf32>
    %82 = vector.extract_strided_slice %69 {offsets = [0, 256], sizes = [8, 128], strides = [1, 1]} : vector<8x512xf32> to vector<8x128xf32>
    %83 = math.tanh %82 : vector<8x128xf32>
    %84 = vector.extract_strided_slice %69 {offsets = [0, 384], sizes = [8, 128], strides = [1, 1]} : vector<8x512xf32> to vector<8x128xf32>
    %85 = arith.negf %84 : vector<8x128xf32>
    %86 = math.exp %85 : vector<8x128xf32>
    %cst_23 = arith.constant 1.000000e+00 : f32
    %87 = vector.broadcast %cst_23 : f32 to vector<8x128xf32>
    %88 = arith.addf %87, %86 : vector<8x128xf32>
    %89 = arith.divf %87, %88 : vector<8x128xf32>
    %90 = arith.mulf %81, %63 : vector<8x128xf32>
    %91 = arith.mulf %75, %83 : vector<8x128xf32>
    %92 = arith.addf %90, %91 : vector<8x128xf32>
    %93 = math.tanh %92 : vector<8x128xf32>
    %94 = arith.mulf %89, %93 : vector<8x128xf32>
    %c16 = arith.constant 16 : index
    %c0_24 = arith.constant 0 : index
    %95 = vector.load %arg10[%c16, %c0_24] : memref<64x128xf32, #tpu.memory_space<vmem>>, vector<8x128xf32>
    tpu.vector_store %arg10[%c16, %c0_24], %94 {strides = array<i32>} : memref<64x128xf32, #tpu.memory_space<vmem>>, vector<8x128xf32>,
    %96 = vector.extract_strided_slice %5 {offsets = [24, 0], sizes = [8, 512], strides = [1, 1]} : vector<64x512xf32> to vector<8x512xf32>
    %cst_25 = arith.constant dense<0.000000e+00> : vector<8x512xf32>
    %97 = tpu.matmul %94, %6, %cst_25 {dimension_numbers = #tpu.dot_dimension_numbers<[1], [0], [0], [1], [0, 0, 1, 1], [], []>} : vector<8x128xf32>, vector<128x512xf32>, vector<8x512xf32> -> vector<8x512xf32>
    %98 = arith.addf %96, %97 : vector<8x512xf32>
    %99 = vector.extract_strided_slice %98 {offsets = [0, 0], sizes = [8, 128], strides = [1, 1]} : vector<8x512xf32> to vector<8x128xf32>
    %100 = arith.negf %99 : vector<8x128xf32>
    %101 = math.exp %100 : vector<8x128xf32>
    %cst_26 = arith.constant 1.000000e+00 : f32
    %102 = vector.broadcast %cst_26 : f32 to vector<8x128xf32>
    %103 = arith.addf %102, %101 : vector<8x128xf32>
    %104 = arith.divf %102, %103 : vector<8x128xf32>
    %105 = vector.extract_strided_slice %98 {offsets = [0, 128], sizes = [8, 128], strides = [1, 1]} : vector<8x512xf32> to vector<8x128xf32>
    %106 = arith.negf %105 : vector<8x128xf32>
    %107 = math.exp %106 : vector<8x128xf32>
    %cst_27 = arith.constant 1.000000e+00 : f32
    %108 = vector.broadcast %cst_27 : f32 to vector<8x128xf32>
    %109 = arith.addf %108, %107 : vector<8x128xf32>
    %110 = arith.divf %108, %109 : vector<8x128xf32>
    %111 = vector.extract_strided_slice %98 {offsets = [0, 256], sizes = [8, 128], strides = [1, 1]} : vector<8x512xf32> to vector<8x128xf32>
    %112 = math.tanh %111 : vector<8x128xf32>
    %113 = vector.extract_strided_slice %98 {offsets = [0, 384], sizes = [8, 128], strides = [1, 1]} : vector<8x512xf32> to vector<8x128xf32>
    %114 = arith.negf %113 : vector<8x128xf32>
    %115 = math.exp %114 : vector<8x128xf32>
    %cst_28 = arith.constant 1.000000e+00 : f32
    %116 = vector.broadcast %cst_28 : f32 to vector<8x128xf32>
    %117 = arith.addf %116, %115 : vector<8x128xf32>
    %118 = arith.divf %116, %117 : vector<8x128xf32>
    %119 = arith.mulf %110, %92 : vector<8x128xf32>
    %120 = arith.mulf %104, %112 : vector<8x128xf32>
    %121 = arith.addf %119, %120 : vector<8x128xf32>
    %122 = math.tanh %121 : vector<8x128xf32>
    %123 = arith.mulf %118, %122 : vector<8x128xf32>
    %c24 = arith.constant 24 : index
    %c0_29 = arith.constant 0 : index
    %124 = vector.load %arg10[%c24, %c0_29] : memref<64x128xf32, #tpu.memory_space<vmem>>, vector<8x128xf32>
    tpu.vector_store %arg10[%c24, %c0_29], %123 {strides = array<i32>} : memref<64x128xf32, #tpu.memory_space<vmem>>, vector<8x128xf32>,
    %125 = vector.extract_strided_slice %5 {offsets = [32, 0], sizes = [8, 512], strides = [1, 1]} : vector<64x512xf32> to vector<8x512xf32>
    %cst_30 = arith.constant dense<0.000000e+00> : vector<8x512xf32>
    %126 = tpu.matmul %123, %6, %cst_30 {dimension_numbers = #tpu.dot_dimension_numbers<[1], [0], [0], [1], [0, 0, 1, 1], [], []>} : vector<8x128xf32>, vector<128x512xf32>, vector<8x512xf32> -> vector<8x512xf32>
    %127 = arith.addf %125, %126 : vector<8x512xf32>
    %128 = vector.extract_strided_slice %127 {offsets = [0, 0], sizes = [8, 128], strides = [1, 1]} : vector<8x512xf32> to vector<8x128xf32>
    %129 = arith.negf %128 : vector<8x128xf32>
    %130 = math.exp %129 : vector<8x128xf32>
    %cst_31 = arith.constant 1.000000e+00 : f32
    %131 = vector.broadcast %cst_31 : f32 to vector<8x128xf32>
    %132 = arith.addf %131, %130 : vector<8x128xf32>
    %133 = arith.divf %131, %132 : vector<8x128xf32>
    %134 = vector.extract_strided_slice %127 {offsets = [0, 128], sizes = [8, 128], strides = [1, 1]} : vector<8x512xf32> to vector<8x128xf32>
    %135 = arith.negf %134 : vector<8x128xf32>
    %136 = math.exp %135 : vector<8x128xf32>
    %cst_32 = arith.constant 1.000000e+00 : f32
    %137 = vector.broadcast %cst_32 : f32 to vector<8x128xf32>
    %138 = arith.addf %137, %136 : vector<8x128xf32>
    %139 = arith.divf %137, %138 : vector<8x128xf32>
    %140 = vector.extract_strided_slice %127 {offsets = [0, 256], sizes = [8, 128], strides = [1, 1]} : vector<8x512xf32> to vector<8x128xf32>
    %141 = math.tanh %140 : vector<8x128xf32>
    %142 = vector.extract_strided_slice %127 {offsets = [0, 384], sizes = [8, 128], strides = [1, 1]} : vector<8x512xf32> to vector<8x128xf32>
    %143 = arith.negf %142 : vector<8x128xf32>
    %144 = math.exp %143 : vector<8x128xf32>
    %cst_33 = arith.constant 1.000000e+00 : f32
    %145 = vector.broadcast %cst_33 : f32 to vector<8x128xf32>
    %146 = arith.addf %145, %144 : vector<8x128xf32>
    %147 = arith.divf %145, %146 : vector<8x128xf32>
    %148 = arith.mulf %139, %121 : vector<8x128xf32>
    %149 = arith.mulf %133, %141 : vector<8x128xf32>
    %150 = arith.addf %148, %149 : vector<8x128xf32>
    %151 = math.tanh %150 : vector<8x128xf32>
    %152 = arith.mulf %147, %151 : vector<8x128xf32>
    %c32 = arith.constant 32 : index
    %c0_34 = arith.constant 0 : index
    %153 = vector.load %arg10[%c32, %c0_34] : memref<64x128xf32, #tpu.memory_space<vmem>>, vector<8x128xf32>
    tpu.vector_store %arg10[%c32, %c0_34], %152 {strides = array<i32>} : memref<64x128xf32, #tpu.memory_space<vmem>>, vector<8x128xf32>,
    %154 = vector.extract_strided_slice %5 {offsets = [40, 0], sizes = [8, 512], strides = [1, 1]} : vector<64x512xf32> to vector<8x512xf32>
    %cst_35 = arith.constant dense<0.000000e+00> : vector<8x512xf32>
    %155 = tpu.matmul %152, %6, %cst_35 {dimension_numbers = #tpu.dot_dimension_numbers<[1], [0], [0], [1], [0, 0, 1, 1], [], []>} : vector<8x128xf32>, vector<128x512xf32>, vector<8x512xf32> -> vector<8x512xf32>
    %156 = arith.addf %154, %155 : vector<8x512xf32>
    %157 = vector.extract_strided_slice %156 {offsets = [0, 0], sizes = [8, 128], strides = [1, 1]} : vector<8x512xf32> to vector<8x128xf32>
    %158 = arith.negf %157 : vector<8x128xf32>
    %159 = math.exp %158 : vector<8x128xf32>
    %cst_36 = arith.constant 1.000000e+00 : f32
    %160 = vector.broadcast %cst_36 : f32 to vector<8x128xf32>
    %161 = arith.addf %160, %159 : vector<8x128xf32>
    %162 = arith.divf %160, %161 : vector<8x128xf32>
    %163 = vector.extract_strided_slice %156 {offsets = [0, 128], sizes = [8, 128], strides = [1, 1]} : vector<8x512xf32> to vector<8x128xf32>
    %164 = arith.negf %163 : vector<8x128xf32>
    %165 = math.exp %164 : vector<8x128xf32>
    %cst_37 = arith.constant 1.000000e+00 : f32
    %166 = vector.broadcast %cst_37 : f32 to vector<8x128xf32>
    %167 = arith.addf %166, %165 : vector<8x128xf32>
    %168 = arith.divf %166, %167 : vector<8x128xf32>
    %169 = vector.extract_strided_slice %156 {offsets = [0, 256], sizes = [8, 128], strides = [1, 1]} : vector<8x512xf32> to vector<8x128xf32>
    %170 = math.tanh %169 : vector<8x128xf32>
    %171 = vector.extract_strided_slice %156 {offsets = [0, 384], sizes = [8, 128], strides = [1, 1]} : vector<8x512xf32> to vector<8x128xf32>
    %172 = arith.negf %171 : vector<8x128xf32>
    %173 = math.exp %172 : vector<8x128xf32>
    %cst_38 = arith.constant 1.000000e+00 : f32
    %174 = vector.broadcast %cst_38 : f32 to vector<8x128xf32>
    %175 = arith.addf %174, %173 : vector<8x128xf32>
    %176 = arith.divf %174, %175 : vector<8x128xf32>
    %177 = arith.mulf %168, %150 : vector<8x128xf32>
    %178 = arith.mulf %162, %170 : vector<8x128xf32>
    %179 = arith.addf %177, %178 : vector<8x128xf32>
    %180 = math.tanh %179 : vector<8x128xf32>
    %181 = arith.mulf %176, %180 : vector<8x128xf32>
    %c40 = arith.constant 40 : index
    %c0_39 = arith.constant 0 : index
    %182 = vector.load %arg10[%c40, %c0_39] : memref<64x128xf32, #tpu.memory_space<vmem>>, vector<8x128xf32>
    tpu.vector_store %arg10[%c40, %c0_39], %181 {strides = array<i32>} : memref<64x128xf32, #tpu.memory_space<vmem>>, vector<8x128xf32>,
    %183 = vector.extract_strided_slice %5 {offsets = [48, 0], sizes = [8, 512], strides = [1, 1]} : vector<64x512xf32> to vector<8x512xf32>
    %cst_40 = arith.constant dense<0.000000e+00> : vector<8x512xf32>
    %184 = tpu.matmul %181, %6, %cst_40 {dimension_numbers = #tpu.dot_dimension_numbers<[1], [0], [0], [1], [0, 0, 1, 1], [], []>} : vector<8x128xf32>, vector<128x512xf32>, vector<8x512xf32> -> vector<8x512xf32>
    %185 = arith.addf %183, %184 : vector<8x512xf32>
    %186 = vector.extract_strided_slice %185 {offsets = [0, 0], sizes = [8, 128], strides = [1, 1]} : vector<8x512xf32> to vector<8x128xf32>
    %187 = arith.negf %186 : vector<8x128xf32>
    %188 = math.exp %187 : vector<8x128xf32>
    %cst_41 = arith.constant 1.000000e+00 : f32
    %189 = vector.broadcast %cst_41 : f32 to vector<8x128xf32>
    %190 = arith.addf %189, %188 : vector<8x128xf32>
    %191 = arith.divf %189, %190 : vector<8x128xf32>
    %192 = vector.extract_strided_slice %185 {offsets = [0, 128], sizes = [8, 128], strides = [1, 1]} : vector<8x512xf32> to vector<8x128xf32>
    %193 = arith.negf %192 : vector<8x128xf32>
    %194 = math.exp %193 : vector<8x128xf32>
    %cst_42 = arith.constant 1.000000e+00 : f32
    %195 = vector.broadcast %cst_42 : f32 to vector<8x128xf32>
    %196 = arith.addf %195, %194 : vector<8x128xf32>
    %197 = arith.divf %195, %196 : vector<8x128xf32>
    %198 = vector.extract_strided_slice %185 {offsets = [0, 256], sizes = [8, 128], strides = [1, 1]} : vector<8x512xf32> to vector<8x128xf32>
    %199 = math.tanh %198 : vector<8x128xf32>
    %200 = vector.extract_strided_slice %185 {offsets = [0, 384], sizes = [8, 128], strides = [1, 1]} : vector<8x512xf32> to vector<8x128xf32>
    %201 = arith.negf %200 : vector<8x128xf32>
    %202 = math.exp %201 : vector<8x128xf32>
    %cst_43 = arith.constant 1.000000e+00 : f32
    %203 = vector.broadcast %cst_43 : f32 to vector<8x128xf32>
    %204 = arith.addf %203, %202 : vector<8x128xf32>
    %205 = arith.divf %203, %204 : vector<8x128xf32>
    %206 = arith.mulf %197, %179 : vector<8x128xf32>
    %207 = arith.mulf %191, %199 : vector<8x128xf32>
    %208 = arith.addf %206, %207 : vector<8x128xf32>
    %209 = math.tanh %208 : vector<8x128xf32>
    %210 = arith.mulf %205, %209 : vector<8x128xf32>
    %c48 = arith.constant 48 : index
    %c0_44 = arith.constant 0 : index
    %211 = vector.load %arg10[%c48, %c0_44] : memref<64x128xf32, #tpu.memory_space<vmem>>, vector<8x128xf32>
    tpu.vector_store %arg10[%c48, %c0_44], %210 {strides = array<i32>} : memref<64x128xf32, #tpu.memory_space<vmem>>, vector<8x128xf32>,
    %212 = vector.extract_strided_slice %5 {offsets = [56, 0], sizes = [8, 512], strides = [1, 1]} : vector<64x512xf32> to vector<8x512xf32>
    %cst_45 = arith.constant dense<0.000000e+00> : vector<8x512xf32>
    %213 = tpu.matmul %210, %6, %cst_45 {dimension_numbers = #tpu.dot_dimension_numbers<[1], [0], [0], [1], [0, 0, 1, 1], [], []>} : vector<8x128xf32>, vector<128x512xf32>, vector<8x512xf32> -> vector<8x512xf32>
    %214 = arith.addf %212, %213 : vector<8x512xf32>
    %215 = vector.extract_strided_slice %214 {offsets = [0, 0], sizes = [8, 128], strides = [1, 1]} : vector<8x512xf32> to vector<8x128xf32>
    %216 = arith.negf %215 : vector<8x128xf32>
    %217 = math.exp %216 : vector<8x128xf32>
    %cst_46 = arith.constant 1.000000e+00 : f32
    %218 = vector.broadcast %cst_46 : f32 to vector<8x128xf32>
    %219 = arith.addf %218, %217 : vector<8x128xf32>
    %220 = arith.divf %218, %219 : vector<8x128xf32>
    %221 = vector.extract_strided_slice %214 {offsets = [0, 128], sizes = [8, 128], strides = [1, 1]} : vector<8x512xf32> to vector<8x128xf32>
    %222 = arith.negf %221 : vector<8x128xf32>
    %223 = math.exp %222 : vector<8x128xf32>
    %cst_47 = arith.constant 1.000000e+00 : f32
    %224 = vector.broadcast %cst_47 : f32 to vector<8x128xf32>
    %225 = arith.addf %224, %223 : vector<8x128xf32>
    %226 = arith.divf %224, %225 : vector<8x128xf32>
    %227 = vector.extract_strided_slice %214 {offsets = [0, 256], sizes = [8, 128], strides = [1, 1]} : vector<8x512xf32> to vector<8x128xf32>
    %228 = math.tanh %227 : vector<8x128xf32>
    %229 = vector.extract_strided_slice %214 {offsets = [0, 384], sizes = [8, 128], strides = [1, 1]} : vector<8x512xf32> to vector<8x128xf32>
    %230 = arith.negf %229 : vector<8x128xf32>
    %231 = math.exp %230 : vector<8x128xf32>
    %cst_48 = arith.constant 1.000000e+00 : f32
    %232 = vector.broadcast %cst_48 : f32 to vector<8x128xf32>
    %233 = arith.addf %232, %231 : vector<8x128xf32>
    %234 = arith.divf %232, %233 : vector<8x128xf32>
    %235 = arith.mulf %226, %208 : vector<8x128xf32>
    %236 = arith.mulf %220, %228 : vector<8x128xf32>
    %237 = arith.addf %235, %236 : vector<8x128xf32>
    %238 = math.tanh %237 : vector<8x128xf32>
    %239 = arith.mulf %234, %238 : vector<8x128xf32>
    %c56 = arith.constant 56 : index
    %c0_49 = arith.constant 0 : index
    %240 = vector.load %arg10[%c56, %c0_49] : memref<64x128xf32, #tpu.memory_space<vmem>>, vector<8x128xf32>
    tpu.vector_store %arg10[%c56, %c0_49], %239 {strides = array<i32>} : memref<64x128xf32, #tpu.memory_space<vmem>>, vector<8x128xf32>,
    %c0_50 = arith.constant 0 : index
    %c0_51 = arith.constant 0 : index
    %241 = vector.load %arg10[%c0_50, %c0_51] : memref<64x128xf32, #tpu.memory_space<vmem>>, vector<64x128xf32>
    %c0_52 = arith.constant 0 : index
    %c0_53 = arith.constant 0 : index
    %242 = vector.load %arg4[%c0_52, %c0_53] : memref<128x512xf32, #tpu.memory_space<vmem>>, vector<128x512xf32>
    %cst_54 = arith.constant dense<0.000000e+00> : vector<64x512xf32>
    %243 = tpu.matmul %241, %242, %cst_54 {dimension_numbers = #tpu.dot_dimension_numbers<[1], [0], [0], [1], [0, 0, 1, 1], [], []>} : vector<64x128xf32>, vector<128x512xf32>, vector<64x512xf32> -> vector<64x512xf32>
    %c0_55 = arith.constant 0 : index
    %c0_56 = arith.constant 0 : index
    %244 = vector.load %arg6[%c0_55, %c0_56] : memref<1x512xf32, #tpu.memory_space<vmem>>, vector<1x512xf32>
    %245 = vector.broadcast %244 : vector<1x512xf32> to vector<64x512xf32>
    %246 = arith.addf %243, %245 : vector<64x512xf32>
    %c0_57 = arith.constant 0 : index
    %c0_58 = arith.constant 0 : index
    %247 = vector.load %arg5[%c0_57, %c0_58] : memref<128x512xf32, #tpu.memory_space<vmem>>, vector<128x512xf32>
    %cst_59 = arith.constant 0.000000e+00 : f32
    %248 = vector.broadcast %cst_59 : f32 to vector<8x128xf32>
    %cst_60 = arith.constant 0.000000e+00 : f32
    %249 = vector.broadcast %cst_60 : f32 to vector<8x128xf32>
    %250 = vector.extract_strided_slice %246 {offsets = [0, 0], sizes = [8, 512], strides = [1, 1]} : vector<64x512xf32> to vector<8x512xf32>
    %cst_61 = arith.constant dense<0.000000e+00> : vector<8x512xf32>
    %251 = tpu.matmul %248, %247, %cst_61 {dimension_numbers = #tpu.dot_dimension_numbers<[1], [0], [0], [1], [0, 0, 1, 1], [], []>} : vector<8x128xf32>, vector<128x512xf32>, vector<8x512xf32> -> vector<8x512xf32>
    %252 = arith.addf %250, %251 : vector<8x512xf32>
    %253 = vector.extract_strided_slice %252 {offsets = [0, 0], sizes = [8, 128], strides = [1, 1]} : vector<8x512xf32> to vector<8x128xf32>
    %254 = arith.negf %253 : vector<8x128xf32>
    %255 = math.exp %254 : vector<8x128xf32>
    %cst_62 = arith.constant 1.000000e+00 : f32
    %256 = vector.broadcast %cst_62 : f32 to vector<8x128xf32>
    %257 = arith.addf %256, %255 : vector<8x128xf32>
    %258 = arith.divf %256, %257 : vector<8x128xf32>
    %259 = vector.extract_strided_slice %252 {offsets = [0, 128], sizes = [8, 128], strides = [1, 1]} : vector<8x512xf32> to vector<8x128xf32>
    %260 = arith.negf %259 : vector<8x128xf32>
    %261 = math.exp %260 : vector<8x128xf32>
    %cst_63 = arith.constant 1.000000e+00 : f32
    %262 = vector.broadcast %cst_63 : f32 to vector<8x128xf32>
    %263 = arith.addf %262, %261 : vector<8x128xf32>
    %264 = arith.divf %262, %263 : vector<8x128xf32>
    %265 = vector.extract_strided_slice %252 {offsets = [0, 256], sizes = [8, 128], strides = [1, 1]} : vector<8x512xf32> to vector<8x128xf32>
    %266 = math.tanh %265 : vector<8x128xf32>
    %267 = vector.extract_strided_slice %252 {offsets = [0, 384], sizes = [8, 128], strides = [1, 1]} : vector<8x512xf32> to vector<8x128xf32>
    %268 = arith.negf %267 : vector<8x128xf32>
    %269 = math.exp %268 : vector<8x128xf32>
    %cst_64 = arith.constant 1.000000e+00 : f32
    %270 = vector.broadcast %cst_64 : f32 to vector<8x128xf32>
    %271 = arith.addf %270, %269 : vector<8x128xf32>
    %272 = arith.divf %270, %271 : vector<8x128xf32>
    %273 = arith.mulf %264, %249 : vector<8x128xf32>
    %274 = arith.mulf %258, %266 : vector<8x128xf32>
    %275 = arith.addf %273, %274 : vector<8x128xf32>
    %276 = math.tanh %275 : vector<8x128xf32>
    %277 = arith.mulf %272, %276 : vector<8x128xf32>
    %278 = vector.extract_strided_slice %246 {offsets = [8, 0], sizes = [8, 512], strides = [1, 1]} : vector<64x512xf32> to vector<8x512xf32>
    %cst_65 = arith.constant dense<0.000000e+00> : vector<8x512xf32>
    %279 = tpu.matmul %277, %247, %cst_65 {dimension_numbers = #tpu.dot_dimension_numbers<[1], [0], [0], [1], [0, 0, 1, 1], [], []>} : vector<8x128xf32>, vector<128x512xf32>, vector<8x512xf32> -> vector<8x512xf32>
    %280 = arith.addf %278, %279 : vector<8x512xf32>
    %281 = vector.extract_strided_slice %280 {offsets = [0, 0], sizes = [8, 128], strides = [1, 1]} : vector<8x512xf32> to vector<8x128xf32>
    %282 = arith.negf %281 : vector<8x128xf32>
    %283 = math.exp %282 : vector<8x128xf32>
    %cst_66 = arith.constant 1.000000e+00 : f32
    %284 = vector.broadcast %cst_66 : f32 to vector<8x128xf32>
    %285 = arith.addf %284, %283 : vector<8x128xf32>
    %286 = arith.divf %284, %285 : vector<8x128xf32>
    %287 = vector.extract_strided_slice %280 {offsets = [0, 128], sizes = [8, 128], strides = [1, 1]} : vector<8x512xf32> to vector<8x128xf32>
    %288 = arith.negf %287 : vector<8x128xf32>
    %289 = math.exp %288 : vector<8x128xf32>
    %cst_67 = arith.constant 1.000000e+00 : f32
    %290 = vector.broadcast %cst_67 : f32 to vector<8x128xf32>
    %291 = arith.addf %290, %289 : vector<8x128xf32>
    %292 = arith.divf %290, %291 : vector<8x128xf32>
    %293 = vector.extract_strided_slice %280 {offsets = [0, 256], sizes = [8, 128], strides = [1, 1]} : vector<8x512xf32> to vector<8x128xf32>
    %294 = math.tanh %293 : vector<8x128xf32>
    %295 = vector.extract_strided_slice %280 {offsets = [0, 384], sizes = [8, 128], strides = [1, 1]} : vector<8x512xf32> to vector<8x128xf32>
    %296 = arith.negf %295 : vector<8x128xf32>
    %297 = math.exp %296 : vector<8x128xf32>
    %cst_68 = arith.constant 1.000000e+00 : f32
    %298 = vector.broadcast %cst_68 : f32 to vector<8x128xf32>
    %299 = arith.addf %298, %297 : vector<8x128xf32>
    %300 = arith.divf %298, %299 : vector<8x128xf32>
    %301 = arith.mulf %292, %275 : vector<8x128xf32>
    %302 = arith.mulf %286, %294 : vector<8x128xf32>
    %303 = arith.addf %301, %302 : vector<8x128xf32>
    %304 = math.tanh %303 : vector<8x128xf32>
    %305 = arith.mulf %300, %304 : vector<8x128xf32>
    %306 = vector.extract_strided_slice %246 {offsets = [16, 0], sizes = [8, 512], strides = [1, 1]} : vector<64x512xf32> to vector<8x512xf32>
    %cst_69 = arith.constant dense<0.000000e+00> : vector<8x512xf32>
    %307 = tpu.matmul %305, %247, %cst_69 {dimension_numbers = #tpu.dot_dimension_numbers<[1], [0], [0], [1], [0, 0, 1, 1], [], []>} : vector<8x128xf32>, vector<128x512xf32>, vector<8x512xf32> -> vector<8x512xf32>
    %308 = arith.addf %306, %307 : vector<8x512xf32>
    %309 = vector.extract_strided_slice %308 {offsets = [0, 0], sizes = [8, 128], strides = [1, 1]} : vector<8x512xf32> to vector<8x128xf32>
    %310 = arith.negf %309 : vector<8x128xf32>
    %311 = math.exp %310 : vector<8x128xf32>
    %cst_70 = arith.constant 1.000000e+00 : f32
    %312 = vector.broadcast %cst_70 : f32 to vector<8x128xf32>
    %313 = arith.addf %312, %311 : vector<8x128xf32>
    %314 = arith.divf %312, %313 : vector<8x128xf32>
    %315 = vector.extract_strided_slice %308 {offsets = [0, 128], sizes = [8, 128], strides = [1, 1]} : vector<8x512xf32> to vector<8x128xf32>
    %316 = arith.negf %315 : vector<8x128xf32>
    %317 = math.exp %316 : vector<8x128xf32>
    %cst_71 = arith.constant 1.000000e+00 : f32
    %318 = vector.broadcast %cst_71 : f32 to vector<8x128xf32>
    %319 = arith.addf %318, %317 : vector<8x128xf32>
    %320 = arith.divf %318, %319 : vector<8x128xf32>
    %321 = vector.extract_strided_slice %308 {offsets = [0, 256], sizes = [8, 128], strides = [1, 1]} : vector<8x512xf32> to vector<8x128xf32>
    %322 = math.tanh %321 : vector<8x128xf32>
    %323 = vector.extract_strided_slice %308 {offsets = [0, 384], sizes = [8, 128], strides = [1, 1]} : vector<8x512xf32> to vector<8x128xf32>
    %324 = arith.negf %323 : vector<8x128xf32>
    %325 = math.exp %324 : vector<8x128xf32>
    %cst_72 = arith.constant 1.000000e+00 : f32
    %326 = vector.broadcast %cst_72 : f32 to vector<8x128xf32>
    %327 = arith.addf %326, %325 : vector<8x128xf32>
    %328 = arith.divf %326, %327 : vector<8x128xf32>
    %329 = arith.mulf %320, %303 : vector<8x128xf32>
    %330 = arith.mulf %314, %322 : vector<8x128xf32>
    %331 = arith.addf %329, %330 : vector<8x128xf32>
    %332 = math.tanh %331 : vector<8x128xf32>
    %333 = arith.mulf %328, %332 : vector<8x128xf32>
    %334 = vector.extract_strided_slice %246 {offsets = [24, 0], sizes = [8, 512], strides = [1, 1]} : vector<64x512xf32> to vector<8x512xf32>
    %cst_73 = arith.constant dense<0.000000e+00> : vector<8x512xf32>
    %335 = tpu.matmul %333, %247, %cst_73 {dimension_numbers = #tpu.dot_dimension_numbers<[1], [0], [0], [1], [0, 0, 1, 1], [], []>} : vector<8x128xf32>, vector<128x512xf32>, vector<8x512xf32> -> vector<8x512xf32>
    %336 = arith.addf %334, %335 : vector<8x512xf32>
    %337 = vector.extract_strided_slice %336 {offsets = [0, 0], sizes = [8, 128], strides = [1, 1]} : vector<8x512xf32> to vector<8x128xf32>
    %338 = arith.negf %337 : vector<8x128xf32>
    %339 = math.exp %338 : vector<8x128xf32>
    %cst_74 = arith.constant 1.000000e+00 : f32
    %340 = vector.broadcast %cst_74 : f32 to vector<8x128xf32>
    %341 = arith.addf %340, %339 : vector<8x128xf32>
    %342 = arith.divf %340, %341 : vector<8x128xf32>
    %343 = vector.extract_strided_slice %336 {offsets = [0, 128], sizes = [8, 128], strides = [1, 1]} : vector<8x512xf32> to vector<8x128xf32>
    %344 = arith.negf %343 : vector<8x128xf32>
    %345 = math.exp %344 : vector<8x128xf32>
    %cst_75 = arith.constant 1.000000e+00 : f32
    %346 = vector.broadcast %cst_75 : f32 to vector<8x128xf32>
    %347 = arith.addf %346, %345 : vector<8x128xf32>
    %348 = arith.divf %346, %347 : vector<8x128xf32>
    %349 = vector.extract_strided_slice %336 {offsets = [0, 256], sizes = [8, 128], strides = [1, 1]} : vector<8x512xf32> to vector<8x128xf32>
    %350 = math.tanh %349 : vector<8x128xf32>
    %351 = vector.extract_strided_slice %336 {offsets = [0, 384], sizes = [8, 128], strides = [1, 1]} : vector<8x512xf32> to vector<8x128xf32>
    %352 = arith.negf %351 : vector<8x128xf32>
    %353 = math.exp %352 : vector<8x128xf32>
    %cst_76 = arith.constant 1.000000e+00 : f32
    %354 = vector.broadcast %cst_76 : f32 to vector<8x128xf32>
    %355 = arith.addf %354, %353 : vector<8x128xf32>
    %356 = arith.divf %354, %355 : vector<8x128xf32>
    %357 = arith.mulf %348, %331 : vector<8x128xf32>
    %358 = arith.mulf %342, %350 : vector<8x128xf32>
    %359 = arith.addf %357, %358 : vector<8x128xf32>
    %360 = math.tanh %359 : vector<8x128xf32>
    %361 = arith.mulf %356, %360 : vector<8x128xf32>
    %362 = vector.extract_strided_slice %246 {offsets = [32, 0], sizes = [8, 512], strides = [1, 1]} : vector<64x512xf32> to vector<8x512xf32>
    %cst_77 = arith.constant dense<0.000000e+00> : vector<8x512xf32>
    %363 = tpu.matmul %361, %247, %cst_77 {dimension_numbers = #tpu.dot_dimension_numbers<[1], [0], [0], [1], [0, 0, 1, 1], [], []>} : vector<8x128xf32>, vector<128x512xf32>, vector<8x512xf32> -> vector<8x512xf32>
    %364 = arith.addf %362, %363 : vector<8x512xf32>
    %365 = vector.extract_strided_slice %364 {offsets = [0, 0], sizes = [8, 128], strides = [1, 1]} : vector<8x512xf32> to vector<8x128xf32>
    %366 = arith.negf %365 : vector<8x128xf32>
    %367 = math.exp %366 : vector<8x128xf32>
    %cst_78 = arith.constant 1.000000e+00 : f32
    %368 = vector.broadcast %cst_78 : f32 to vector<8x128xf32>
    %369 = arith.addf %368, %367 : vector<8x128xf32>
    %370 = arith.divf %368, %369 : vector<8x128xf32>
    %371 = vector.extract_strided_slice %364 {offsets = [0, 128], sizes = [8, 128], strides = [1, 1]} : vector<8x512xf32> to vector<8x128xf32>
    %372 = arith.negf %371 : vector<8x128xf32>
    %373 = math.exp %372 : vector<8x128xf32>
    %cst_79 = arith.constant 1.000000e+00 : f32
    %374 = vector.broadcast %cst_79 : f32 to vector<8x128xf32>
    %375 = arith.addf %374, %373 : vector<8x128xf32>
    %376 = arith.divf %374, %375 : vector<8x128xf32>
    %377 = vector.extract_strided_slice %364 {offsets = [0, 256], sizes = [8, 128], strides = [1, 1]} : vector<8x512xf32> to vector<8x128xf32>
    %378 = math.tanh %377 : vector<8x128xf32>
    %379 = vector.extract_strided_slice %364 {offsets = [0, 384], sizes = [8, 128], strides = [1, 1]} : vector<8x512xf32> to vector<8x128xf32>
    %380 = arith.negf %379 : vector<8x128xf32>
    %381 = math.exp %380 : vector<8x128xf32>
    %cst_80 = arith.constant 1.000000e+00 : f32
    %382 = vector.broadcast %cst_80 : f32 to vector<8x128xf32>
    %383 = arith.addf %382, %381 : vector<8x128xf32>
    %384 = arith.divf %382, %383 : vector<8x128xf32>
    %385 = arith.mulf %376, %359 : vector<8x128xf32>
    %386 = arith.mulf %370, %378 : vector<8x128xf32>
    %387 = arith.addf %385, %386 : vector<8x128xf32>
    %388 = math.tanh %387 : vector<8x128xf32>
    %389 = arith.mulf %384, %388 : vector<8x128xf32>
    %390 = vector.extract_strided_slice %246 {offsets = [40, 0], sizes = [8, 512], strides = [1, 1]} : vector<64x512xf32> to vector<8x512xf32>
    %cst_81 = arith.constant dense<0.000000e+00> : vector<8x512xf32>
    %391 = tpu.matmul %389, %247, %cst_81 {dimension_numbers = #tpu.dot_dimension_numbers<[1], [0], [0], [1], [0, 0, 1, 1], [], []>} : vector<8x128xf32>, vector<128x512xf32>, vector<8x512xf32> -> vector<8x512xf32>
    %392 = arith.addf %390, %391 : vector<8x512xf32>
    %393 = vector.extract_strided_slice %392 {offsets = [0, 0], sizes = [8, 128], strides = [1, 1]} : vector<8x512xf32> to vector<8x128xf32>
    %394 = arith.negf %393 : vector<8x128xf32>
    %395 = math.exp %394 : vector<8x128xf32>
    %cst_82 = arith.constant 1.000000e+00 : f32
    %396 = vector.broadcast %cst_82 : f32 to vector<8x128xf32>
    %397 = arith.addf %396, %395 : vector<8x128xf32>
    %398 = arith.divf %396, %397 : vector<8x128xf32>
    %399 = vector.extract_strided_slice %392 {offsets = [0, 128], sizes = [8, 128], strides = [1, 1]} : vector<8x512xf32> to vector<8x128xf32>
    %400 = arith.negf %399 : vector<8x128xf32>
    %401 = math.exp %400 : vector<8x128xf32>
    %cst_83 = arith.constant 1.000000e+00 : f32
    %402 = vector.broadcast %cst_83 : f32 to vector<8x128xf32>
    %403 = arith.addf %402, %401 : vector<8x128xf32>
    %404 = arith.divf %402, %403 : vector<8x128xf32>
    %405 = vector.extract_strided_slice %392 {offsets = [0, 256], sizes = [8, 128], strides = [1, 1]} : vector<8x512xf32> to vector<8x128xf32>
    %406 = math.tanh %405 : vector<8x128xf32>
    %407 = vector.extract_strided_slice %392 {offsets = [0, 384], sizes = [8, 128], strides = [1, 1]} : vector<8x512xf32> to vector<8x128xf32>
    %408 = arith.negf %407 : vector<8x128xf32>
    %409 = math.exp %408 : vector<8x128xf32>
    %cst_84 = arith.constant 1.000000e+00 : f32
    %410 = vector.broadcast %cst_84 : f32 to vector<8x128xf32>
    %411 = arith.addf %410, %409 : vector<8x128xf32>
    %412 = arith.divf %410, %411 : vector<8x128xf32>
    %413 = arith.mulf %404, %387 : vector<8x128xf32>
    %414 = arith.mulf %398, %406 : vector<8x128xf32>
    %415 = arith.addf %413, %414 : vector<8x128xf32>
    %416 = math.tanh %415 : vector<8x128xf32>
    %417 = arith.mulf %412, %416 : vector<8x128xf32>
    %418 = vector.extract_strided_slice %246 {offsets = [48, 0], sizes = [8, 512], strides = [1, 1]} : vector<64x512xf32> to vector<8x512xf32>
    %cst_85 = arith.constant dense<0.000000e+00> : vector<8x512xf32>
    %419 = tpu.matmul %417, %247, %cst_85 {dimension_numbers = #tpu.dot_dimension_numbers<[1], [0], [0], [1], [0, 0, 1, 1], [], []>} : vector<8x128xf32>, vector<128x512xf32>, vector<8x512xf32> -> vector<8x512xf32>
    %420 = arith.addf %418, %419 : vector<8x512xf32>
    %421 = vector.extract_strided_slice %420 {offsets = [0, 0], sizes = [8, 128], strides = [1, 1]} : vector<8x512xf32> to vector<8x128xf32>
    %422 = arith.negf %421 : vector<8x128xf32>
    %423 = math.exp %422 : vector<8x128xf32>
    %cst_86 = arith.constant 1.000000e+00 : f32
    %424 = vector.broadcast %cst_86 : f32 to vector<8x128xf32>
    %425 = arith.addf %424, %423 : vector<8x128xf32>
    %426 = arith.divf %424, %425 : vector<8x128xf32>
    %427 = vector.extract_strided_slice %420 {offsets = [0, 128], sizes = [8, 128], strides = [1, 1]} : vector<8x512xf32> to vector<8x128xf32>
    %428 = arith.negf %427 : vector<8x128xf32>
    %429 = math.exp %428 : vector<8x128xf32>
    %cst_87 = arith.constant 1.000000e+00 : f32
    %430 = vector.broadcast %cst_87 : f32 to vector<8x128xf32>
    %431 = arith.addf %430, %429 : vector<8x128xf32>
    %432 = arith.divf %430, %431 : vector<8x128xf32>
    %433 = vector.extract_strided_slice %420 {offsets = [0, 256], sizes = [8, 128], strides = [1, 1]} : vector<8x512xf32> to vector<8x128xf32>
    %434 = math.tanh %433 : vector<8x128xf32>
    %435 = vector.extract_strided_slice %420 {offsets = [0, 384], sizes = [8, 128], strides = [1, 1]} : vector<8x512xf32> to vector<8x128xf32>
    %436 = arith.negf %435 : vector<8x128xf32>
    %437 = math.exp %436 : vector<8x128xf32>
    %cst_88 = arith.constant 1.000000e+00 : f32
    %438 = vector.broadcast %cst_88 : f32 to vector<8x128xf32>
    %439 = arith.addf %438, %437 : vector<8x128xf32>
    %440 = arith.divf %438, %439 : vector<8x128xf32>
    %441 = arith.mulf %432, %415 : vector<8x128xf32>
    %442 = arith.mulf %426, %434 : vector<8x128xf32>
    %443 = arith.addf %441, %442 : vector<8x128xf32>
    %444 = math.tanh %443 : vector<8x128xf32>
    %445 = arith.mulf %440, %444 : vector<8x128xf32>
    %446 = vector.extract_strided_slice %246 {offsets = [56, 0], sizes = [8, 512], strides = [1, 1]} : vector<64x512xf32> to vector<8x512xf32>
    %cst_89 = arith.constant dense<0.000000e+00> : vector<8x512xf32>
    %447 = tpu.matmul %445, %247, %cst_89 {dimension_numbers = #tpu.dot_dimension_numbers<[1], [0], [0], [1], [0, 0, 1, 1], [], []>} : vector<8x128xf32>, vector<128x512xf32>, vector<8x512xf32> -> vector<8x512xf32>
    %448 = arith.addf %446, %447 : vector<8x512xf32>
    %449 = vector.extract_strided_slice %448 {offsets = [0, 0], sizes = [8, 128], strides = [1, 1]} : vector<8x512xf32> to vector<8x128xf32>
    %450 = arith.negf %449 : vector<8x128xf32>
    %451 = math.exp %450 : vector<8x128xf32>
    %cst_90 = arith.constant 1.000000e+00 : f32
    %452 = vector.broadcast %cst_90 : f32 to vector<8x128xf32>
    %453 = arith.addf %452, %451 : vector<8x128xf32>
    %454 = arith.divf %452, %453 : vector<8x128xf32>
    %455 = vector.extract_strided_slice %448 {offsets = [0, 128], sizes = [8, 128], strides = [1, 1]} : vector<8x512xf32> to vector<8x128xf32>
    %456 = arith.negf %455 : vector<8x128xf32>
    %457 = math.exp %456 : vector<8x128xf32>
    %cst_91 = arith.constant 1.000000e+00 : f32
    %458 = vector.broadcast %cst_91 : f32 to vector<8x128xf32>
    %459 = arith.addf %458, %457 : vector<8x128xf32>
    %460 = arith.divf %458, %459 : vector<8x128xf32>
    %461 = vector.extract_strided_slice %448 {offsets = [0, 256], sizes = [8, 128], strides = [1, 1]} : vector<8x512xf32> to vector<8x128xf32>
    %462 = math.tanh %461 : vector<8x128xf32>
    %463 = vector.extract_strided_slice %448 {offsets = [0, 384], sizes = [8, 128], strides = [1, 1]} : vector<8x512xf32> to vector<8x128xf32>
    %464 = arith.negf %463 : vector<8x128xf32>
    %465 = math.exp %464 : vector<8x128xf32>
    %cst_92 = arith.constant 1.000000e+00 : f32
    %466 = vector.broadcast %cst_92 : f32 to vector<8x128xf32>
    %467 = arith.addf %466, %465 : vector<8x128xf32>
    %468 = arith.divf %466, %467 : vector<8x128xf32>
    %469 = arith.mulf %460, %443 : vector<8x128xf32>
    %470 = arith.mulf %454, %462 : vector<8x128xf32>
    %471 = arith.addf %469, %470 : vector<8x128xf32>
    %472 = math.tanh %471 : vector<8x128xf32>
    %473 = arith.mulf %468, %472 : vector<8x128xf32>
    %c0_93 = arith.constant 0 : index
    %c0_94 = arith.constant 0 : index
    %474 = vector.load %arg7[%c0_93, %c0_94] : memref<128x128xf32, #tpu.memory_space<vmem>>, vector<128x128xf32>
    %cst_95 = arith.constant dense<0.000000e+00> : vector<8x128xf32>
    %475 = tpu.matmul %473, %474, %cst_95 {dimension_numbers = #tpu.dot_dimension_numbers<[1], [0], [0], [1], [0, 0, 1, 1], [], []>} : vector<8x128xf32>, vector<128x128xf32>, vector<8x128xf32> -> vector<8x128xf32>
    %c0_96 = arith.constant 0 : index
    %c0_97 = arith.constant 0 : index
    %476 = vector.load %arg8[%c0_96, %c0_97] : memref<1x128xf32, #tpu.memory_space<vmem>>, vector<1x128xf32>
    %477 = vector.broadcast %476 : vector<1x128xf32> to vector<8x128xf32>
    %478 = arith.addf %475, %477 : vector<8x128xf32>
    %c0_98 = arith.constant 0 : index
    %c0_99 = arith.constant 0 : index
    %479 = vector.load %arg9[%c0_98, %c0_99] : memref<8x128xf32, #tpu.memory_space<vmem>>, vector<8x128xf32>
    tpu.vector_store %arg9[%c0_98, %c0_99], %478 {strides = array<i32>} : memref<8x128xf32, #tpu.memory_space<vmem>>, vector<8x128xf32>,
    return
  }
}

</mosaic_0001>

<llo_original>
// kernel: rnn_classifier_forward.1
$region0: #{rnn_classifier_forward.1}
  #allocation0 [shape = 'u32[]', space=smem, size = 0x4, offset = 0x4, fixed_abs, tag = 'smem constant byte address 0x4 - core index']
  #allocation1 [shape = 'u32[144,128]{1,0:T(1,128)}', space=vmem, size = 0x12000, scoped, tag = 'internal scratch']
  #allocation2 [shape = 'f32[64,128]{1,0:T(8,128)}', space=vmem, size = 0x8000, scoped, tag = 'scratch operand']
  %s0 = inlined_call_operand.vmem [shape: f32[64,64], index: 0, kind: input, shape index: {}]
  %s1 = inlined_call_operand.hbm [shape: f32[64,512], index: 1, kind: input, shape index: {}]
  %s2 = inlined_call_operand.hbm [shape: f32[128,512], index: 2, kind: input, shape index: {}]
  %s3 = inlined_call_operand.hbm [shape: f32[1,512], index: 3, kind: input, shape index: {}]
  %s4 = inlined_call_operand.hbm [shape: f32[128,512], index: 4, kind: input, shape index: {}]
  %s5 = inlined_call_operand.hbm [shape: f32[128,512], index: 5, kind: input, shape index: {}]
  %s6 = inlined_call_operand.hbm [shape: f32[1,512], index: 6, kind: input, shape index: {}]
  %s7 = inlined_call_operand.vmem [shape: f32[128,128], index: 7, kind: input, shape index: {}]
  %s8 = inlined_call_operand.vmem [shape: f32[1,128], index: 8, kind: input, shape index: {}]
  %s9 = inlined_call_operand.vmem [shape: f32[8,128], index: 9, kind: output, shape index: {}]
  %s10 = sld [smem:[#allocation0]]
  $region70: #{rnn_classifier_forward.1} parent=0
    _
  %s12 = ssub.s32 1, %s10
  %s13 = scalar_select 0, %s12, %s10
  $region1: #{rnn_classifier_forward.1} parent=0
    #allocation3 [shape = 'u8[131072]{0}', space=vmem, size = 0x20000, scoped, tag = 'input window, operand 1, single buffered']
    #allocation4 [shape = 's32[1]{0}', space=sflag, size = 0x4, scoped, tag = 'scoped memory for rnn_classifier_forward.1']
    #allocation5 [shape = 'u8[262144]{0}', space=vmem, size = 0x40000, scoped, tag = 'input window, operand 2, single buffered']
    #allocation6 [shape = 's32[1]{0}', space=sflag, size = 0x4, scoped, tag = 'scoped memory for rnn_classifier_forward.1']
    #allocation7 [shape = 'u8[2048]{0}', space=vmem, size = 0x800, scoped, tag = 'input window, operand 3, single buffered']
    #allocation8 [shape = 'u8[262144]{0}', space=vmem, size = 0x40000, scoped, tag = 'input window, operand 4, single buffered']
    #allocation9 [shape = 's32[1]{0}', space=sflag, size = 0x4, scoped, tag = 'scoped memory for rnn_classifier_forward.1']
    #allocation10 [shape = 'u8[262144]{0}', space=vmem, size = 0x40000, scoped, tag = 'input window, operand 5, single buffered']
    #allocation11 [shape = 'u8[2048]{0}', space=vmem, size = 0x800, scoped, tag = 'input window, operand 6, single buffered']
    #allocation12 [shape = 's32[1]{0}', space=sflag, size = 0x4, scoped, tag = 'scoped memory for rnn_classifier_forward.1']
    %14 = vsyncpa [#allocation4], 0
    %15 = vsyncpa [#allocation6], 0
    %16 = vsyncpa [#allocation9], 0
    %17 = vsyncpa [#allocation12], 0
    // Predicated region
    $region2: #{rnn_classifier_forward.1} parent=1 // pred_check
      _
    $region3: #{rnn_classifier_forward.1} parent=1 // pred_check_branch
      %19 = sbr.rel (0) target = $region5
    $region4: #{rnn_classifier_forward.1} parent=1 // pred_region
      _
    $region5: #{rnn_classifier_forward.1} parent=1 // pred_fallthru
      _
    // Predicated region
    $region6: #{rnn_classifier_forward.1} parent=1 // pred_check
      _
    $region7: #{rnn_classifier_forward.1} parent=1 // pred_check_branch
      %21 = sbr.rel (0) target = $region9
    $region8: #{rnn_classifier_forward.1} parent=1 // pred_region
      %s23 = ssub.s32 4096, 4096
      %24 = vsyncadd [#allocation4], %s23
      %s25 = sshll.u32 [#allocation3], 4
      %s26 = int_to_ptr.vmem [resolvable:$true] %s25
      %31 = dma.hbm_to_vmem [thread:$0]  %s1, 4096, %s26, [#allocation4], 512, 512, 32
    $region9: #{rnn_classifier_forward.1} parent=1 // pred_fallthru
      _
    // Predicated region
    $region10: #{rnn_classifier_forward.1} parent=1 // pred_check
      _
    $region11: #{rnn_classifier_forward.1} parent=1 // pred_check_branch
      %33 = sbr.rel (0) target = $region13
    $region12: #{rnn_classifier_forward.1} parent=1 // pred_region
      %s35 = ssub.s32 8192, 8192
      %36 = vsyncadd [#allocation6], %s35
      %s37 = sshll.u32 [#allocation5], 4
      %s38 = int_to_ptr.vmem [resolvable:$true] %s37
      %43 = dma.hbm_to_vmem [thread:$0]  %s2, 8192, %s38, [#allocation6], 512, 512, 32
    $region13: #{rnn_classifier_forward.1} parent=1 // pred_fallthru
      _
    // Predicated region
    $region14: #{rnn_classifier_forward.1} parent=1 // pred_check
      _
    $region15: #{rnn_classifier_forward.1} parent=1 // pred_check_branch
      %45 = sbr.rel (0) target = $region17
    $region16: #{rnn_classifier_forward.1} parent=1 // pred_region
      %s47 = ssub.s32 64, 64
      %48 = vsyncadd [#allocation6], %s47
      %s50 = sshll.u32 [#allocation7], 4
      %s51 = int_to_ptr.vmem [resolvable:$true] %s50
      %53 = dma.hbm_to_vmem [thread:$0]  %s3, 64, %s51, [#allocation6]
    $region17: #{rnn_classifier_forward.1} parent=1 // pred_fallthru
      _
    // Predicated region
    $region18: #{rnn_classifier_forward.1} parent=1 // pred_check
      _
    $region19: #{rnn_classifier_forward.1} parent=1 // pred_check_branch
      %55 = sbr.rel (0) target = $region21
    $region20: #{rnn_classifier_forward.1} parent=1 // pred_region
      %s57 = ssub.s32 8192, 8192
      %58 = vsyncadd [#allocation9], %s57
      %s59 = sshll.u32 [#allocation8], 4
      %s60 = int_to_ptr.vmem [resolvable:$true] %s59
      %65 = dma.hbm_to_vmem [thread:$0]  %s4, 8192, %s60, [#allocation9], 512, 512, 32
    $region21: #{rnn_classifier_forward.1} parent=1 // pred_fallthru
      _
    // Predicated region
    $region22: #{rnn_classifier_forward.1} parent=1 // pred_check
      _
    $region23: #{rnn_classifier_forward.1} parent=1 // pred_check_branch
      %67 = sbr.rel (0) target = $region25
    $region24: #{rnn_classifier_forward.1} parent=1 // pred_region
      %s69 = ssub.s32 8192, 8192
      %70 = vsyncadd [#allocation9], %s69
      %s71 = sshll.u32 [#allocation10], 4
      %s72 = int_to_ptr.vmem [resolvable:$true] %s71
      %77 = dma.hbm_to_vmem [thread:$0]  %s5, 8192, %s72, [#allocation9], 512, 512, 32
    $region25: #{rnn_classifier_forward.1} parent=1 // pred_fallthru
      _
    // Predicated region
    $region26: #{rnn_classifier_forward.1} parent=1 // pred_check
      _
    $region27: #{rnn_classifier_forward.1} parent=1 // pred_check_branch
      %79 = sbr.rel (0) target = $region29
    $region28: #{rnn_classifier_forward.1} parent=1 // pred_region
      %s81 = ssub.s32 64, 64
      %82 = vsyncadd [#allocation12], %s81
      %s84 = sshll.u32 [#allocation11], 4
      %s85 = int_to_ptr.vmem [resolvable:$true] %s84
      %87 = dma.hbm_to_vmem [thread:$0]  %s6, 64, %s85, [#allocation12]
    $region29: #{rnn_classifier_forward.1} parent=1 // pred_fallthru
      _
    // Predicated region
    $region30: #{rnn_classifier_forward.1} parent=1 // pred_check
      _
    $region31: #{rnn_classifier_forward.1} parent=1 // pred_check_branch
      %89 = sbr.rel (0) target = $region33
    $region32: #{rnn_classifier_forward.1} parent=1 // pred_region
      _
    $region33: #{rnn_classifier_forward.1} parent=1 // pred_fallthru
      _
    // Predicated region
    $region34: #{rnn_classifier_forward.1} parent=1 // pred_check
      _
    $region35: #{rnn_classifier_forward.1} parent=1 // pred_check_branch
      %91 = sbr.rel (0) target = $region37
    $region36: #{rnn_classifier_forward.1} parent=1 // pred_region
      _
    $region37: #{rnn_classifier_forward.1} parent=1 // pred_fallthru
      _
    // Predicated region
    $region38: #{rnn_classifier_forward.1} parent=1 // pred_check
      _
    $region39: #{rnn_classifier_forward.1} parent=1 // pred_check_branch
      %93 = sbr.rel (0) target = $region41
    $region40: #{rnn_classifier_forward.1} parent=1 // pred_region
      %94 = dma.done [#allocation4], 4096
    $region41: #{rnn_classifier_forward.1} parent=1 // pred_fallthru
      _
    // Predicated region
    $region42: #{rnn_classifier_forward.1} parent=1 // pred_check
      _
    $region43: #{rnn_classifier_forward.1} parent=1 // pred_check_branch
      %96 = sbr.rel (0) target = $region45
    $region44: #{rnn_classifier_forward.1} parent=1 // pred_region
      %97 = dma.done [#allocation6], 8192
    $region45: #{rnn_classifier_forward.1} parent=1 // pred_fallthru
      _
    // Predicated region
    $region46: #{rnn_classifier_forward.1} parent=1 // pred_check
      _
    $region47: #{rnn_classifier_forward.1} parent=1 // pred_check_branch
      %99 = sbr.rel (0) target = $region49
    $region48: #{rnn_classifier_forward.1} parent=1 // pred_region
      %100 = dma.done [#allocation6], 64
    $region49: #{rnn_classifier_forward.1} parent=1 // pred_fallthru
      _
    // Predicated region
    $region50: #{rnn_classifier_forward.1} parent=1 // pred_check
      _
    $region51: #{rnn_classifier_forward.1} parent=1 // pred_check_branch
      %102 = sbr.rel (0) target = $region53
    $region52: #{rnn_classifier_forward.1} parent=1 // pred_region
      %103 = dma.done [#allocation9], 8192
    $region53: #{rnn_classifier_forward.1} parent=1 // pred_fallthru
      _
    // Predicated region
    $region54: #{rnn_classifier_forward.1} parent=1 // pred_check
      _
    $region55: #{rnn_classifier_forward.1} parent=1 // pred_check_branch
      %105 = sbr.rel (0) target = $region57
    $region56: #{rnn_classifier_forward.1} parent=1 // pred_region
      %106 = dma.done [#allocation9], 8192
    $region57: #{rnn_classifier_forward.1} parent=1 // pred_fallthru
      _
    // Predicated region
    $region58: #{rnn_classifier_forward.1} parent=1 // pred_check
      _
    $region59: #{rnn_classifier_forward.1} parent=1 // pred_check_branch
      %108 = sbr.rel (0) target = $region61
    $region60: #{rnn_classifier_forward.1} parent=1 // pred_region
      %109 = dma.done [#allocation12], 64
    $region61: #{rnn_classifier_forward.1} parent=1 // pred_fallthru
      _
    %v110 = vld [vmem:[%s0] sm:$0xff]
    %v111 = vld [vmem:[%s0 + $0x8] sm:$0xff]
    %v112 = vld [vmem:[%s0 + $0x10] sm:$0xff]
    %v113 = vld [vmem:[%s0 + $0x18] sm:$0xff]
    %v114 = vld [vmem:[%s0 + $0x20] sm:$0xff]
    %v115 = vld [vmem:[%s0 + $0x28] sm:$0xff]
    %v116 = vld [vmem:[%s0 + $0x30] sm:$0xff]
    %v117 = vld [vmem:[%s0 + $0x38] sm:$0xff]
    %v118 = vld [vmem:[#allocation3] sm:$0xff]
    %v119 = vld [vmem:[#allocation3 + $0x8] sm:$0xff]
    %v120 = vld [vmem:[#allocation3 + $0x10] sm:$0xff]
    %v121 = vld [vmem:[#allocation3 + $0x18] sm:$0xff]
    %v122 = vld [vmem:[#allocation3 + $0x20] sm:$0xff]
    %v123 = vld [vmem:[#allocation3 + $0x28] sm:$0xff]
    %v124 = vld [vmem:[#allocation3 + $0x30] sm:$0xff]
    %v125 = vld [vmem:[#allocation3 + $0x38] sm:$0xff]
    %v126 = vld [vmem:[#allocation3 + $0x40] sm:$0xff]
    %v127 = vld [vmem:[#allocation3 + $0x48] sm:$0xff]
    %v128 = vld [vmem:[#allocation3 + $0x50] sm:$0xff]
    %v129 = vld [vmem:[#allocation3 + $0x58] sm:$0xff]
    %v130 = vld [vmem:[#allocation3 + $0x60] sm:$0xff]
    %v131 = vld [vmem:[#allocation3 + $0x68] sm:$0xff]
    %v132 = vld [vmem:[#allocation3 + $0x70] sm:$0xff]
    %v133 = vld [vmem:[#allocation3 + $0x78] sm:$0xff]
    %v134 = vld [vmem:[#allocation3 + $0x80] sm:$0xff]
    %v135 = vld [vmem:[#allocation3 + $0x88] sm:$0xff]
    %v136 = vld [vmem:[#allocation3 + $0x90] sm:$0xff]
    %v137 = vld [vmem:[#allocation3 + $0x98] sm:$0xff]
    %v138 = vld [vmem:[#allocation3 + $0xa0] sm:$0xff]
    %v139 = vld [vmem:[#allocation3 + $0xa8] sm:$0xff]
    %v140 = vld [vmem:[#allocation3 + $0xb0] sm:$0xff]
    %v141 = vld [vmem:[#allocation3 + $0xb8] sm:$0xff]
    %v142 = vld [vmem:[#allocation3 + $0xc0] sm:$0xff]
    %v143 = vld [vmem:[#allocation3 + $0xc8] sm:$0xff]
    %v144 = vld [vmem:[#allocation3 + $0xd0] sm:$0xff]
    %v145 = vld [vmem:[#allocation3 + $0xd8] sm:$0xff]
    %v146 = vld [vmem:[#allocation3 + $0xe0] sm:$0xff]
    %v147 = vld [vmem:[#allocation3 + $0xe8] sm:$0xff]
    %v148 = vld [vmem:[#allocation3 + $0xf0] sm:$0xff]
    %v149 = vld [vmem:[#allocation3 + $0xf8] sm:$0xff]
    %v150 = vld [vmem:[#allocation7] sm:$0xf]
    %v152 = vlaneseq
    %v153 = vshrl.u32 %v152, 7
    %v154 = vsub.s32 0, %v153
    %v155 = vrot.slane %v150, %v154
    %v156 = vlaneseq
    %v157 = vshrl.u32 %v156, 7
    %v158 = vsub.s32 1, %v157
    %v159 = vrot.slane %v150, %v158
    %v160 = vlaneseq
    %v161 = vshrl.u32 %v160, 7
    %v162 = vsub.s32 2, %v161
    %v163 = vrot.slane %v150, %v162
    %v164 = vlaneseq
    %v165 = vshrl.u32 %v164, 7
    %v166 = vsub.s32 3, %v165
    %v167 = vrot.slane %v150, %v166
    %vm172 = vcmask 523264
    %v174 = vsel %vm172, %v110, 0
    %v177 = vsel %vm172, %v111, 0
    %v180 = vsel %vm172, %v112, 0
    %v183 = vsel %vm172, %v113, 0
    %v186 = vsel %vm172, %v114, 0
    %v189 = vsel %vm172, %v115, 0
    %v192 = vsel %vm172, %v116, 0
    %v195 = vsel %vm172, %v117, 0
    %197 = vmatprep.subr.mxu0 %v119
    %198 = vmatpush1.msra.mxu0 %v118
    %199 = vmatprep.subr.mxu0 %v123
    %200 = vmatpush1.msra.mxu0 %v122
    %201 = vmatprep.subr.mxu0 %v127
    %202 = vmatpush1.msra.mxu0 %v126
    %203 = vmatprep.subr.mxu0 %v131
    %204 = vmatpush1.msra.mxu0 %v130
    %205 = vmatprep.subr.mxu0 %v135
    %206 = vmatpush1.msra.mxu0 %v134
    %207 = vmatprep.subr.mxu0 %v139
    %208 = vmatpush1.msra.mxu0 %v138
    %209 = vmatprep.subr.mxu0 %v143
    %210 = vmatpush1.msra.mxu0 %v142
    %211 = vmatprep.subr.mxu0 %v147
    %212 = vmatpush1.msra.mxu0 %v146
    %213 = vmatprep.subr.mxu0 0.0
    %214 = vmatpush1.msra.mxu0 0.0
    %215 = vmatprep.subr.mxu0 0.0
    %216 = vmatpush1.msra.mxu0 0.0
    %217 = vmatprep.subr.mxu0 0.0
    %218 = vmatpush1.msra.mxu0 0.0
    %219 = vmatprep.subr.mxu0 0.0
    %220 = vmatpush1.msra.mxu0 0.0
    %221 = vmatprep.subr.mxu0 0.0
    %222 = vmatpush1.msra.mxu0 0.0
    %223 = vmatprep.subr.mxu0 0.0
    %224 = vmatpush1.msra.mxu0 0.0
    %225 = vmatprep.subr.mxu0 0.0
    %226 = vmatpush1.msra.mxu0 0.0
    %227 = vmatprep.subr.mxu0 0.0
    %228 = vmatpush1.msra.mxu0 0.0
    %229 = vmatprep.subr.mxu0 0.0
    %230 = vmatpush1.msra.mxu0 0.0
    %231 = vmatprep.subr.mxu0 0.0
    %232 = vmatpush1.msra.mxu0 0.0
    %233 = vmatprep.subr.mxu0 0.0
    %234 = vmatpush1.msra.mxu0 0.0
    %235 = vmatprep.subr.mxu0 0.0
    %236 = vmatpush1.msra.mxu0 0.0
    %237 = vmatprep.subr.mxu0 0.0
    %238 = vmatpush1.msra.mxu0 0.0
    %239 = vmatprep.subr.mxu0 0.0
    %240 = vmatpush1.msra.mxu0 0.0
    %241 = vmatprep.subr.mxu0 0.0
    %242 = vmatpush1.msra.mxu0 0.0
    %243 = vmatprep.subr.mxu0 0.0
    %244 = vmatpush1.msra.mxu0 0.0
    %245 = vmatprep.subr.mxu0 0.0
    %246 = vmatpush1.msra.mxu0 0.0
    %247 = vmatprep.subr.mxu0 0.0
    %248 = vmatpush1.msra.mxu0 0.0
    %249 = vmatprep.subr.mxu0 0.0
    %250 = vmatpush1.msra.mxu0 0.0
    %251 = vmatprep.subr.mxu0 0.0
    %252 = vmatpush1.msra.mxu0 0.0
    %253 = vmatprep.subr.mxu0 0.0
    %254 = vmatpush1.msra.mxu0 0.0
    %255 = vmatprep.subr.mxu0 0.0
    %256 = vmatpush1.msra.mxu0 0.0
    %257 = vmatprep.subr.mxu0 0.0
    %258 = vmatpush1.msra.mxu0 0.0
    %259 = vmatprep.subr.mxu0 0.0
    %260 = vmatpush1.msra.mxu0 0.0
    %261 = vmatprep.mubr.f32.mxu0 0.0
    %262 = vmatmul.mubr.f32.gmra.mrb[0].mxu0 %v174
    %v263 = vpop.f32.mrb[0].mxu0
    %v264 = vadd.f32 %v155, %v263
    %v265 = vpop.f32.mrb[0].mxu0
    %v266 = vadd.f32 %v159, %v265
    %267 = vmatprep.mubr.f32.mxu0 0.0
    %268 = vmatmul.mubr.f32.gmra.mrb[0].mxu0 %v177
    %v269 = vpop.f32.mrb[0].mxu0
    %v270 = vadd.f32 %v155, %v269
    %v271 = vpop.f32.mrb[0].mxu0
    %v272 = vadd.f32 %v159, %v271
    %273 = vmatprep.mubr.f32.mxu0 0.0
    %274 = vmatmul.mubr.f32.gmra.mrb[0].mxu0 %v180
    %v275 = vpop.f32.mrb[0].mxu0
    %v276 = vadd.f32 %v155, %v275
    %v277 = vpop.f32.mrb[0].mxu0
    %v278 = vadd.f32 %v159, %v277
    %279 = vmatprep.mubr.f32.mxu0 0.0
    %280 = vmatmul.mubr.f32.gmra.mrb[0].mxu0 %v183
    %v281 = vpop.f32.mrb[0].mxu0
    %v282 = vadd.f32 %v155, %v281
    %v283 = vpop.f32.mrb[0].mxu0
    %v284 = vadd.f32 %v159, %v283
    %285 = vmatprep.mubr.f32.mxu0 0.0
    %286 = vmatmul.mubr.f32.gmra.mrb[0].mxu0 %v186
    %v287 = vpop.f32.mrb[0].mxu0
    %v288 = vadd.f32 %v155, %v287
    %v289 = vpop.f32.mrb[0].mxu0
    %v290 = vadd.f32 %v159, %v289
    %291 = vmatprep.mubr.f32.mxu0 0.0
    %292 = vmatmul.mubr.f32.gmra.mrb[0].mxu0 %v189
    %v293 = vpop.f32.mrb[0].mxu0
    %v294 = vadd.f32 %v155, %v293
    %v295 = vpop.f32.mrb[0].mxu0
    %v296 = vadd.f32 %v159, %v295
    %297 = vmatprep.mubr.f32.mxu0 0.0
    %298 = vmatmul.mubr.f32.gmra.mrb[0].mxu0 %v192
    %v299 = vpop.f32.mrb[0].mxu0
    %v300 = vadd.f32 %v155, %v299
    %v301 = vpop.f32.mrb[0].mxu0
    %v302 = vadd.f32 %v159, %v301
    %303 = vmatprep.mubr.f32.mxu0 0.0
    %304 = vmatmul.mubr.f32.gmra.mrb[0].mxu0 %v195
    %v305 = vpop.f32.mrb[0].mxu0
    %v306 = vadd.f32 %v155, %v305
    %v307 = vpop.f32.mrb[0].mxu0
    %v308 = vadd.f32 %v159, %v307
    %309 = vdwg.mxu0
    %310 = vmatprep.subr.mxu0 %v121
    %311 = vmatpush1.msra.mxu0 %v120
    %312 = vmatprep.subr.mxu0 %v125
    %313 = vmatpush1.msra.mxu0 %v124
    %314 = vmatprep.subr.mxu0 %v129
    %315 = vmatpush1.msra.mxu0 %v128
    %316 = vmatprep.subr.mxu0 %v133
    %317 = vmatpush1.msra.mxu0 %v132
    %318 = vmatprep.subr.mxu0 %v137
    %319 = vmatpush1.msra.mxu0 %v136
    %320 = vmatprep.subr.mxu0 %v141
    %321 = vmatpush1.msra.mxu0 %v140
    %322 = vmatprep.subr.mxu0 %v145
    %323 = vmatpush1.msra.mxu0 %v144
    %324 = vmatprep.subr.mxu0 %v149
    %325 = vmatpush1.msra.mxu0 %v148
    %326 = vmatprep.subr.mxu0 0.0
    %327 = vmatpush1.msra.mxu0 0.0
    %328 = vmatprep.subr.mxu0 0.0
    %329 = vmatpush1.msra.mxu0 0.0
    %330 = vmatprep.subr.mxu0 0.0
    %331 = vmatpush1.msra.mxu0 0.0
    %332 = vmatprep.subr.mxu0 0.0
    %333 = vmatpush1.msra.mxu0 0.0
    %334 = vmatprep.subr.mxu0 0.0
    %335 = vmatpush1.msra.mxu0 0.0
    %336 = vmatprep.subr.mxu0 0.0
    %337 = vmatpush1.msra.mxu0 0.0
    %338 = vmatprep.subr.mxu0 0.0
    %339 = vmatpush1.msra.mxu0 0.0
    %340 = vmatprep.subr.mxu0 0.0
    %341 = vmatpush1.msra.mxu0 0.0
    %342 = vmatprep.subr.mxu0 0.0
    %343 = vmatpush1.msra.mxu0 0.0
    %344 = vmatprep.subr.mxu0 0.0
    %345 = vmatpush1.msra.mxu0 0.0
    %346 = vmatprep.subr.mxu0 0.0
    %347 = vmatpush1.msra.mxu0 0.0
    %348 = vmatprep.subr.mxu0 0.0
    %349 = vmatpush1.msra.mxu0 0.0
    %350 = vmatprep.subr.mxu0 0.0
    %351 = vmatpush1.msra.mxu0 0.0
    %352 = vmatprep.subr.mxu0 0.0
    %353 = vmatpush1.msra.mxu0 0.0
    %354 = vmatprep.subr.mxu0 0.0
    %355 = vmatpush1.msra.mxu0 0.0
    %356 = vmatprep.subr.mxu0 0.0
    %357 = vmatpush1.msra.mxu0 0.0
    %358 = vmatprep.subr.mxu0 0.0
    %359 = vmatpush1.msra.mxu0 0.0
    %360 = vmatprep.subr.mxu0 0.0
    %361 = vmatpush1.msra.mxu0 0.0
    %362 = vmatprep.subr.mxu0 0.0
    %363 = vmatpush1.msra.mxu0 0.0
    %364 = vmatprep.subr.mxu0 0.0
    %365 = vmatpush1.msra.mxu0 0.0
    %366 = vmatprep.subr.mxu0 0.0
    %367 = vmatpush1.msra.mxu0 0.0
    %368 = vmatprep.subr.mxu0 0.0
    %369 = vmatpush1.msra.mxu0 0.0
    %370 = vmatprep.subr.mxu0 0.0
    %371 = vmatpush1.msra.mxu0 0.0
    %372 = vmatprep.subr.mxu0 0.0
    %373 = vmatpush1.msra.mxu0 0.0
    %374 = vmatprep.mubr.f32.mxu0 0.0
    %375 = vmatmul.mubr.f32.gmra.mrb[0].mxu0 %v174
    %v376 = vpop.f32.mrb[0].mxu0
    %v377 = vadd.f32 %v163, %v376
    %v378 = vpop.f32.mrb[0].mxu0
    %v379 = vadd.f32 %v167, %v378
    %380 = vmatprep.mubr.f32.mxu0 0.0
    %381 = vmatmul.mubr.f32.gmra.mrb[0].mxu0 %v177
    %v382 = vpop.f32.mrb[0].mxu0
    %v383 = vadd.f32 %v163, %v382
    %v384 = vpop.f32.mrb[0].mxu0
    %v385 = vadd.f32 %v167, %v384
    %386 = vmatprep.mubr.f32.mxu0 0.0
    %387 = vmatmul.mubr.f32.gmra.mrb[0].mxu0 %v180
    %v388 = vpop.f32.mrb[0].mxu0
    %v389 = vadd.f32 %v163, %v388
    %v390 = vpop.f32.mrb[0].mxu0
    %v391 = vadd.f32 %v167, %v390
    %392 = vmatprep.mubr.f32.mxu0 0.0
    %393 = vmatmul.mubr.f32.gmra.mrb[0].mxu0 %v183
    %v394 = vpop.f32.mrb[0].mxu0
    %v395 = vadd.f32 %v163, %v394
    %v396 = vpop.f32.mrb[0].mxu0
    %v397 = vadd.f32 %v167, %v396
    %398 = vmatprep.mubr.f32.mxu0 0.0
    %399 = vmatmul.mubr.f32.gmra.mrb[0].mxu0 %v186
    %v400 = vpop.f32.mrb[0].mxu0
    %v401 = vadd.f32 %v163, %v400
    %v402 = vpop.f32.mrb[0].mxu0
    %v403 = vadd.f32 %v167, %v402
    %404 = vmatprep.mubr.f32.mxu0 0.0
    %405 = vmatmul.mubr.f32.gmra.mrb[0].mxu0 %v189
    %v406 = vpop.f32.mrb[0].mxu0
    %v407 = vadd.f32 %v163, %v406
    %v408 = vpop.f32.mrb[0].mxu0
    %v409 = vadd.f32 %v167, %v408
    %410 = vmatprep.mubr.f32.mxu0 0.0
    %411 = vmatmul.mubr.f32.gmra.mrb[0].mxu0 %v192
    %v412 = vpop.f32.mrb[0].mxu0
    %v413 = vadd.f32 %v163, %v412
    %v414 = vpop.f32.mrb[0].mxu0
    %v415 = vadd.f32 %v167, %v414
    %416 = vmatprep.mubr.f32.mxu0 0.0
    %417 = vmatmul.mubr.f32.gmra.mrb[0].mxu0 %v195
    %v418 = vpop.f32.mrb[0].mxu0
    %v419 = vadd.f32 %v163, %v418
    %v420 = vpop.f32.mrb[0].mxu0
    %v421 = vadd.f32 %v167, %v420
    %422 = vdwg.mxu0
    %v423 = vld [vmem:[#allocation5] sm:$0xff]
    %v424 = vld [vmem:[#allocation5 + $0x8] sm:$0xff]
    %v425 = vld [vmem:[#allocation5 + $0x10] sm:$0xff]
    %v426 = vld [vmem:[#allocation5 + $0x18] sm:$0xff]
    %v427 = vld [vmem:[#allocation5 + $0x20] sm:$0xff]
    %v428 = vld [vmem:[#allocation5 + $0x28] sm:$0xff]
    %v429 = vld [vmem:[#allocation5 + $0x30] sm:$0xff]
    %v430 = vld [vmem:[#allocation5 + $0x38] sm:$0xff]
    %v431 = vld [vmem:[#allocation5 + $0x40] sm:$0xff]
    %v432 = vld [vmem:[#allocation5 + $0x48] sm:$0xff]
    %v433 = vld [vmem:[#allocation5 + $0x50] sm:$0xff]
    %v434 = vld [vmem:[#allocation5 + $0x58] sm:$0xff]
    %v435 = vld [vmem:[#allocation5 + $0x60] sm:$0xff]
    %v436 = vld [vmem:[#allocation5 + $0x68] sm:$0xff]
    %v437 = vld [vmem:[#allocation5 + $0x70] sm:$0xff]
    %v438 = vld [vmem:[#allocation5 + $0x78] sm:$0xff]
    %v439 = vld [vmem:[#allocation5 + $0x80] sm:$0xff]
    %v440 = vld [vmem:[#allocation5 + $0x88] sm:$0xff]
    %v441 = vld [vmem:[#allocation5 + $0x90] sm:$0xff]
    %v442 = vld [vmem:[#allocation5 + $0x98] sm:$0xff]
    %v443 = vld [vmem:[#allocation5 + $0xa0] sm:$0xff]
    %v444 = vld [vmem:[#allocation5 + $0xa8] sm:$0xff]
    %v445 = vld [vmem:[#allocation5 + $0xb0] sm:$0xff]
    %v446 = vld [vmem:[#allocation5 + $0xb8] sm:$0xff]
    %v447 = vld [vmem:[#allocation5 + $0xc0] sm:$0xff]
    %v448 = vld [vmem:[#allocation5 + $0xc8] sm:$0xff]
    %v449 = vld [vmem:[#allocation5 + $0xd0] sm:$0xff]
    %v450 = vld [vmem:[#allocation5 + $0xd8] sm:$0xff]
    %v451 = vld [vmem:[#allocation5 + $0xe0] sm:$0xff]
    %v452 = vld [vmem:[#allocation5 + $0xe8] sm:$0xff]
    %v453 = vld [vmem:[#allocation5 + $0xf0] sm:$0xff]
    %v454 = vld [vmem:[#allocation5 + $0xf8] sm:$0xff]
    %v455 = vld [vmem:[#allocation5 + $0x100] sm:$0xff]
    %v456 = vld [vmem:[#allocation5 + $0x108] sm:$0xff]
    %v457 = vld [vmem:[#allocation5 + $0x110] sm:$0xff]
    %v458 = vld [vmem:[#allocation5 + $0x118] sm:$0xff]
    %v459 = vld [vmem:[#allocation5 + $0x120] sm:$0xff]
    %v460 = vld [vmem:[#allocation5 + $0x128] sm:$0xff]
    %v461 = vld [vmem:[#allocation5 + $0x130] sm:$0xff]
    %v462 = vld [vmem:[#allocation5 + $0x138] sm:$0xff]
    %v463 = vld [vmem:[#allocation5 + $0x140] sm:$0xff]
    %v464 = vld [vmem:[#allocation5 + $0x148] sm:$0xff]
    %v465 = vld [vmem:[#allocation5 + $0x150] sm:$0xff]
    %v466 = vld [vmem:[#allocation5 + $0x158] sm:$0xff]
    %v467 = vld [vmem:[#allocation5 + $0x160] sm:$0xff]
    %v468 = vld [vmem:[#allocation5 + $0x168] sm:$0xff]
    %v469 = vld [vmem:[#allocation5 + $0x170] sm:$0xff]
    %v470 = vld [vmem:[#allocation5 + $0x178] sm:$0xff]
    %v471 = vld [vmem:[#allocation5 + $0x180] sm:$0xff]
    %v472 = vld [vmem:[#allocation5 + $0x188] sm:$0xff]
    %v473 = vld [vmem:[#allocation5 + $0x190] sm:$0xff]
    %v474 = vld [vmem:[#allocation5 + $0x198] sm:$0xff]
    %v475 = vld [vmem:[#allocation5 + $0x1a0] sm:$0xff]
    %v476 = vld [vmem:[#allocation5 + $0x1a8] sm:$0xff]
    %v477 = vld [vmem:[#allocation5 + $0x1b0] sm:$0xff]
    %v478 = vld [vmem:[#allocation5 + $0x1b8] sm:$0xff]
    %v479 = vld [vmem:[#allocation5 + $0x1c0] sm:$0xff]
    %v480 = vld [vmem:[#allocation5 + $0x1c8] sm:$0xff]
    %v481 = vld [vmem:[#allocation5 + $0x1d0] sm:$0xff]
    %v482 = vld [vmem:[#allocation5 + $0x1d8] sm:$0xff]
    %v483 = vld [vmem:[#allocation5 + $0x1e0] sm:$0xff]
    %v484 = vld [vmem:[#allocation5 + $0x1e8] sm:$0xff]
    %v485 = vld [vmem:[#allocation5 + $0x1f0] sm:$0xff]
    %v486 = vld [vmem:[#allocation5 + $0x1f8] sm:$0xff]
    %487 = vmatprep.subr.mxu0 %v424
    %488 = vmatpush1.msra.mxu0 %v423
    %489 = vmatprep.subr.mxu0 %v428
    %490 = vmatpush1.msra.mxu0 %v427
    %491 = vmatprep.subr.mxu0 %v432
    %492 = vmatpush1.msra.mxu0 %v431
    %493 = vmatprep.subr.mxu0 %v436
    %494 = vmatpush1.msra.mxu0 %v435
    %495 = vmatprep.subr.mxu0 %v440
    %496 = vmatpush1.msra.mxu0 %v439
    %497 = vmatprep.subr.mxu0 %v444
    %498 = vmatpush1.msra.mxu0 %v443
    %499 = vmatprep.subr.mxu0 %v448
    %500 = vmatpush1.msra.mxu0 %v447
    %501 = vmatprep.subr.mxu0 %v452
    %502 = vmatpush1.msra.mxu0 %v451
    %503 = vmatprep.subr.mxu0 %v456
    %504 = vmatpush1.msra.mxu0 %v455
    %505 = vmatprep.subr.mxu0 %v460
    %506 = vmatpush1.msra.mxu0 %v459
    %507 = vmatprep.subr.mxu0 %v464
    %508 = vmatpush1.msra.mxu0 %v463
    %509 = vmatprep.subr.mxu0 %v468
    %510 = vmatpush1.msra.mxu0 %v467
    %511 = vmatprep.subr.mxu0 %v472
    %512 = vmatpush1.msra.mxu0 %v471
    %513 = vmatprep.subr.mxu0 %v476
    %514 = vmatpush1.msra.mxu0 %v475
    %515 = vmatprep.subr.mxu0 %v480
    %516 = vmatpush1.msra.mxu0 %v479
    %517 = vmatprep.subr.mxu0 %v484
    %518 = vmatpush1.msra.mxu0 %v483
    %519 = vmatprep.subr.mxu0 0.0
    %520 = vmatpush1.msra.mxu0 0.0
    %521 = vmatprep.subr.mxu0 0.0
    %522 = vmatpush1.msra.mxu0 0.0
    %523 = vmatprep.subr.mxu0 0.0
    %524 = vmatpush1.msra.mxu0 0.0
    %525 = vmatprep.subr.mxu0 0.0
    %526 = vmatpush1.msra.mxu0 0.0
    %527 = vmatprep.subr.mxu0 0.0
    %528 = vmatpush1.msra.mxu0 0.0
    %529 = vmatprep.subr.mxu0 0.0
    %530 = vmatpush1.msra.mxu0 0.0
    %531 = vmatprep.subr.mxu0 0.0
    %532 = vmatpush1.msra.mxu0 0.0
    %533 = vmatprep.subr.mxu0 0.0
    %534 = vmatpush1.msra.mxu0 0.0
    %535 = vmatprep.subr.mxu0 0.0
    %536 = vmatpush1.msra.mxu0 0.0
    %537 = vmatprep.subr.mxu0 0.0
    %538 = vmatpush1.msra.mxu0 0.0
    %539 = vmatprep.subr.mxu0 0.0
    %540 = vmatpush1.msra.mxu0 0.0
    %541 = vmatprep.subr.mxu0 0.0
    %542 = vmatpush1.msra.mxu0 0.0
    %543 = vmatprep.subr.mxu0 0.0
    %544 = vmatpush1.msra.mxu0 0.0
    %545 = vmatprep.subr.mxu0 0.0
    %546 = vmatpush1.msra.mxu0 0.0
    %547 = vmatprep.subr.mxu0 0.0
    %548 = vmatpush1.msra.mxu0 0.0
    %549 = vmatprep.subr.mxu0 0.0
    %550 = vmatpush1.msra.mxu0 0.0
    %551 = vmatprep.mubr.f32.mxu0 0.0
    %552 = vmatmul.mubr.f32.gmra.mrb[0].mxu0 0.0
    %v553 = vpop.f32.mrb[0].mxu0
    %v554 = vadd.f32 0.0, %v553
    %v555 = vpop.f32.mrb[0].mxu0
    %v556 = vadd.f32 0.0, %v555
    %557 = vdwg.mxu0
    %558 = vmatprep.subr.mxu0 %v426
    %559 = vmatpush1.msra.mxu0 %v425
    %560 = vmatprep.subr.mxu0 %v430
    %561 = vmatpush1.msra.mxu0 %v429
    %562 = vmatprep.subr.mxu0 %v434
    %563 = vmatpush1.msra.mxu0 %v433
    %564 = vmatprep.subr.mxu0 %v438
    %565 = vmatpush1.msra.mxu0 %v437
    %566 = vmatprep.subr.mxu0 %v442
    %567 = vmatpush1.msra.mxu0 %v441
    %568 = vmatprep.subr.mxu0 %v446
    %569 = vmatpush1.msra.mxu0 %v445
    %570 = vmatprep.subr.mxu0 %v450
    %571 = vmatpush1.msra.mxu0 %v449
    %572 = vmatprep.subr.mxu0 %v454
    %573 = vmatpush1.msra.mxu0 %v453
    %574 = vmatprep.subr.mxu0 %v458
    %575 = vmatpush1.msra.mxu0 %v457
    %576 = vmatprep.subr.mxu0 %v462
    %577 = vmatpush1.msra.mxu0 %v461
    %578 = vmatprep.subr.mxu0 %v466
    %579 = vmatpush1.msra.mxu0 %v465
    %580 = vmatprep.subr.mxu0 %v470
    %581 = vmatpush1.msra.mxu0 %v469
    %582 = vmatprep.subr.mxu0 %v474
    %583 = vmatpush1.msra.mxu0 %v473
    %584 = vmatprep.subr.mxu0 %v478
    %585 = vmatpush1.msra.mxu0 %v477
    %586 = vmatprep.subr.mxu0 %v482
    %587 = vmatpush1.msra.mxu0 %v481
    %588 = vmatprep.subr.mxu0 %v486
    %589 = vmatpush1.msra.mxu0 %v485
    %590 = vmatprep.subr.mxu0 0.0
    %591 = vmatpush1.msra.mxu0 0.0
    %592 = vmatprep.subr.mxu0 0.0
    %593 = vmatpush1.msra.mxu0 0.0
    %594 = vmatprep.subr.mxu0 0.0
    %595 = vmatpush1.msra.mxu0 0.0
    %596 = vmatprep.subr.mxu0 0.0
    %597 = vmatpush1.msra.mxu0 0.0
    %598 = vmatprep.subr.mxu0 0.0
    %599 = vmatpush1.msra.mxu0 0.0
    %600 = vmatprep.subr.mxu0 0.0
    %601 = vmatpush1.msra.mxu0 0.0
    %602 = vmatprep.subr.mxu0 0.0
    %603 = vmatpush1.msra.mxu0 0.0
    %604 = vmatprep.subr.mxu0 0.0
    %605 = vmatpush1.msra.mxu0 0.0
    %606 = vmatprep.subr.mxu0 0.0
    %607 = vmatpush1.msra.mxu0 0.0
    %608 = vmatprep.subr.mxu0 0.0
    %609 = vmatpush1.msra.mxu0 0.0
    %610 = vmatprep.subr.mxu0 0.0
    %611 = vmatpush1.msra.mxu0 0.0
    %612 = vmatprep.subr.mxu0 0.0
    %613 = vmatpush1.msra.mxu0 0.0
    %614 = vmatprep.subr.mxu0 0.0
    %615 = vmatpush1.msra.mxu0 0.0
    %616 = vmatprep.subr.mxu0 0.0
    %617 = vmatpush1.msra.mxu0 0.0
    %618 = vmatprep.subr.mxu0 0.0
    %619 = vmatpush1.msra.mxu0 0.0
    %620 = vmatprep.subr.mxu0 0.0
    %621 = vmatpush1.msra.mxu0 0.0
    %622 = vmatprep.mubr.f32.mxu0 0.0
    %623 = vmatmul.mubr.f32.gmra.mrb[0].mxu0 0.0
    %v624 = vpop.f32.mrb[0].mxu0
    %v625 = vadd.f32 0.0, %v624
    %v626 = vpop.f32.mrb[0].mxu0
    %v627 = vadd.f32 0.0, %v626
    %628 = vdwg.mxu0
    %v629 = vadd.f32 %v264, %v554
    %v630 = vadd.f32 %v266, %v556
    %v631 = vadd.f32 %v377, %v625
    %v632 = vadd.f32 %v379, %v627
    %v633 = vxor.u32 %v629, 2147483648
    %v634 = vmul.f32 %v633, 1.442695
    %v635 = vpow.pop %v634
    %v636 = vadd.f32 %v635, 1.0
    %v637 = vrcp.pop %v636
    %v638 = vmul.f32 1.0, %v637
    %v639 = vxor.u32 %v630, 2147483648
    %v640 = vmul.f32 %v639, 1.442695
    %v641 = vpow.pop %v640
    %v642 = vadd.f32 %v641, 1.0
    %v643 = vrcp.pop %v642
    %v644 = vmul.f32 1.0, %v643
    %v645 = vtanh.pop %v631
    %v646 = vxor.u32 %v632, 2147483648
    %v647 = vmul.f32 %v646, 1.442695
    %v648 = vpow.pop %v647
    %v649 = vadd.f32 %v648, 1.0
    %v650 = vrcp.pop %v649
    %v651 = vmul.f32 1.0, %v650
    %v652 = vmul.f32 %v644, 0.0
    %v653 = vmul.f32 %v638, %v645
    %v654 = vadd.f32 %v652, %v653
    %v655 = vtanh.pop %v654
    %v656 = vmul.f32 %v651, %v655
    %657 = vst [vmem:[#allocation2] sm:$0xff] %v656
    %658 = vmatprep.subr.mxu0 %v424
    %659 = vmatpush1.msra.mxu0 %v423
    %660 = vmatprep.subr.mxu0 %v428
    %661 = vmatpush1.msra.mxu0 %v427
    %662 = vmatprep.subr.mxu0 %v432
    %663 = vmatpush1.msra.mxu0 %v431
    %664 = vmatprep.subr.mxu0 %v436
    %665 = vmatpush1.msra.mxu0 %v435
    %666 = vmatprep.subr.mxu0 %v440
    %667 = vmatpush1.msra.mxu0 %v439
    %668 = vmatprep.subr.mxu0 %v444
    %669 = vmatpush1.msra.mxu0 %v443
    %670 = vmatprep.subr.mxu0 %v448
    %671 = vmatpush1.msra.mxu0 %v447
    %672 = vmatprep.subr.mxu0 %v452
    %673 = vmatpush1.msra.mxu0 %v451
    %674 = vmatprep.subr.mxu0 %v456
    %675 = vmatpush1.msra.mxu0 %v455
    %676 = vmatprep.subr.mxu0 %v460
    %677 = vmatpush1.msra.mxu0 %v459
    %678 = vmatprep.subr.mxu0 %v464
    %679 = vmatpush1.msra.mxu0 %v463
    %680 = vmatprep.subr.mxu0 %v468
    %681 = vmatpush1.msra.mxu0 %v467
    %682 = vmatprep.subr.mxu0 %v472
    %683 = vmatpush1.msra.mxu0 %v471
    %684 = vmatprep.subr.mxu0 %v476
    %685 = vmatpush1.msra.mxu0 %v475
    %686 = vmatprep.subr.mxu0 %v480
    %687 = vmatpush1.msra.mxu0 %v479
    %688 = vmatprep.subr.mxu0 %v484
    %689 = vmatpush1.msra.mxu0 %v483
    %690 = vmatprep.subr.mxu0 0.0
    %691 = vmatpush1.msra.mxu0 0.0
    %692 = vmatprep.subr.mxu0 0.0
    %693 = vmatpush1.msra.mxu0 0.0
    %694 = vmatprep.subr.mxu0 0.0
    %695 = vmatpush1.msra.mxu0 0.0
    %696 = vmatprep.subr.mxu0 0.0
    %697 = vmatpush1.msra.mxu0 0.0
    %698 = vmatprep.subr.mxu0 0.0
    %699 = vmatpush1.msra.mxu0 0.0
    %700 = vmatprep.subr.mxu0 0.0
    %701 = vmatpush1.msra.mxu0 0.0
    %702 = vmatprep.subr.mxu0 0.0
    %703 = vmatpush1.msra.mxu0 0.0
    %704 = vmatprep.subr.mxu0 0.0
    %705 = vmatpush1.msra.mxu0 0.0
    %706 = vmatprep.subr.mxu0 0.0
    %707 = vmatpush1.msra.mxu0 0.0
    %708 = vmatprep.subr.mxu0 0.0
    %709 = vmatpush1.msra.mxu0 0.0
    %710 = vmatprep.subr.mxu0 0.0
    %711 = vmatpush1.msra.mxu0 0.0
    %712 = vmatprep.subr.mxu0 0.0
    %713 = vmatpush1.msra.mxu0 0.0
    %714 = vmatprep.subr.mxu0 0.0
    %715 = vmatpush1.msra.mxu0 0.0
    %716 = vmatprep.subr.mxu0 0.0
    %717 = vmatpush1.msra.mxu0 0.0
    %718 = vmatprep.subr.mxu0 0.0
    %719 = vmatpush1.msra.mxu0 0.0
    %720 = vmatprep.subr.mxu0 0.0
    %721 = vmatpush1.msra.mxu0 0.0
    %722 = vmatprep.mubr.f32.mxu0 0.0
    %723 = vmatmul.mubr.f32.gmra.mrb[0].mxu0 %v656
    %v724 = vpop.f32.mrb[0].mxu0
    %v725 = vadd.f32 0.0, %v724
    %v726 = vpop.f32.mrb[0].mxu0
    %v727 = vadd.f32 0.0, %v726
    %728 = vdwg.mxu0
    %729 = vmatprep.subr.mxu0 %v426
    %730 = vmatpush1.msra.mxu0 %v425
    %731 = vmatprep.subr.mxu0 %v430
    %732 = vmatpush1.msra.mxu0 %v429
    %733 = vmatprep.subr.mxu0 %v434
    %734 = vmatpush1.msra.mxu0 %v433
    %735 = vmatprep.subr.mxu0 %v438
    %736 = vmatpush1.msra.mxu0 %v437
    %737 = vmatprep.subr.mxu0 %v442
    %738 = vmatpush1.msra.mxu0 %v441
    %739 = vmatprep.subr.mxu0 %v446
    %740 = vmatpush1.msra.mxu0 %v445
    %741 = vmatprep.subr.mxu0 %v450
    %742 = vmatpush1.msra.mxu0 %v449
    %743 = vmatprep.subr.mxu0 %v454
    %744 = vmatpush1.msra.mxu0 %v453
    %745 = vmatprep.subr.mxu0 %v458
    %746 = vmatpush1.msra.mxu0 %v457
    %747 = vmatprep.subr.mxu0 %v462
    %748 = vmatpush1.msra.mxu0 %v461
    %749 = vmatprep.subr.mxu0 %v466
    %750 = vmatpush1.msra.mxu0 %v465
    %751 = vmatprep.subr.mxu0 %v470
    %752 = vmatpush1.msra.mxu0 %v469
    %753 = vmatprep.subr.mxu0 %v474
    %754 = vmatpush1.msra.mxu0 %v473
    %755 = vmatprep.subr.mxu0 %v478
    %756 = vmatpush1.msra.mxu0 %v477
    %757 = vmatprep.subr.mxu0 %v482
    %758 = vmatpush1.msra.mxu0 %v481
    %759 = vmatprep.subr.mxu0 %v486
    %760 = vmatpush1.msra.mxu0 %v485
    %761 = vmatprep.subr.mxu0 0.0
    %762 = vmatpush1.msra.mxu0 0.0
    %763 = vmatprep.subr.mxu0 0.0
    %764 = vmatpush1.msra.mxu0 0.0
    %765 = vmatprep.subr.mxu0 0.0
    %766 = vmatpush1.msra.mxu0 0.0
    %767 = vmatprep.subr.mxu0 0.0
    %768 = vmatpush1.msra.mxu0 0.0
    %769 = vmatprep.subr.mxu0 0.0
    %770 = vmatpush1.msra.mxu0 0.0
    %771 = vmatprep.subr.mxu0 0.0
    %772 = vmatpush1.msra.mxu0 0.0
    %773 = vmatprep.subr.mxu0 0.0
    %774 = vmatpush1.msra.mxu0 0.0
    %775 = vmatprep.subr.mxu0 0.0
    %776 = vmatpush1.msra.mxu0 0.0
    %777 = vmatprep.subr.mxu0 0.0
    %778 = vmatpush1.msra.mxu0 0.0
    %779 = vmatprep.subr.mxu0 0.0
    %780 = vmatpush1.msra.mxu0 0.0
    %781 = vmatprep.subr.mxu0 0.0
    %782 = vmatpush1.msra.mxu0 0.0
    %783 = vmatprep.subr.mxu0 0.0
    %784 = vmatpush1.msra.mxu0 0.0
    %785 = vmatprep.subr.mxu0 0.0
    %786 = vmatpush1.msra.mxu0 0.0
    %787 = vmatprep.subr.mxu0 0.0
    %788 = vmatpush1.msra.mxu0 0.0
    %789 = vmatprep.subr.mxu0 0.0
    %790 = vmatpush1.msra.mxu0 0.0
    %791 = vmatprep.subr.mxu0 0.0
    %792 = vmatpush1.msra.mxu0 0.0
    %793 = vmatprep.mubr.f32.mxu0 0.0
    %794 = vmatmul.mubr.f32.gmra.mrb[0].mxu0 %v656
    %v795 = vpop.f32.mrb[0].mxu0
    %v796 = vadd.f32 0.0, %v795
    %v797 = vpop.f32.mrb[0].mxu0
    %v798 = vadd.f32 0.0, %v797
    %799 = vdwg.mxu0
    %v800 = vadd.f32 %v270, %v725
    %v801 = vadd.f32 %v272, %v727
    %v802 = vadd.f32 %v383, %v796
    %v803 = vadd.f32 %v385, %v798
    %v804 = vxor.u32 %v800, 2147483648
    %v805 = vmul.f32 %v804, 1.442695
    %v806 = vpow.pop %v805
    %v807 = vadd.f32 %v806, 1.0
    %v808 = vrcp.pop %v807
    %v809 = vmul.f32 1.0, %v808
    %v810 = vxor.u32 %v801, 2147483648
    %v811 = vmul.f32 %v810, 1.442695
    %v812 = vpow.pop %v811
    %v813 = vadd.f32 %v812, 1.0
    %v814 = vrcp.pop %v813
    %v815 = vmul.f32 1.0, %v814
    %v816 = vtanh.pop %v802
    %v817 = vxor.u32 %v803, 2147483648
    %v818 = vmul.f32 %v817, 1.442695
    %v819 = vpow.pop %v818
    %v820 = vadd.f32 %v819, 1.0
    %v821 = vrcp.pop %v820
    %v822 = vmul.f32 1.0, %v821
    %v823 = vmul.f32 %v815, %v654
    %v824 = vmul.f32 %v809, %v816
    %v825 = vadd.f32 %v823, %v824
    %v826 = vtanh.pop %v825
    %v827 = vmul.f32 %v822, %v826
    %828 = vst [vmem:[#allocation2 + $0x8] sm:$0xff] %v827
    %829 = vmatprep.subr.mxu0 %v424
    %830 = vmatpush1.msra.mxu0 %v423
    %831 = vmatprep.subr.mxu0 %v428
    %832 = vmatpush1.msra.mxu0 %v427
    %833 = vmatprep.subr.mxu0 %v432
    %834 = vmatpush1.msra.mxu0 %v431
    %835 = vmatprep.subr.mxu0 %v436
    %836 = vmatpush1.msra.mxu0 %v435
    %837 = vmatprep.subr.mxu0 %v440
    %838 = vmatpush1.msra.mxu0 %v439
    %839 = vmatprep.subr.mxu0 %v444
    %840 = vmatpush1.msra.mxu0 %v443
    %841 = vmatprep.subr.mxu0 %v448
    %842 = vmatpush1.msra.mxu0 %v447
    %843 = vmatprep.subr.mxu0 %v452
    %844 = vmatpush1.msra.mxu0 %v451
    %845 = vmatprep.subr.mxu0 %v456
    %846 = vmatpush1.msra.mxu0 %v455
    %847 = vmatprep.subr.mxu0 %v460
    %848 = vmatpush1.msra.mxu0 %v459
    %849 = vmatprep.subr.mxu0 %v464
    %850 = vmatpush1.msra.mxu0 %v463
    %851 = vmatprep.subr.mxu0 %v468
    %852 = vmatpush1.msra.mxu0 %v467
    %853 = vmatprep.subr.mxu0 %v472
    %854 = vmatpush1.msra.mxu0 %v471
    %855 = vmatprep.subr.mxu0 %v476
    %856 = vmatpush1.msra.mxu0 %v475
    %857 = vmatprep.subr.mxu0 %v480
    %858 = vmatpush1.msra.mxu0 %v479
    %859 = vmatprep.subr.mxu0 %v484
    %860 = vmatpush1.msra.mxu0 %v483
    %861 = vmatprep.subr.mxu0 0.0
    %862 = vmatpush1.msra.mxu0 0.0
    %863 = vmatprep.subr.mxu0 0.0
    %864 = vmatpush1.msra.mxu0 0.0
    %865 = vmatprep.subr.mxu0 0.0
    %866 = vmatpush1.msra.mxu0 0.0
    %867 = vmatprep.subr.mxu0 0.0
    %868 = vmatpush1.msra.mxu0 0.0
    %869 = vmatprep.subr.mxu0 0.0
    %870 = vmatpush1.msra.mxu0 0.0
    %871 = vmatprep.subr.mxu0 0.0
    %872 = vmatpush1.msra.mxu0 0.0
    %873 = vmatprep.subr.mxu0 0.0
    %874 = vmatpush1.msra.mxu0 0.0
    %875 = vmatprep.subr.mxu0 0.0
    %876 = vmatpush1.msra.mxu0 0.0
    %877 = vmatprep.subr.mxu0 0.0
    %878 = vmatpush1.msra.mxu0 0.0
    %879 = vmatprep.subr.mxu0 0.0
    %880 = vmatpush1.msra.mxu0 0.0
    %881 = vmatprep.subr.mxu0 0.0
    %882 = vmatpush1.msra.mxu0 0.0
    %883 = vmatprep.subr.mxu0 0.0
    %884 = vmatpush1.msra.mxu0 0.0
    %885 = vmatprep.subr.mxu0 0.0
    %886 = vmatpush1.msra.mxu0 0.0
    %887 = vmatprep.subr.mxu0 0.0
    %888 = vmatpush1.msra.mxu0 0.0
    %889 = vmatprep.subr.mxu0 0.0
    %890 = vmatpush1.msra.mxu0 0.0
    %891 = vmatprep.subr.mxu0 0.0
    %892 = vmatpush1.msra.mxu0 0.0
    %893 = vmatprep.mubr.f32.mxu0 0.0
    %894 = vmatmul.mubr.f32.gmra.mrb[0].mxu0 %v827
    %v895 = vpop.f32.mrb[0].mxu0
    %v896 = vadd.f32 0.0, %v895
    %v897 = vpop.f32.mrb[0].mxu0
    %v898 = vadd.f32 0.0, %v897
    %899 = vdwg.mxu0
    %900 = vmatprep.subr.mxu0 %v426
    %901 = vmatpush1.msra.mxu0 %v425
    %902 = vmatprep.subr.mxu0 %v430
    %903 = vmatpush1.msra.mxu0 %v429
    %904 = vmatprep.subr.mxu0 %v434
    %905 = vmatpush1.msra.mxu0 %v433
    %906 = vmatprep.subr.mxu0 %v438
    %907 = vmatpush1.msra.mxu0 %v437
    %908 = vmatprep.subr.mxu0 %v442
    %909 = vmatpush1.msra.mxu0 %v441
    %910 = vmatprep.subr.mxu0 %v446
    %911 = vmatpush1.msra.mxu0 %v445
    %912 = vmatprep.subr.mxu0 %v450
    %913 = vmatpush1.msra.mxu0 %v449
    %914 = vmatprep.subr.mxu0 %v454
    %915 = vmatpush1.msra.mxu0 %v453
    %916 = vmatprep.subr.mxu0 %v458
    %917 = vmatpush1.msra.mxu0 %v457
    %918 = vmatprep.subr.mxu0 %v462
    %919 = vmatpush1.msra.mxu0 %v461
    %920 = vmatprep.subr.mxu0 %v466
    %921 = vmatpush1.msra.mxu0 %v465
    %922 = vmatprep.subr.mxu0 %v470
    %923 = vmatpush1.msra.mxu0 %v469
    %924 = vmatprep.subr.mxu0 %v474
    %925 = vmatpush1.msra.mxu0 %v473
    %926 = vmatprep.subr.mxu0 %v478
    %927 = vmatpush1.msra.mxu0 %v477
    %928 = vmatprep.subr.mxu0 %v482
    %929 = vmatpush1.msra.mxu0 %v481
    %930 = vmatprep.subr.mxu0 %v486
    %931 = vmatpush1.msra.mxu0 %v485
    %932 = vmatprep.subr.mxu0 0.0
    %933 = vmatpush1.msra.mxu0 0.0
    %934 = vmatprep.subr.mxu0 0.0
    %935 = vmatpush1.msra.mxu0 0.0
    %936 = vmatprep.subr.mxu0 0.0
    %937 = vmatpush1.msra.mxu0 0.0
    %938 = vmatprep.subr.mxu0 0.0
    %939 = vmatpush1.msra.mxu0 0.0
    %940 = vmatprep.subr.mxu0 0.0
    %941 = vmatpush1.msra.mxu0 0.0
    %942 = vmatprep.subr.mxu0 0.0
    %943 = vmatpush1.msra.mxu0 0.0
    %944 = vmatprep.subr.mxu0 0.0
    %945 = vmatpush1.msra.mxu0 0.0
    %946 = vmatprep.subr.mxu0 0.0
    %947 = vmatpush1.msra.mxu0 0.0
    %948 = vmatprep.subr.mxu0 0.0
    %949 = vmatpush1.msra.mxu0 0.0
    %950 = vmatprep.subr.mxu0 0.0
    %951 = vmatpush1.msra.mxu0 0.0
    %952 = vmatprep.subr.mxu0 0.0
    %953 = vmatpush1.msra.mxu0 0.0
    %954 = vmatprep.subr.mxu0 0.0
    %955 = vmatpush1.msra.mxu0 0.0
    %956 = vmatprep.subr.mxu0 0.0
    %957 = vmatpush1.msra.mxu0 0.0
    %958 = vmatprep.subr.mxu0 0.0
    %959 = vmatpush1.msra.mxu0 0.0
    %960 = vmatprep.subr.mxu0 0.0
    %961 = vmatpush1.msra.mxu0 0.0
    %962 = vmatprep.subr.mxu0 0.0
    %963 = vmatpush1.msra.mxu0 0.0
    %964 = vmatprep.mubr.f32.mxu0 0.0
    %965 = vmatmul.mubr.f32.gmra.mrb[0].mxu0 %v827
    %v966 = vpop.f32.mrb[0].mxu0
    %v967 = vadd.f32 0.0, %v966
    %v968 = vpop.f32.mrb[0].mxu0
    %v969 = vadd.f32 0.0, %v968
    %970 = vdwg.mxu0
    %v971 = vadd.f32 %v276, %v896
    %v972 = vadd.f32 %v278, %v898
    %v973 = vadd.f32 %v389, %v967
    %v974 = vadd.f32 %v391, %v969
    %v975 = vxor.u32 %v971, 2147483648
    %v976 = vmul.f32 %v975, 1.442695
    %v977 = vpow.pop %v976
    %v978 = vadd.f32 %v977, 1.0
    %v979 = vrcp.pop %v978
    %v980 = vmul.f32 1.0, %v979
    %v981 = vxor.u32 %v972, 2147483648
    %v982 = vmul.f32 %v981, 1.442695
    %v983 = vpow.pop %v982
    %v984 = vadd.f32 %v983, 1.0
    %v985 = vrcp.pop %v984
    %v986 = vmul.f32 1.0, %v985
    %v987 = vtanh.pop %v973
    %v988 = vxor.u32 %v974, 2147483648
    %v989 = vmul.f32 %v988, 1.442695
    %v990 = vpow.pop %v989
    %v991 = vadd.f32 %v990, 1.0
    %v992 = vrcp.pop %v991
    %v993 = vmul.f32 1.0, %v992
    %v994 = vmul.f32 %v986, %v825
    %v995 = vmul.f32 %v980, %v987
    %v996 = vadd.f32 %v994, %v995
    %v997 = vtanh.pop %v996
    %v998 = vmul.f32 %v993, %v997
    %999 = vst [vmem:[#allocation2 + $0x10] sm:$0xff] %v998
    %1000 = vmatprep.subr.mxu0 %v424
    %1001 = vmatpush1.msra.mxu0 %v423
    %1002 = vmatprep.subr.mxu0 %v428
    %1003 = vmatpush1.msra.mxu0 %v427
    %1004 = vmatprep.subr.mxu0 %v432
    %1005 = vmatpush1.msra.mxu0 %v431
    %1006 = vmatprep.subr.mxu0 %v436
    %1007 = vmatpush1.msra.mxu0 %v435
    %1008 = vmatprep.subr.mxu0 %v440
    %1009 = vmatpush1.msra.mxu0 %v439
    %1010 = vmatprep.subr.mxu0 %v444
    %1011 = vmatpush1.msra.mxu0 %v443
    %1012 = vmatprep.subr.mxu0 %v448
    %1013 = vmatpush1.msra.mxu0 %v447
    %1014 = vmatprep.subr.mxu0 %v452
    %1015 = vmatpush1.msra.mxu0 %v451
    %1016 = vmatprep.subr.mxu0 %v456
    %1017 = vmatpush1.msra.mxu0 %v455
    %1018 = vmatprep.subr.mxu0 %v460
    %1019 = vmatpush1.msra.mxu0 %v459
    %1020 = vmatprep.subr.mxu0 %v464
    %1021 = vmatpush1.msra.mxu0 %v463
    %1022 = vmatprep.subr.mxu0 %v468
    %1023 = vmatpush1.msra.mxu0 %v467
    %1024 = vmatprep.subr.mxu0 %v472
    %1025 = vmatpush1.msra.mxu0 %v471
    %1026 = vmatprep.subr.mxu0 %v476
    %1027 = vmatpush1.msra.mxu0 %v475
    %1028 = vmatprep.subr.mxu0 %v480
    %1029 = vmatpush1.msra.mxu0 %v479
    %1030 = vmatprep.subr.mxu0 %v484
    %1031 = vmatpush1.msra.mxu0 %v483
    %1032 = vmatprep.subr.mxu0 0.0
    %1033 = vmatpush1.msra.mxu0 0.0
    %1034 = vmatprep.subr.mxu0 0.0
    %1035 = vmatpush1.msra.mxu0 0.0
    %1036 = vmatprep.subr.mxu0 0.0
    %1037 = vmatpush1.msra.mxu0 0.0
    %1038 = vmatprep.subr.mxu0 0.0
    %1039 = vmatpush1.msra.mxu0 0.0
    %1040 = vmatprep.subr.mxu0 0.0
    %1041 = vmatpush1.msra.mxu0 0.0
    %1042 = vmatprep.subr.mxu0 0.0
    %1043 = vmatpush1.msra.mxu0 0.0
    %1044 = vmatprep.subr.mxu0 0.0
    %1045 = vmatpush1.msra.mxu0 0.0
    %1046 = vmatprep.subr.mxu0 0.0
    %1047 = vmatpush1.msra.mxu0 0.0
    %1048 = vmatprep.subr.mxu0 0.0
    %1049 = vmatpush1.msra.mxu0 0.0
    %1050 = vmatprep.subr.mxu0 0.0
    %1051 = vmatpush1.msra.mxu0 0.0
    %1052 = vmatprep.subr.mxu0 0.0
    %1053 = vmatpush1.msra.mxu0 0.0
    %1054 = vmatprep.subr.mxu0 0.0
    %1055 = vmatpush1.msra.mxu0 0.0
    %1056 = vmatprep.subr.mxu0 0.0
    %1057 = vmatpush1.msra.mxu0 0.0
    %1058 = vmatprep.subr.mxu0 0.0
    %1059 = vmatpush1.msra.mxu0 0.0
    %1060 = vmatprep.subr.mxu0 0.0
    %1061 = vmatpush1.msra.mxu0 0.0
    %1062 = vmatprep.subr.mxu0 0.0
    %1063 = vmatpush1.msra.mxu0 0.0
    %1064 = vmatprep.mubr.f32.mxu0 0.0
    %1065 = vmatmul.mubr.f32.gmra.mrb[0].mxu0 %v998
    %v1066 = vpop.f32.mrb[0].mxu0
    %v1067 = vadd.f32 0.0, %v1066
    %v1068 = vpop.f32.mrb[0].mxu0
    %v1069 = vadd.f32 0.0, %v1068
    %1070 = vdwg.mxu0
    %1071 = vmatprep.subr.mxu0 %v426
    %1072 = vmatpush1.msra.mxu0 %v425
    %1073 = vmatprep.subr.mxu0 %v430
    %1074 = vmatpush1.msra.mxu0 %v429
    %1075 = vmatprep.subr.mxu0 %v434
    %1076 = vmatpush1.msra.mxu0 %v433
    %1077 = vmatprep.subr.mxu0 %v438
    %1078 = vmatpush1.msra.mxu0 %v437
    %1079 = vmatprep.subr.mxu0 %v442
    %1080 = vmatpush1.msra.mxu0 %v441
    %1081 = vmatprep.subr.mxu0 %v446
    %1082 = vmatpush1.msra.mxu0 %v445
    %1083 = vmatprep.subr.mxu0 %v450
    %1084 = vmatpush1.msra.mxu0 %v449
    %1085 = vmatprep.subr.mxu0 %v454
    %1086 = vmatpush1.msra.mxu0 %v453
    %1087 = vmatprep.subr.mxu0 %v458
    %1088 = vmatpush1.msra.mxu0 %v457
    %1089 = vmatprep.subr.mxu0 %v462
    %1090 = vmatpush1.msra.mxu0 %v461
    %1091 = vmatprep.subr.mxu0 %v466
    %1092 = vmatpush1.msra.mxu0 %v465
    %1093 = vmatprep.subr.mxu0 %v470
    %1094 = vmatpush1.msra.mxu0 %v469
    %1095 = vmatprep.subr.mxu0 %v474
    %1096 = vmatpush1.msra.mxu0 %v473
    %1097 = vmatprep.subr.mxu0 %v478
    %1098 = vmatpush1.msra.mxu0 %v477
    %1099 = vmatprep.subr.mxu0 %v482
    %1100 = vmatpush1.msra.mxu0 %v481
    %1101 = vmatprep.subr.mxu0 %v486
    %1102 = vmatpush1.msra.mxu0 %v485
    %1103 = vmatprep.subr.mxu0 0.0
    %1104 = vmatpush1.msra.mxu0 0.0
    %1105 = vmatprep.subr.mxu0 0.0
    %1106 = vmatpush1.msra.mxu0 0.0
    %1107 = vmatprep.subr.mxu0 0.0
    %1108 = vmatpush1.msra.mxu0 0.0
    %1109 = vmatprep.subr.mxu0 0.0
    %1110 = vmatpush1.msra.mxu0 0.0
    %1111 = vmatprep.subr.mxu0 0.0
    %1112 = vmatpush1.msra.mxu0 0.0
    %1113 = vmatprep.subr.mxu0 0.0
    %1114 = vmatpush1.msra.mxu0 0.0
    %1115 = vmatprep.subr.mxu0 0.0
    %1116 = vmatpush1.msra.mxu0 0.0
    %1117 = vmatprep.subr.mxu0 0.0
    %1118 = vmatpush1.msra.mxu0 0.0
    %1119 = vmatprep.subr.mxu0 0.0
    %1120 = vmatpush1.msra.mxu0 0.0
    %1121 = vmatprep.subr.mxu0 0.0
    %1122 = vmatpush1.msra.mxu0 0.0
    %1123 = vmatprep.subr.mxu0 0.0
    %1124 = vmatpush1.msra.mxu0 0.0
    %1125 = vmatprep.subr.mxu0 0.0
    %1126 = vmatpush1.msra.mxu0 0.0
    %1127 = vmatprep.subr.mxu0 0.0
    %1128 = vmatpush1.msra.mxu0 0.0
    %1129 = vmatprep.subr.mxu0 0.0
    %1130 = vmatpush1.msra.mxu0 0.0
    %1131 = vmatprep.subr.mxu0 0.0
    %1132 = vmatpush1.msra.mxu0 0.0
    %1133 = vmatprep.subr.mxu0 0.0
    %1134 = vmatpush1.msra.mxu0 0.0
    %1135 = vmatprep.mubr.f32.mxu0 0.0
    %1136 = vmatmul.mubr.f32.gmra.mrb[0].mxu0 %v998
    %v1137 = vpop.f32.mrb[0].mxu0
    %v1138 = vadd.f32 0.0, %v1137
    %v1139 = vpop.f32.mrb[0].mxu0
    %v1140 = vadd.f32 0.0, %v1139
    %1141 = vdwg.mxu0
    %v1142 = vadd.f32 %v282, %v1067
    %v1143 = vadd.f32 %v284, %v1069
    %v1144 = vadd.f32 %v395, %v1138
    %v1145 = vadd.f32 %v397, %v1140
    %v1146 = vxor.u32 %v1142, 2147483648
    %v1147 = vmul.f32 %v1146, 1.442695
    %v1148 = vpow.pop %v1147
    %v1149 = vadd.f32 %v1148, 1.0
    %v1150 = vrcp.pop %v1149
    %v1151 = vmul.f32 1.0, %v1150
    %v1152 = vxor.u32 %v1143, 2147483648
    %v1153 = vmul.f32 %v1152, 1.442695
    %v1154 = vpow.pop %v1153
    %v1155 = vadd.f32 %v1154, 1.0
    %v1156 = vrcp.pop %v1155
    %v1157 = vmul.f32 1.0, %v1156
    %v1158 = vtanh.pop %v1144
    %v1159 = vxor.u32 %v1145, 2147483648
    %v1160 = vmul.f32 %v1159, 1.442695
    %v1161 = vpow.pop %v1160
    %v1162 = vadd.f32 %v1161, 1.0
    %v1163 = vrcp.pop %v1162
    %v1164 = vmul.f32 1.0, %v1163
    %v1165 = vmul.f32 %v1157, %v996
    %v1166 = vmul.f32 %v1151, %v1158
    %v1167 = vadd.f32 %v1165, %v1166
    %v1168 = vtanh.pop %v1167
    %v1169 = vmul.f32 %v1164, %v1168
    %1170 = vst [vmem:[#allocation2 + $0x18] sm:$0xff] %v1169
    %1171 = vmatprep.subr.mxu0 %v424
    %1172 = vmatpush1.msra.mxu0 %v423
    %1173 = vmatprep.subr.mxu0 %v428
    %1174 = vmatpush1.msra.mxu0 %v427
    %1175 = vmatprep.subr.mxu0 %v432
    %1176 = vmatpush1.msra.mxu0 %v431
    %1177 = vmatprep.subr.mxu0 %v436
    %1178 = vmatpush1.msra.mxu0 %v435
    %1179 = vmatprep.subr.mxu0 %v440
    %1180 = vmatpush1.msra.mxu0 %v439
    %1181 = vmatprep.subr.mxu0 %v444
    %1182 = vmatpush1.msra.mxu0 %v443
    %1183 = vmatprep.subr.mxu0 %v448
    %1184 = vmatpush1.msra.mxu0 %v447
    %1185 = vmatprep.subr.mxu0 %v452
    %1186 = vmatpush1.msra.mxu0 %v451
    %1187 = vmatprep.subr.mxu0 %v456
    %1188 = vmatpush1.msra.mxu0 %v455
    %1189 = vmatprep.subr.mxu0 %v460
    %1190 = vmatpush1.msra.mxu0 %v459
    %1191 = vmatprep.subr.mxu0 %v464
    %1192 = vmatpush1.msra.mxu0 %v463
    %1193 = vmatprep.subr.mxu0 %v468
    %1194 = vmatpush1.msra.mxu0 %v467
    %1195 = vmatprep.subr.mxu0 %v472
    %1196 = vmatpush1.msra.mxu0 %v471
    %1197 = vmatprep.subr.mxu0 %v476
    %1198 = vmatpush1.msra.mxu0 %v475
    %1199 = vmatprep.subr.mxu0 %v480
    %1200 = vmatpush1.msra.mxu0 %v479
    %1201 = vmatprep.subr.mxu0 %v484
    %1202 = vmatpush1.msra.mxu0 %v483
    %1203 = vmatprep.subr.mxu0 0.0
    %1204 = vmatpush1.msra.mxu0 0.0
    %1205 = vmatprep.subr.mxu0 0.0
    %1206 = vmatpush1.msra.mxu0 0.0
    %1207 = vmatprep.subr.mxu0 0.0
    %1208 = vmatpush1.msra.mxu0 0.0
    %1209 = vmatprep.subr.mxu0 0.0
    %1210 = vmatpush1.msra.mxu0 0.0
    %1211 = vmatprep.subr.mxu0 0.0
    %1212 = vmatpush1.msra.mxu0 0.0
    %1213 = vmatprep.subr.mxu0 0.0
    %1214 = vmatpush1.msra.mxu0 0.0
    %1215 = vmatprep.subr.mxu0 0.0
    %1216 = vmatpush1.msra.mxu0 0.0
    %1217 = vmatprep.subr.mxu0 0.0
    %1218 = vmatpush1.msra.mxu0 0.0
    %1219 = vmatprep.subr.mxu0 0.0
    %1220 = vmatpush1.msra.mxu0 0.0
    %1221 = vmatprep.subr.mxu0 0.0
    %1222 = vmatpush1.msra.mxu0 0.0
    %1223 = vmatprep.subr.mxu0 0.0
    %1224 = vmatpush1.msra.mxu0 0.0
    %1225 = vmatprep.subr.mxu0 0.0
    %1226 = vmatpush1.msra.mxu0 0.0
    %1227 = vmatprep.subr.mxu0 0.0
    %1228 = vmatpush1.msra.mxu0 0.0
    %1229 = vmatprep.subr.mxu0 0.0
    %1230 = vmatpush1.msra.mxu0 0.0
    %1231 = vmatprep.subr.mxu0 0.0
    %1232 = vmatpush1.msra.mxu0 0.0
    %1233 = vmatprep.subr.mxu0 0.0
    %1234 = vmatpush1.msra.mxu0 0.0
    %1235 = vmatprep.mubr.f32.mxu0 0.0
    %1236 = vmatmul.mubr.f32.gmra.mrb[0].mxu0 %v1169
    %v1237 = vpop.f32.mrb[0].mxu0
    %v1238 = vadd.f32 0.0, %v1237
    %v1239 = vpop.f32.mrb[0].mxu0
    %v1240 = vadd.f32 0.0, %v1239
    %1241 = vdwg.mxu0
    %1242 = vmatprep.subr.mxu0 %v426
    %1243 = vmatpush1.msra.mxu0 %v425
    %1244 = vmatprep.subr.mxu0 %v430
    %1245 = vmatpush1.msra.mxu0 %v429
    %1246 = vmatprep.subr.mxu0 %v434
    %1247 = vmatpush1.msra.mxu0 %v433
    %1248 = vmatprep.subr.mxu0 %v438
    %1249 = vmatpush1.msra.mxu0 %v437
    %1250 = vmatprep.subr.mxu0 %v442
    %1251 = vmatpush1.msra.mxu0 %v441
    %1252 = vmatprep.subr.mxu0 %v446
    %1253 = vmatpush1.msra.mxu0 %v445
    %1254 = vmatprep.subr.mxu0 %v450
    %1255 = vmatpush1.msra.mxu0 %v449
    %1256 = vmatprep.subr.mxu0 %v454
    %1257 = vmatpush1.msra.mxu0 %v453
    %1258 = vmatprep.subr.mxu0 %v458
    %1259 = vmatpush1.msra.mxu0 %v457
    %1260 = vmatprep.subr.mxu0 %v462
    %1261 = vmatpush1.msra.mxu0 %v461
    %1262 = vmatprep.subr.mxu0 %v466
    %1263 = vmatpush1.msra.mxu0 %v465
    %1264 = vmatprep.subr.mxu0 %v470
    %1265 = vmatpush1.msra.mxu0 %v469
    %1266 = vmatprep.subr.mxu0 %v474
    %1267 = vmatpush1.msra.mxu0 %v473
    %1268 = vmatprep.subr.mxu0 %v478
    %1269 = vmatpush1.msra.mxu0 %v477
    %1270 = vmatprep.subr.mxu0 %v482
    %1271 = vmatpush1.msra.mxu0 %v481
    %1272 = vmatprep.subr.mxu0 %v486
    %1273 = vmatpush1.msra.mxu0 %v485
    %1274 = vmatprep.subr.mxu0 0.0
    %1275 = vmatpush1.msra.mxu0 0.0
    %1276 = vmatprep.subr.mxu0 0.0
    %1277 = vmatpush1.msra.mxu0 0.0
    %1278 = vmatprep.subr.mxu0 0.0
    %1279 = vmatpush1.msra.mxu0 0.0
    %1280 = vmatprep.subr.mxu0 0.0
    %1281 = vmatpush1.msra.mxu0 0.0
    %1282 = vmatprep.subr.mxu0 0.0
    %1283 = vmatpush1.msra.mxu0 0.0
    %1284 = vmatprep.subr.mxu0 0.0
    %1285 = vmatpush1.msra.mxu0 0.0
    %1286 = vmatprep.subr.mxu0 0.0
    %1287 = vmatpush1.msra.mxu0 0.0
    %1288 = vmatprep.subr.mxu0 0.0
    %1289 = vmatpush1.msra.mxu0 0.0
    %1290 = vmatprep.subr.mxu0 0.0
    %1291 = vmatpush1.msra.mxu0 0.0
    %1292 = vmatprep.subr.mxu0 0.0
    %1293 = vmatpush1.msra.mxu0 0.0
    %1294 = vmatprep.subr.mxu0 0.0
    %1295 = vmatpush1.msra.mxu0 0.0
    %1296 = vmatprep.subr.mxu0 0.0
    %1297 = vmatpush1.msra.mxu0 0.0
    %1298 = vmatprep.subr.mxu0 0.0
    %1299 = vmatpush1.msra.mxu0 0.0
    %1300 = vmatprep.subr.mxu0 0.0
    %1301 = vmatpush1.msra.mxu0 0.0
    %1302 = vmatprep.subr.mxu0 0.0
    %1303 = vmatpush1.msra.mxu0 0.0
    %1304 = vmatprep.subr.mxu0 0.0
    %1305 = vmatpush1.msra.mxu0 0.0
    %1306 = vmatprep.mubr.f32.mxu0 0.0
    %1307 = vmatmul.mubr.f32.gmra.mrb[0].mxu0 %v1169
    %v1308 = vpop.f32.mrb[0].mxu0
    %v1309 = vadd.f32 0.0, %v1308
    %v1310 = vpop.f32.mrb[0].mxu0
    %v1311 = vadd.f32 0.0, %v1310
    %1312 = vdwg.mxu0
    %v1313 = vadd.f32 %v288, %v1238
    %v1314 = vadd.f32 %v290, %v1240
    %v1315 = vadd.f32 %v401, %v1309
    %v1316 = vadd.f32 %v403, %v1311
    %v1317 = vxor.u32 %v1313, 2147483648
    %v1318 = vmul.f32 %v1317, 1.442695
    %v1319 = vpow.pop %v1318
    %v1320 = vadd.f32 %v1319, 1.0
    %v1321 = vrcp.pop %v1320
    %v1322 = vmul.f32 1.0, %v1321
    %v1323 = vxor.u32 %v1314, 2147483648
    %v1324 = vmul.f32 %v1323, 1.442695
    %v1325 = vpow.pop %v1324
    %v1326 = vadd.f32 %v1325, 1.0
    %v1327 = vrcp.pop %v1326
    %v1328 = vmul.f32 1.0, %v1327
    %v1329 = vtanh.pop %v1315
    %v1330 = vxor.u32 %v1316, 2147483648
    %v1331 = vmul.f32 %v1330, 1.442695
    %v1332 = vpow.pop %v1331
    %v1333 = vadd.f32 %v1332, 1.0
    %v1334 = vrcp.pop %v1333
    %v1335 = vmul.f32 1.0, %v1334
    %v1336 = vmul.f32 %v1328, %v1167
    %v1337 = vmul.f32 %v1322, %v1329
    %v1338 = vadd.f32 %v1336, %v1337
    %v1339 = vtanh.pop %v1338
    %v1340 = vmul.f32 %v1335, %v1339
    %1341 = vst [vmem:[#allocation2 + $0x20] sm:$0xff] %v1340
    %1342 = vmatprep.subr.mxu0 %v424
    %1343 = vmatpush1.msra.mxu0 %v423
    %1344 = vmatprep.subr.mxu0 %v428
    %1345 = vmatpush1.msra.mxu0 %v427
    %1346 = vmatprep.subr.mxu0 %v432
    %1347 = vmatpush1.msra.mxu0 %v431
    %1348 = vmatprep.subr.mxu0 %v436
    %1349 = vmatpush1.msra.mxu0 %v435
    %1350 = vmatprep.subr.mxu0 %v440
    %1351 = vmatpush1.msra.mxu0 %v439
    %1352 = vmatprep.subr.mxu0 %v444
    %1353 = vmatpush1.msra.mxu0 %v443
    %1354 = vmatprep.subr.mxu0 %v448
    %1355 = vmatpush1.msra.mxu0 %v447
    %1356 = vmatprep.subr.mxu0 %v452
    %1357 = vmatpush1.msra.mxu0 %v451
    %1358 = vmatprep.subr.mxu0 %v456
    %1359 = vmatpush1.msra.mxu0 %v455
    %1360 = vmatprep.subr.mxu0 %v460
    %1361 = vmatpush1.msra.mxu0 %v459
    %1362 = vmatprep.subr.mxu0 %v464
    %1363 = vmatpush1.msra.mxu0 %v463
    %1364 = vmatprep.subr.mxu0 %v468
    %1365 = vmatpush1.msra.mxu0 %v467
    %1366 = vmatprep.subr.mxu0 %v472
    %1367 = vmatpush1.msra.mxu0 %v471
    %1368 = vmatprep.subr.mxu0 %v476
    %1369 = vmatpush1.msra.mxu0 %v475
    %1370 = vmatprep.subr.mxu0 %v480
    %1371 = vmatpush1.msra.mxu0 %v479
    %1372 = vmatprep.subr.mxu0 %v484
    %1373 = vmatpush1.msra.mxu0 %v483
    %1374 = vmatprep.subr.mxu0 0.0
    %1375 = vmatpush1.msra.mxu0 0.0
    %1376 = vmatprep.subr.mxu0 0.0
    %1377 = vmatpush1.msra.mxu0 0.0
    %1378 = vmatprep.subr.mxu0 0.0
    %1379 = vmatpush1.msra.mxu0 0.0
    %1380 = vmatprep.subr.mxu0 0.0
    %1381 = vmatpush1.msra.mxu0 0.0
    %1382 = vmatprep.subr.mxu0 0.0
    %1383 = vmatpush1.msra.mxu0 0.0
    %1384 = vmatprep.subr.mxu0 0.0
    %1385 = vmatpush1.msra.mxu0 0.0
    %1386 = vmatprep.subr.mxu0 0.0
    %1387 = vmatpush1.msra.mxu0 0.0
    %1388 = vmatprep.subr.mxu0 0.0
    %1389 = vmatpush1.msra.mxu0 0.0
    %1390 = vmatprep.subr.mxu0 0.0
    %1391 = vmatpush1.msra.mxu0 0.0
    %1392 = vmatprep.subr.mxu0 0.0
    %1393 = vmatpush1.msra.mxu0 0.0
    %1394 = vmatprep.subr.mxu0 0.0
    %1395 = vmatpush1.msra.mxu0 0.0
    %1396 = vmatprep.subr.mxu0 0.0
    %1397 = vmatpush1.msra.mxu0 0.0
    %1398 = vmatprep.subr.mxu0 0.0
    %1399 = vmatpush1.msra.mxu0 0.0
    %1400 = vmatprep.subr.mxu0 0.0
    %1401 = vmatpush1.msra.mxu0 0.0
    %1402 = vmatprep.subr.mxu0 0.0
    %1403 = vmatpush1.msra.mxu0 0.0
    %1404 = vmatprep.subr.mxu0 0.0
    %1405 = vmatpush1.msra.mxu0 0.0
    %1406 = vmatprep.mubr.f32.mxu0 0.0
    %1407 = vmatmul.mubr.f32.gmra.mrb[0].mxu0 %v1340
    %v1408 = vpop.f32.mrb[0].mxu0
    %v1409 = vadd.f32 0.0, %v1408
    %v1410 = vpop.f32.mrb[0].mxu0
    %v1411 = vadd.f32 0.0, %v1410
    %1412 = vdwg.mxu0
    %1413 = vmatprep.subr.mxu0 %v426
    %1414 = vmatpush1.msra.mxu0 %v425
    %1415 = vmatprep.subr.mxu0 %v430
    %1416 = vmatpush1.msra.mxu0 %v429
    %1417 = vmatprep.subr.mxu0 %v434
    %1418 = vmatpush1.msra.mxu0 %v433
    %1419 = vmatprep.subr.mxu0 %v438
    %1420 = vmatpush1.msra.mxu0 %v437
    %1421 = vmatprep.subr.mxu0 %v442
    %1422 = vmatpush1.msra.mxu0 %v441
    %1423 = vmatprep.subr.mxu0 %v446
    %1424 = vmatpush1.msra.mxu0 %v445
    %1425 = vmatprep.subr.mxu0 %v450
    %1426 = vmatpush1.msra.mxu0 %v449
    %1427 = vmatprep.subr.mxu0 %v454
    %1428 = vmatpush1.msra.mxu0 %v453
    %1429 = vmatprep.subr.mxu0 %v458
    %1430 = vmatpush1.msra.mxu0 %v457
    %1431 = vmatprep.subr.mxu0 %v462
    %1432 = vmatpush1.msra.mxu0 %v461
    %1433 = vmatprep.subr.mxu0 %v466
    %1434 = vmatpush1.msra.mxu0 %v465
    %1435 = vmatprep.subr.mxu0 %v470
    %1436 = vmatpush1.msra.mxu0 %v469
    %1437 = vmatprep.subr.mxu0 %v474
    %1438 = vmatpush1.msra.mxu0 %v473
    %1439 = vmatprep.subr.mxu0 %v478
    %1440 = vmatpush1.msra.mxu0 %v477
    %1441 = vmatprep.subr.mxu0 %v482
    %1442 = vmatpush1.msra.mxu0 %v481
    %1443 = vmatprep.subr.mxu0 %v486
    %1444 = vmatpush1.msra.mxu0 %v485
    %1445 = vmatprep.subr.mxu0 0.0
    %1446 = vmatpush1.msra.mxu0 0.0
    %1447 = vmatprep.subr.mxu0 0.0
    %1448 = vmatpush1.msra.mxu0 0.0
    %1449 = vmatprep.subr.mxu0 0.0
    %1450 = vmatpush1.msra.mxu0 0.0
    %1451 = vmatprep.subr.mxu0 0.0
    %1452 = vmatpush1.msra.mxu0 0.0
    %1453 = vmatprep.subr.mxu0 0.0
    %1454 = vmatpush1.msra.mxu0 0.0
    %1455 = vmatprep.subr.mxu0 0.0
    %1456 = vmatpush1.msra.mxu0 0.0
    %1457 = vmatprep.subr.mxu0 0.0
    %1458 = vmatpush1.msra.mxu0 0.0
    %1459 = vmatprep.subr.mxu0 0.0
    %1460 = vmatpush1.msra.mxu0 0.0
    %1461 = vmatprep.subr.mxu0 0.0
    %1462 = vmatpush1.msra.mxu0 0.0
    %1463 = vmatprep.subr.mxu0 0.0
    %1464 = vmatpush1.msra.mxu0 0.0
    %1465 = vmatprep.subr.mxu0 0.0
    %1466 = vmatpush1.msra.mxu0 0.0
    %1467 = vmatprep.subr.mxu0 0.0
    %1468 = vmatpush1.msra.mxu0 0.0
    %1469 = vmatprep.subr.mxu0 0.0
    %1470 = vmatpush1.msra.mxu0 0.0
    %1471 = vmatprep.subr.mxu0 0.0
    %1472 = vmatpush1.msra.mxu0 0.0
    %1473 = vmatprep.subr.mxu0 0.0
    %1474 = vmatpush1.msra.mxu0 0.0
    %1475 = vmatprep.subr.mxu0 0.0
    %1476 = vmatpush1.msra.mxu0 0.0
    %1477 = vmatprep.mubr.f32.mxu0 0.0
    %1478 = vmatmul.mubr.f32.gmra.mrb[0].mxu0 %v1340
    %v1479 = vpop.f32.mrb[0].mxu0
    %v1480 = vadd.f32 0.0, %v1479
    %v1481 = vpop.f32.mrb[0].mxu0
    %v1482 = vadd.f32 0.0, %v1481
    %1483 = vdwg.mxu0
    %v1484 = vadd.f32 %v294, %v1409
    %v1485 = vadd.f32 %v296, %v1411
    %v1486 = vadd.f32 %v407, %v1480
    %v1487 = vadd.f32 %v409, %v1482
    %v1488 = vxor.u32 %v1484, 2147483648
    %v1489 = vmul.f32 %v1488, 1.442695
    %v1490 = vpow.pop %v1489
    %v1491 = vadd.f32 %v1490, 1.0
    %v1492 = vrcp.pop %v1491
    %v1493 = vmul.f32 1.0, %v1492
    %v1494 = vxor.u32 %v1485, 2147483648
    %v1495 = vmul.f32 %v1494, 1.442695
    %v1496 = vpow.pop %v1495
    %v1497 = vadd.f32 %v1496, 1.0
    %v1498 = vrcp.pop %v1497
    %v1499 = vmul.f32 1.0, %v1498
    %v1500 = vtanh.pop %v1486
    %v1501 = vxor.u32 %v1487, 2147483648
    %v1502 = vmul.f32 %v1501, 1.442695
    %v1503 = vpow.pop %v1502
    %v1504 = vadd.f32 %v1503, 1.0
    %v1505 = vrcp.pop %v1504
    %v1506 = vmul.f32 1.0, %v1505
    %v1507 = vmul.f32 %v1499, %v1338
    %v1508 = vmul.f32 %v1493, %v1500
    %v1509 = vadd.f32 %v1507, %v1508
    %v1510 = vtanh.pop %v1509
    %v1511 = vmul.f32 %v1506, %v1510
    %1512 = vst [vmem:[#allocation2 + $0x28] sm:$0xff] %v1511
    %1513 = vmatprep.subr.mxu0 %v424
    %1514 = vmatpush1.msra.mxu0 %v423
    %1515 = vmatprep.subr.mxu0 %v428
    %1516 = vmatpush1.msra.mxu0 %v427
    %1517 = vmatprep.subr.mxu0 %v432
    %1518 = vmatpush1.msra.mxu0 %v431
    %1519 = vmatprep.subr.mxu0 %v436
    %1520 = vmatpush1.msra.mxu0 %v435
    %1521 = vmatprep.subr.mxu0 %v440
    %1522 = vmatpush1.msra.mxu0 %v439
    %1523 = vmatprep.subr.mxu0 %v444
    %1524 = vmatpush1.msra.mxu0 %v443
    %1525 = vmatprep.subr.mxu0 %v448
    %1526 = vmatpush1.msra.mxu0 %v447
    %1527 = vmatprep.subr.mxu0 %v452
    %1528 = vmatpush1.msra.mxu0 %v451
    %1529 = vmatprep.subr.mxu0 %v456
    %1530 = vmatpush1.msra.mxu0 %v455
    %1531 = vmatprep.subr.mxu0 %v460
    %1532 = vmatpush1.msra.mxu0 %v459
    %1533 = vmatprep.subr.mxu0 %v464
    %1534 = vmatpush1.msra.mxu0 %v463
    %1535 = vmatprep.subr.mxu0 %v468
    %1536 = vmatpush1.msra.mxu0 %v467
    %1537 = vmatprep.subr.mxu0 %v472
    %1538 = vmatpush1.msra.mxu0 %v471
    %1539 = vmatprep.subr.mxu0 %v476
    %1540 = vmatpush1.msra.mxu0 %v475
    %1541 = vmatprep.subr.mxu0 %v480
    %1542 = vmatpush1.msra.mxu0 %v479
    %1543 = vmatprep.subr.mxu0 %v484
    %1544 = vmatpush1.msra.mxu0 %v483
    %1545 = vmatprep.subr.mxu0 0.0
    %1546 = vmatpush1.msra.mxu0 0.0
    %1547 = vmatprep.subr.mxu0 0.0
    %1548 = vmatpush1.msra.mxu0 0.0
    %1549 = vmatprep.subr.mxu0 0.0
    %1550 = vmatpush1.msra.mxu0 0.0
    %1551 = vmatprep.subr.mxu0 0.0
    %1552 = vmatpush1.msra.mxu0 0.0
    %1553 = vmatprep.subr.mxu0 0.0
    %1554 = vmatpush1.msra.mxu0 0.0
    %1555 = vmatprep.subr.mxu0 0.0
    %1556 = vmatpush1.msra.mxu0 0.0
    %1557 = vmatprep.subr.mxu0 0.0
    %1558 = vmatpush1.msra.mxu0 0.0
    %1559 = vmatprep.subr.mxu0 0.0
    %1560 = vmatpush1.msra.mxu0 0.0
    %1561 = vmatprep.subr.mxu0 0.0
    %1562 = vmatpush1.msra.mxu0 0.0
    %1563 = vmatprep.subr.mxu0 0.0
    %1564 = vmatpush1.msra.mxu0 0.0
    %1565 = vmatprep.subr.mxu0 0.0
    %1566 = vmatpush1.msra.mxu0 0.0
    %1567 = vmatprep.subr.mxu0 0.0
    %1568 = vmatpush1.msra.mxu0 0.0
    %1569 = vmatprep.subr.mxu0 0.0
    %1570 = vmatpush1.msra.mxu0 0.0
    %1571 = vmatprep.subr.mxu0 0.0
    %1572 = vmatpush1.msra.mxu0 0.0
    %1573 = vmatprep.subr.mxu0 0.0
    %1574 = vmatpush1.msra.mxu0 0.0
    %1575 = vmatprep.subr.mxu0 0.0
    %1576 = vmatpush1.msra.mxu0 0.0
    %1577 = vmatprep.mubr.f32.mxu0 0.0
    %1578 = vmatmul.mubr.f32.gmra.mrb[0].mxu0 %v1511
    %v1579 = vpop.f32.mrb[0].mxu0
    %v1580 = vadd.f32 0.0, %v1579
    %v1581 = vpop.f32.mrb[0].mxu0
    %v1582 = vadd.f32 0.0, %v1581
    %1583 = vdwg.mxu0
    %1584 = vmatprep.subr.mxu0 %v426
    %1585 = vmatpush1.msra.mxu0 %v425
    %1586 = vmatprep.subr.mxu0 %v430
    %1587 = vmatpush1.msra.mxu0 %v429
    %1588 = vmatprep.subr.mxu0 %v434
    %1589 = vmatpush1.msra.mxu0 %v433
    %1590 = vmatprep.subr.mxu0 %v438
    %1591 = vmatpush1.msra.mxu0 %v437
    %1592 = vmatprep.subr.mxu0 %v442
    %1593 = vmatpush1.msra.mxu0 %v441
    %1594 = vmatprep.subr.mxu0 %v446
    %1595 = vmatpush1.msra.mxu0 %v445
    %1596 = vmatprep.subr.mxu0 %v450
    %1597 = vmatpush1.msra.mxu0 %v449
    %1598 = vmatprep.subr.mxu0 %v454
    %1599 = vmatpush1.msra.mxu0 %v453
    %1600 = vmatprep.subr.mxu0 %v458
    %1601 = vmatpush1.msra.mxu0 %v457
    %1602 = vmatprep.subr.mxu0 %v462
    %1603 = vmatpush1.msra.mxu0 %v461
    %1604 = vmatprep.subr.mxu0 %v466
    %1605 = vmatpush1.msra.mxu0 %v465
    %1606 = vmatprep.subr.mxu0 %v470
    %1607 = vmatpush1.msra.mxu0 %v469
    %1608 = vmatprep.subr.mxu0 %v474
    %1609 = vmatpush1.msra.mxu0 %v473
    %1610 = vmatprep.subr.mxu0 %v478
    %1611 = vmatpush1.msra.mxu0 %v477
    %1612 = vmatprep.subr.mxu0 %v482
    %1613 = vmatpush1.msra.mxu0 %v481
    %1614 = vmatprep.subr.mxu0 %v486
    %1615 = vmatpush1.msra.mxu0 %v485
    %1616 = vmatprep.subr.mxu0 0.0
    %1617 = vmatpush1.msra.mxu0 0.0
    %1618 = vmatprep.subr.mxu0 0.0
    %1619 = vmatpush1.msra.mxu0 0.0
    %1620 = vmatprep.subr.mxu0 0.0
    %1621 = vmatpush1.msra.mxu0 0.0
    %1622 = vmatprep.subr.mxu0 0.0
    %1623 = vmatpush1.msra.mxu0 0.0
    %1624 = vmatprep.subr.mxu0 0.0
    %1625 = vmatpush1.msra.mxu0 0.0
    %1626 = vmatprep.subr.mxu0 0.0
    %1627 = vmatpush1.msra.mxu0 0.0
    %1628 = vmatprep.subr.mxu0 0.0
    %1629 = vmatpush1.msra.mxu0 0.0
    %1630 = vmatprep.subr.mxu0 0.0
    %1631 = vmatpush1.msra.mxu0 0.0
    %1632 = vmatprep.subr.mxu0 0.0
    %1633 = vmatpush1.msra.mxu0 0.0
    %1634 = vmatprep.subr.mxu0 0.0
    %1635 = vmatpush1.msra.mxu0 0.0
    %1636 = vmatprep.subr.mxu0 0.0
    %1637 = vmatpush1.msra.mxu0 0.0
    %1638 = vmatprep.subr.mxu0 0.0
    %1639 = vmatpush1.msra.mxu0 0.0
    %1640 = vmatprep.subr.mxu0 0.0
    %1641 = vmatpush1.msra.mxu0 0.0
    %1642 = vmatprep.subr.mxu0 0.0
    %1643 = vmatpush1.msra.mxu0 0.0
    %1644 = vmatprep.subr.mxu0 0.0
    %1645 = vmatpush1.msra.mxu0 0.0
    %1646 = vmatprep.subr.mxu0 0.0
    %1647 = vmatpush1.msra.mxu0 0.0
    %1648 = vmatprep.mubr.f32.mxu0 0.0
    %1649 = vmatmul.mubr.f32.gmra.mrb[0].mxu0 %v1511
    %v1650 = vpop.f32.mrb[0].mxu0
    %v1651 = vadd.f32 0.0, %v1650
    %v1652 = vpop.f32.mrb[0].mxu0
    %v1653 = vadd.f32 0.0, %v1652
    %1654 = vdwg.mxu0
    %v1655 = vadd.f32 %v300, %v1580
    %v1656 = vadd.f32 %v302, %v1582
    %v1657 = vadd.f32 %v413, %v1651
    %v1658 = vadd.f32 %v415, %v1653
    %v1659 = vxor.u32 %v1655, 2147483648
    %v1660 = vmul.f32 %v1659, 1.442695
    %v1661 = vpow.pop %v1660
    %v1662 = vadd.f32 %v1661, 1.0
    %v1663 = vrcp.pop %v1662
    %v1664 = vmul.f32 1.0, %v1663
    %v1665 = vxor.u32 %v1656, 2147483648
    %v1666 = vmul.f32 %v1665, 1.442695
    %v1667 = vpow.pop %v1666
    %v1668 = vadd.f32 %v1667, 1.0
    %v1669 = vrcp.pop %v1668
    %v1670 = vmul.f32 1.0, %v1669
    %v1671 = vtanh.pop %v1657
    %v1672 = vxor.u32 %v1658, 2147483648
    %v1673 = vmul.f32 %v1672, 1.442695
    %v1674 = vpow.pop %v1673
    %v1675 = vadd.f32 %v1674, 1.0
    %v1676 = vrcp.pop %v1675
    %v1677 = vmul.f32 1.0, %v1676
    %v1678 = vmul.f32 %v1670, %v1509
    %v1679 = vmul.f32 %v1664, %v1671
    %v1680 = vadd.f32 %v1678, %v1679
    %v1681 = vtanh.pop %v1680
    %v1682 = vmul.f32 %v1677, %v1681
    %1683 = vst [vmem:[#allocation2 + $0x30] sm:$0xff] %v1682
    %1684 = vmatprep.subr.mxu0 %v424
    %1685 = vmatpush1.msra.mxu0 %v423
    %1686 = vmatprep.subr.mxu0 %v428
    %1687 = vmatpush1.msra.mxu0 %v427
    %1688 = vmatprep.subr.mxu0 %v432
    %1689 = vmatpush1.msra.mxu0 %v431
    %1690 = vmatprep.subr.mxu0 %v436
    %1691 = vmatpush1.msra.mxu0 %v435
    %1692 = vmatprep.subr.mxu0 %v440
    %1693 = vmatpush1.msra.mxu0 %v439
    %1694 = vmatprep.subr.mxu0 %v444
    %1695 = vmatpush1.msra.mxu0 %v443
    %1696 = vmatprep.subr.mxu0 %v448
    %1697 = vmatpush1.msra.mxu0 %v447
    %1698 = vmatprep.subr.mxu0 %v452
    %1699 = vmatpush1.msra.mxu0 %v451
    %1700 = vmatprep.subr.mxu0 %v456
    %1701 = vmatpush1.msra.mxu0 %v455
    %1702 = vmatprep.subr.mxu0 %v460
    %1703 = vmatpush1.msra.mxu0 %v459
    %1704 = vmatprep.subr.mxu0 %v464
    %1705 = vmatpush1.msra.mxu0 %v463
    %1706 = vmatprep.subr.mxu0 %v468
    %1707 = vmatpush1.msra.mxu0 %v467
    %1708 = vmatprep.subr.mxu0 %v472
    %1709 = vmatpush1.msra.mxu0 %v471
    %1710 = vmatprep.subr.mxu0 %v476
    %1711 = vmatpush1.msra.mxu0 %v475
    %1712 = vmatprep.subr.mxu0 %v480
    %1713 = vmatpush1.msra.mxu0 %v479
    %1714 = vmatprep.subr.mxu0 %v484
    %1715 = vmatpush1.msra.mxu0 %v483
    %1716 = vmatprep.subr.mxu0 0.0
    %1717 = vmatpush1.msra.mxu0 0.0
    %1718 = vmatprep.subr.mxu0 0.0
    %1719 = vmatpush1.msra.mxu0 0.0
    %1720 = vmatprep.subr.mxu0 0.0
    %1721 = vmatpush1.msra.mxu0 0.0
    %1722 = vmatprep.subr.mxu0 0.0
    %1723 = vmatpush1.msra.mxu0 0.0
    %1724 = vmatprep.subr.mxu0 0.0
    %1725 = vmatpush1.msra.mxu0 0.0
    %1726 = vmatprep.subr.mxu0 0.0
    %1727 = vmatpush1.msra.mxu0 0.0
    %1728 = vmatprep.subr.mxu0 0.0
    %1729 = vmatpush1.msra.mxu0 0.0
    %1730 = vmatprep.subr.mxu0 0.0
    %1731 = vmatpush1.msra.mxu0 0.0
    %1732 = vmatprep.subr.mxu0 0.0
    %1733 = vmatpush1.msra.mxu0 0.0
    %1734 = vmatprep.subr.mxu0 0.0
    %1735 = vmatpush1.msra.mxu0 0.0
    %1736 = vmatprep.subr.mxu0 0.0
    %1737 = vmatpush1.msra.mxu0 0.0
    %1738 = vmatprep.subr.mxu0 0.0
    %1739 = vmatpush1.msra.mxu0 0.0
    %1740 = vmatprep.subr.mxu0 0.0
    %1741 = vmatpush1.msra.mxu0 0.0
    %1742 = vmatprep.subr.mxu0 0.0
    %1743 = vmatpush1.msra.mxu0 0.0
    %1744 = vmatprep.subr.mxu0 0.0
    %1745 = vmatpush1.msra.mxu0 0.0
    %1746 = vmatprep.subr.mxu0 0.0
    %1747 = vmatpush1.msra.mxu0 0.0
    %1748 = vmatprep.mubr.f32.mxu0 0.0
    %1749 = vmatmul.mubr.f32.gmra.mrb[0].mxu0 %v1682
    %v1750 = vpop.f32.mrb[0].mxu0
    %v1751 = vadd.f32 0.0, %v1750
    %v1752 = vpop.f32.mrb[0].mxu0
    %v1753 = vadd.f32 0.0, %v1752
    %1754 = vdwg.mxu0
    %1755 = vmatprep.subr.mxu0 %v426
    %1756 = vmatpush1.msra.mxu0 %v425
    %1757 = vmatprep.subr.mxu0 %v430
    %1758 = vmatpush1.msra.mxu0 %v429
    %1759 = vmatprep.subr.mxu0 %v434
    %1760 = vmatpush1.msra.mxu0 %v433
    %1761 = vmatprep.subr.mxu0 %v438
    %1762 = vmatpush1.msra.mxu0 %v437
    %1763 = vmatprep.subr.mxu0 %v442
    %1764 = vmatpush1.msra.mxu0 %v441
    %1765 = vmatprep.subr.mxu0 %v446
    %1766 = vmatpush1.msra.mxu0 %v445
    %1767 = vmatprep.subr.mxu0 %v450
    %1768 = vmatpush1.msra.mxu0 %v449
    %1769 = vmatprep.subr.mxu0 %v454
    %1770 = vmatpush1.msra.mxu0 %v453
    %1771 = vmatprep.subr.mxu0 %v458
    %1772 = vmatpush1.msra.mxu0 %v457
    %1773 = vmatprep.subr.mxu0 %v462
    %1774 = vmatpush1.msra.mxu0 %v461
    %1775 = vmatprep.subr.mxu0 %v466
    %1776 = vmatpush1.msra.mxu0 %v465
    %1777 = vmatprep.subr.mxu0 %v470
    %1778 = vmatpush1.msra.mxu0 %v469
    %1779 = vmatprep.subr.mxu0 %v474
    %1780 = vmatpush1.msra.mxu0 %v473
    %1781 = vmatprep.subr.mxu0 %v478
    %1782 = vmatpush1.msra.mxu0 %v477
    %1783 = vmatprep.subr.mxu0 %v482
    %1784 = vmatpush1.msra.mxu0 %v481
    %1785 = vmatprep.subr.mxu0 %v486
    %1786 = vmatpush1.msra.mxu0 %v485
    %1787 = vmatprep.subr.mxu0 0.0
    %1788 = vmatpush1.msra.mxu0 0.0
    %1789 = vmatprep.subr.mxu0 0.0
    %1790 = vmatpush1.msra.mxu0 0.0
    %1791 = vmatprep.subr.mxu0 0.0
    %1792 = vmatpush1.msra.mxu0 0.0
    %1793 = vmatprep.subr.mxu0 0.0
    %1794 = vmatpush1.msra.mxu0 0.0
    %1795 = vmatprep.subr.mxu0 0.0
    %1796 = vmatpush1.msra.mxu0 0.0
    %1797 = vmatprep.subr.mxu0 0.0
    %1798 = vmatpush1.msra.mxu0 0.0
    %1799 = vmatprep.subr.mxu0 0.0
    %1800 = vmatpush1.msra.mxu0 0.0
    %1801 = vmatprep.subr.mxu0 0.0
    %1802 = vmatpush1.msra.mxu0 0.0
    %1803 = vmatprep.subr.mxu0 0.0
    %1804 = vmatpush1.msra.mxu0 0.0
    %1805 = vmatprep.subr.mxu0 0.0
    %1806 = vmatpush1.msra.mxu0 0.0
    %1807 = vmatprep.subr.mxu0 0.0
    %1808 = vmatpush1.msra.mxu0 0.0
    %1809 = vmatprep.subr.mxu0 0.0
    %1810 = vmatpush1.msra.mxu0 0.0
    %1811 = vmatprep.subr.mxu0 0.0
    %1812 = vmatpush1.msra.mxu0 0.0
    %1813 = vmatprep.subr.mxu0 0.0
    %1814 = vmatpush1.msra.mxu0 0.0
    %1815 = vmatprep.subr.mxu0 0.0
    %1816 = vmatpush1.msra.mxu0 0.0
    %1817 = vmatprep.subr.mxu0 0.0
    %1818 = vmatpush1.msra.mxu0 0.0
    %1819 = vmatprep.mubr.f32.mxu0 0.0
    %1820 = vmatmul.mubr.f32.gmra.mrb[0].mxu0 %v1682
    %v1821 = vpop.f32.mrb[0].mxu0
    %v1822 = vadd.f32 0.0, %v1821
    %v1823 = vpop.f32.mrb[0].mxu0
    %v1824 = vadd.f32 0.0, %v1823
    %1825 = vdwg.mxu0
    %v1826 = vadd.f32 %v306, %v1751
    %v1827 = vadd.f32 %v308, %v1753
    %v1828 = vadd.f32 %v419, %v1822
    %v1829 = vadd.f32 %v421, %v1824
    %v1830 = vxor.u32 %v1826, 2147483648
    %v1831 = vmul.f32 %v1830, 1.442695
    %v1832 = vpow.pop %v1831
    %v1833 = vadd.f32 %v1832, 1.0
    %v1834 = vrcp.pop %v1833
    %v1835 = vmul.f32 1.0, %v1834
    %v1836 = vxor.u32 %v1827, 2147483648
    %v1837 = vmul.f32 %v1836, 1.442695
    %v1838 = vpow.pop %v1837
    %v1839 = vadd.f32 %v1838, 1.0
    %v1840 = vrcp.pop %v1839
    %v1841 = vmul.f32 1.0, %v1840
    %v1842 = vtanh.pop %v1828
    %v1843 = vxor.u32 %v1829, 2147483648
    %v1844 = vmul.f32 %v1843, 1.442695
    %v1845 = vpow.pop %v1844
    %v1846 = vadd.f32 %v1845, 1.0
    %v1847 = vrcp.pop %v1846
    %v1848 = vmul.f32 1.0, %v1847
    %v1849 = vmul.f32 %v1841, %v1680
    %v1850 = vmul.f32 %v1835, %v1842
    %v1851 = vadd.f32 %v1849, %v1850
    %v1852 = vtanh.pop %v1851
    %v1853 = vmul.f32 %v1848, %v1852
    %1854 = vst [vmem:[#allocation2 + $0x38] sm:$0xff] %v1853
    %v1855 = vld [vmem:[#allocation2] sm:$0xff]
    %v1856 = vld [vmem:[#allocation2 + $0x8] sm:$0xff]
    %v1857 = vld [vmem:[#allocation2 + $0x10] sm:$0xff]
    %v1858 = vld [vmem:[#allocation2 + $0x18] sm:$0xff]
    %v1859 = vld [vmem:[#allocation2 + $0x20] sm:$0xff]
    %v1860 = vld [vmem:[#allocation2 + $0x28] sm:$0xff]
    %v1861 = vld [vmem:[#allocation2 + $0x30] sm:$0xff]
    %v1862 = vld [vmem:[#allocation2 + $0x38] sm:$0xff]
    %v1863 = vld [vmem:[#allocation8] sm:$0xff]
    %v1864 = vld [vmem:[#allocation8 + $0x8] sm:$0xff]
    %v1865 = vld [vmem:[#allocation8 + $0x10] sm:$0xff]
    %v1866 = vld [vmem:[#allocation8 + $0x18] sm:$0xff]
    %v1867 = vld [vmem:[#allocation8 + $0x20] sm:$0xff]
    %v1868 = vld [vmem:[#allocation8 + $0x28] sm:$0xff]
    %v1869 = vld [vmem:[#allocation8 + $0x30] sm:$0xff]
    %v1870 = vld [vmem:[#allocation8 + $0x38] sm:$0xff]
    %v1871 = vld [vmem:[#allocation8 + $0x40] sm:$0xff]
    %v1872 = vld [vmem:[#allocation8 + $0x48] sm:$0xff]
    %v1873 = vld [vmem:[#allocation8 + $0x50] sm:$0xff]
    %v1874 = vld [vmem:[#allocation8 + $0x58] sm:$0xff]
    %v1875 = vld [vmem:[#allocation8 + $0x60] sm:$0xff]
    %v1876 = vld [vmem:[#allocation8 + $0x68] sm:$0xff]
    %v1877 = vld [vmem:[#allocation8 + $0x70] sm:$0xff]
    %v1878 = vld [vmem:[#allocation8 + $0x78] sm:$0xff]
    %v1879 = vld [vmem:[#allocation8 + $0x80] sm:$0xff]
    %v1880 = vld [vmem:[#allocation8 + $0x88] sm:$0xff]
    %v1881 = vld [vmem:[#allocation8 + $0x90] sm:$0xff]
    %v1882 = vld [vmem:[#allocation8 + $0x98] sm:$0xff]
    %v1883 = vld [vmem:[#allocation8 + $0xa0] sm:$0xff]
    %v1884 = vld [vmem:[#allocation8 + $0xa8] sm:$0xff]
    %v1885 = vld [vmem:[#allocation8 + $0xb0] sm:$0xff]
    %v1886 = vld [vmem:[#allocation8 + $0xb8] sm:$0xff]
    %v1887 = vld [vmem:[#allocation8 + $0xc0] sm:$0xff]
    %v1888 = vld [vmem:[#allocation8 + $0xc8] sm:$0xff]
    %v1889 = vld [vmem:[#allocation8 + $0xd0] sm:$0xff]
    %v1890 = vld [vmem:[#allocation8 + $0xd8] sm:$0xff]
    %v1891 = vld [vmem:[#allocation8 + $0xe0] sm:$0xff]
    %v1892 = vld [vmem:[#allocation8 + $0xe8] sm:$0xff]
    %v1893 = vld [vmem:[#allocation8 + $0xf0] sm:$0xff]
    %v1894 = vld [vmem:[#allocation8 + $0xf8] sm:$0xff]
    %v1895 = vld [vmem:[#allocation8 + $0x100] sm:$0xff]
    %v1896 = vld [vmem:[#allocation8 + $0x108] sm:$0xff]
    %v1897 = vld [vmem:[#allocation8 + $0x110] sm:$0xff]
    %v1898 = vld [vmem:[#allocation8 + $0x118] sm:$0xff]
    %v1899 = vld [vmem:[#allocation8 + $0x120] sm:$0xff]
    %v1900 = vld [vmem:[#allocation8 + $0x128] sm:$0xff]
    %v1901 = vld [vmem:[#allocation8 + $0x130] sm:$0xff]
    %v1902 = vld [vmem:[#allocation8 + $0x138] sm:$0xff]
    %v1903 = vld [vmem:[#allocation8 + $0x140] sm:$0xff]
    %v1904 = vld [vmem:[#allocation8 + $0x148] sm:$0xff]
    %v1905 = vld [vmem:[#allocation8 + $0x150] sm:$0xff]
    %v1906 = vld [vmem:[#allocation8 + $0x158] sm:$0xff]
    %v1907 = vld [vmem:[#allocation8 + $0x160] sm:$0xff]
    %v1908 = vld [vmem:[#allocation8 + $0x168] sm:$0xff]
    %v1909 = vld [vmem:[#allocation8 + $0x170] sm:$0xff]
    %v1910 = vld [vmem:[#allocation8 + $0x178] sm:$0xff]
    %v1911 = vld [vmem:[#allocation8 + $0x180] sm:$0xff]
    %v1912 = vld [vmem:[#allocation8 + $0x188] sm:$0xff]
    %v1913 = vld [vmem:[#allocation8 + $0x190] sm:$0xff]
    %v1914 = vld [vmem:[#allocation8 + $0x198] sm:$0xff]
    %v1915 = vld [vmem:[#allocation8 + $0x1a0] sm:$0xff]
    %v1916 = vld [vmem:[#allocation8 + $0x1a8] sm:$0xff]
    %v1917 = vld [vmem:[#allocation8 + $0x1b0] sm:$0xff]
    %v1918 = vld [vmem:[#allocation8 + $0x1b8] sm:$0xff]
    %v1919 = vld [vmem:[#allocation8 + $0x1c0] sm:$0xff]
    %v1920 = vld [vmem:[#allocation8 + $0x1c8] sm:$0xff]
    %v1921 = vld [vmem:[#allocation8 + $0x1d0] sm:$0xff]
    %v1922 = vld [vmem:[#allocation8 + $0x1d8] sm:$0xff]
    %v1923 = vld [vmem:[#allocation8 + $0x1e0] sm:$0xff]
    %v1924 = vld [vmem:[#allocation8 + $0x1e8] sm:$0xff]
    %v1925 = vld [vmem:[#allocation8 + $0x1f0] sm:$0xff]
    %v1926 = vld [vmem:[#allocation8 + $0x1f8] sm:$0xff]
    %v1927 = vld [vmem:[#allocation11] sm:$0xf]
    %v1929 = vlaneseq
    %v1930 = vshrl.u32 %v1929, 7
    %v1931 = vsub.s32 0, %v1930
    %v1932 = vrot.slane %v1927, %v1931
    %v1933 = vlaneseq
    %v1934 = vshrl.u32 %v1933, 7
    %v1935 = vsub.s32 1, %v1934
    %v1936 = vrot.slane %v1927, %v1935
    %v1937 = vlaneseq
    %v1938 = vshrl.u32 %v1937, 7
    %v1939 = vsub.s32 2, %v1938
    %v1940 = vrot.slane %v1927, %v1939
    %v1941 = vlaneseq
    %v1942 = vshrl.u32 %v1941, 7
    %v1943 = vsub.s32 3, %v1942
    %v1944 = vrot.slane %v1927, %v1943
    %1949 = vmatprep.subr.mxu0 %v1864
    %1950 = vmatpush1.msra.mxu0 %v1863
    %1951 = vmatprep.subr.mxu0 %v1868
    %1952 = vmatpush1.msra.mxu0 %v1867
    %1953 = vmatprep.subr.mxu0 %v1872
    %1954 = vmatpush1.msra.mxu0 %v1871
    %1955 = vmatprep.subr.mxu0 %v1876
    %1956 = vmatpush1.msra.mxu0 %v1875
    %1957 = vmatprep.subr.mxu0 %v1880
    %1958 = vmatpush1.msra.mxu0 %v1879
    %1959 = vmatprep.subr.mxu0 %v1884
    %1960 = vmatpush1.msra.mxu0 %v1883
    %1961 = vmatprep.subr.mxu0 %v1888
    %1962 = vmatpush1.msra.mxu0 %v1887
    %1963 = vmatprep.subr.mxu0 %v1892
    %1964 = vmatpush1.msra.mxu0 %v1891
    %1965 = vmatprep.subr.mxu0 %v1896
    %1966 = vmatpush1.msra.mxu0 %v1895
    %1967 = vmatprep.subr.mxu0 %v1900
    %1968 = vmatpush1.msra.mxu0 %v1899
    %1969 = vmatprep.subr.mxu0 %v1904
    %1970 = vmatpush1.msra.mxu0 %v1903
    %1971 = vmatprep.subr.mxu0 %v1908
    %1972 = vmatpush1.msra.mxu0 %v1907
    %1973 = vmatprep.subr.mxu0 %v1912
    %1974 = vmatpush1.msra.mxu0 %v1911
    %1975 = vmatprep.subr.mxu0 %v1916
    %1976 = vmatpush1.msra.mxu0 %v1915
    %1977 = vmatprep.subr.mxu0 %v1920
    %1978 = vmatpush1.msra.mxu0 %v1919
    %1979 = vmatprep.subr.mxu0 %v1924
    %1980 = vmatpush1.msra.mxu0 %v1923
    %1981 = vmatprep.subr.mxu0 0.0
    %1982 = vmatpush1.msra.mxu0 0.0
    %1983 = vmatprep.subr.mxu0 0.0
    %1984 = vmatpush1.msra.mxu0 0.0
    %1985 = vmatprep.subr.mxu0 0.0
    %1986 = vmatpush1.msra.mxu0 0.0
    %1987 = vmatprep.subr.mxu0 0.0
    %1988 = vmatpush1.msra.mxu0 0.0
    %1989 = vmatprep.subr.mxu0 0.0
    %1990 = vmatpush1.msra.mxu0 0.0
    %1991 = vmatprep.subr.mxu0 0.0
    %1992 = vmatpush1.msra.mxu0 0.0
    %1993 = vmatprep.subr.mxu0 0.0
    %1994 = vmatpush1.msra.mxu0 0.0
    %1995 = vmatprep.subr.mxu0 0.0
    %1996 = vmatpush1.msra.mxu0 0.0
    %1997 = vmatprep.subr.mxu0 0.0
    %1998 = vmatpush1.msra.mxu0 0.0
    %1999 = vmatprep.subr.mxu0 0.0
    %2000 = vmatpush1.msra.mxu0 0.0
    %2001 = vmatprep.subr.mxu0 0.0
    %2002 = vmatpush1.msra.mxu0 0.0
    %2003 = vmatprep.subr.mxu0 0.0
    %2004 = vmatpush1.msra.mxu0 0.0
    %2005 = vmatprep.subr.mxu0 0.0
    %2006 = vmatpush1.msra.mxu0 0.0
    %2007 = vmatprep.subr.mxu0 0.0
    %2008 = vmatpush1.msra.mxu0 0.0
    %2009 = vmatprep.subr.mxu0 0.0
    %2010 = vmatpush1.msra.mxu0 0.0
    %2011 = vmatprep.subr.mxu0 0.0
    %2012 = vmatpush1.msra.mxu0 0.0
    %2013 = vmatprep.mubr.f32.mxu0 0.0
    %2014 = vmatmul.mubr.f32.gmra.mrb[0].mxu0 %v1855
    %v2015 = vpop.f32.mrb[0].mxu0
    %v2016 = vadd.f32 %v1932, %v2015
    %v2017 = vpop.f32.mrb[0].mxu0
    %v2018 = vadd.f32 %v1936, %v2017
    %2019 = vmatprep.mubr.f32.mxu0 0.0
    %2020 = vmatmul.mubr.f32.gmra.mrb[0].mxu0 %v1856
    %v2021 = vpop.f32.mrb[0].mxu0
    %v2022 = vadd.f32 %v1932, %v2021
    %v2023 = vpop.f32.mrb[0].mxu0
    %v2024 = vadd.f32 %v1936, %v2023
    %2025 = vmatprep.mubr.f32.mxu0 0.0
    %2026 = vmatmul.mubr.f32.gmra.mrb[0].mxu0 %v1857
    %v2027 = vpop.f32.mrb[0].mxu0
    %v2028 = vadd.f32 %v1932, %v2027
    %v2029 = vpop.f32.mrb[0].mxu0
    %v2030 = vadd.f32 %v1936, %v2029
    %2031 = vmatprep.mubr.f32.mxu0 0.0
    %2032 = vmatmul.mubr.f32.gmra.mrb[0].mxu0 %v1858
    %v2033 = vpop.f32.mrb[0].mxu0
    %v2034 = vadd.f32 %v1932, %v2033
    %v2035 = vpop.f32.mrb[0].mxu0
    %v2036 = vadd.f32 %v1936, %v2035
    %2037 = vmatprep.mubr.f32.mxu0 0.0
    %2038 = vmatmul.mubr.f32.gmra.mrb[0].mxu0 %v1859
    %v2039 = vpop.f32.mrb[0].mxu0
    %v2040 = vadd.f32 %v1932, %v2039
    %v2041 = vpop.f32.mrb[0].mxu0
    %v2042 = vadd.f32 %v1936, %v2041
    %2043 = vmatprep.mubr.f32.mxu0 0.0
    %2044 = vmatmul.mubr.f32.gmra.mrb[0].mxu0 %v1860
    %v2045 = vpop.f32.mrb[0].mxu0
    %v2046 = vadd.f32 %v1932, %v2045
    %v2047 = vpop.f32.mrb[0].mxu0
    %v2048 = vadd.f32 %v1936, %v2047
    %2049 = vmatprep.mubr.f32.mxu0 0.0
    %2050 = vmatmul.mubr.f32.gmra.mrb[0].mxu0 %v1861
    %v2051 = vpop.f32.mrb[0].mxu0
    %v2052 = vadd.f32 %v1932, %v2051
    %v2053 = vpop.f32.mrb[0].mxu0
    %v2054 = vadd.f32 %v1936, %v2053
    %2055 = vmatprep.mubr.f32.mxu0 0.0
    %2056 = vmatmul.mubr.f32.gmra.mrb[0].mxu0 %v1862
    %v2057 = vpop.f32.mrb[0].mxu0
    %v2058 = vadd.f32 %v1932, %v2057
    %v2059 = vpop.f32.mrb[0].mxu0
    %v2060 = vadd.f32 %v1936, %v2059
    %2061 = vdwg.mxu0
    %2062 = vmatprep.subr.mxu0 %v1866
    %2063 = vmatpush1.msra.mxu0 %v1865
    %2064 = vmatprep.subr.mxu0 %v1870
    %2065 = vmatpush1.msra.mxu0 %v1869
    %2066 = vmatprep.subr.mxu0 %v1874
    %2067 = vmatpush1.msra.mxu0 %v1873
    %2068 = vmatprep.subr.mxu0 %v1878
    %2069 = vmatpush1.msra.mxu0 %v1877
    %2070 = vmatprep.subr.mxu0 %v1882
    %2071 = vmatpush1.msra.mxu0 %v1881
    %2072 = vmatprep.subr.mxu0 %v1886
    %2073 = vmatpush1.msra.mxu0 %v1885
    %2074 = vmatprep.subr.mxu0 %v1890
    %2075 = vmatpush1.msra.mxu0 %v1889
    %2076 = vmatprep.subr.mxu0 %v1894
    %2077 = vmatpush1.msra.mxu0 %v1893
    %2078 = vmatprep.subr.mxu0 %v1898
    %2079 = vmatpush1.msra.mxu0 %v1897
    %2080 = vmatprep.subr.mxu0 %v1902
    %2081 = vmatpush1.msra.mxu0 %v1901
    %2082 = vmatprep.subr.mxu0 %v1906
    %2083 = vmatpush1.msra.mxu0 %v1905
    %2084 = vmatprep.subr.mxu0 %v1910
    %2085 = vmatpush1.msra.mxu0 %v1909
    %2086 = vmatprep.subr.mxu0 %v1914
    %2087 = vmatpush1.msra.mxu0 %v1913
    %2088 = vmatprep.subr.mxu0 %v1918
    %2089 = vmatpush1.msra.mxu0 %v1917
    %2090 = vmatprep.subr.mxu0 %v1922
    %2091 = vmatpush1.msra.mxu0 %v1921
    %2092 = vmatprep.subr.mxu0 %v1926
    %2093 = vmatpush1.msra.mxu0 %v1925
    %2094 = vmatprep.subr.mxu0 0.0
    %2095 = vmatpush1.msra.mxu0 0.0
    %2096 = vmatprep.subr.mxu0 0.0
    %2097 = vmatpush1.msra.mxu0 0.0
    %2098 = vmatprep.subr.mxu0 0.0
    %2099 = vmatpush1.msra.mxu0 0.0
    %2100 = vmatprep.subr.mxu0 0.0
    %2101 = vmatpush1.msra.mxu0 0.0
    %2102 = vmatprep.subr.mxu0 0.0
    %2103 = vmatpush1.msra.mxu0 0.0
    %2104 = vmatprep.subr.mxu0 0.0
    %2105 = vmatpush1.msra.mxu0 0.0
    %2106 = vmatprep.subr.mxu0 0.0
    %2107 = vmatpush1.msra.mxu0 0.0
    %2108 = vmatprep.subr.mxu0 0.0
    %2109 = vmatpush1.msra.mxu0 0.0
    %2110 = vmatprep.subr.mxu0 0.0
    %2111 = vmatpush1.msra.mxu0 0.0
    %2112 = vmatprep.subr.mxu0 0.0
    %2113 = vmatpush1.msra.mxu0 0.0
    %2114 = vmatprep.subr.mxu0 0.0
    %2115 = vmatpush1.msra.mxu0 0.0
    %2116 = vmatprep.subr.mxu0 0.0
    %2117 = vmatpush1.msra.mxu0 0.0
    %2118 = vmatprep.subr.mxu0 0.0
    %2119 = vmatpush1.msra.mxu0 0.0
    %2120 = vmatprep.subr.mxu0 0.0
    %2121 = vmatpush1.msra.mxu0 0.0
    %2122 = vmatprep.subr.mxu0 0.0
    %2123 = vmatpush1.msra.mxu0 0.0
    %2124 = vmatprep.subr.mxu0 0.0
    %2125 = vmatpush1.msra.mxu0 0.0
    %2126 = vmatprep.mubr.f32.mxu0 0.0
    %2127 = vmatmul.mubr.f32.gmra.mrb[0].mxu0 %v1855
    %v2128 = vpop.f32.mrb[0].mxu0
    %v2129 = vadd.f32 %v1940, %v2128
    %v2130 = vpop.f32.mrb[0].mxu0
    %v2131 = vadd.f32 %v1944, %v2130
    %2132 = vmatprep.mubr.f32.mxu0 0.0
    %2133 = vmatmul.mubr.f32.gmra.mrb[0].mxu0 %v1856
    %v2134 = vpop.f32.mrb[0].mxu0
    %v2135 = vadd.f32 %v1940, %v2134
    %v2136 = vpop.f32.mrb[0].mxu0
    %v2137 = vadd.f32 %v1944, %v2136
    %2138 = vmatprep.mubr.f32.mxu0 0.0
    %2139 = vmatmul.mubr.f32.gmra.mrb[0].mxu0 %v1857
    %v2140 = vpop.f32.mrb[0].mxu0
    %v2141 = vadd.f32 %v1940, %v2140
    %v2142 = vpop.f32.mrb[0].mxu0
    %v2143 = vadd.f32 %v1944, %v2142
    %2144 = vmatprep.mubr.f32.mxu0 0.0
    %2145 = vmatmul.mubr.f32.gmra.mrb[0].mxu0 %v1858
    %v2146 = vpop.f32.mrb[0].mxu0
    %v2147 = vadd.f32 %v1940, %v2146
    %v2148 = vpop.f32.mrb[0].mxu0
    %v2149 = vadd.f32 %v1944, %v2148
    %2150 = vmatprep.mubr.f32.mxu0 0.0
    %2151 = vmatmul.mubr.f32.gmra.mrb[0].mxu0 %v1859
    %v2152 = vpop.f32.mrb[0].mxu0
    %v2153 = vadd.f32 %v1940, %v2152
    %v2154 = vpop.f32.mrb[0].mxu0
    %v2155 = vadd.f32 %v1944, %v2154
    %2156 = vmatprep.mubr.f32.mxu0 0.0
    %2157 = vmatmul.mubr.f32.gmra.mrb[0].mxu0 %v1860
    %v2158 = vpop.f32.mrb[0].mxu0
    %v2159 = vadd.f32 %v1940, %v2158
    %v2160 = vpop.f32.mrb[0].mxu0
    %v2161 = vadd.f32 %v1944, %v2160
    %2162 = vmatprep.mubr.f32.mxu0 0.0
    %2163 = vmatmul.mubr.f32.gmra.mrb[0].mxu0 %v1861
    %v2164 = vpop.f32.mrb[0].mxu0
    %v2165 = vadd.f32 %v1940, %v2164
    %v2166 = vpop.f32.mrb[0].mxu0
    %v2167 = vadd.f32 %v1944, %v2166
    %2168 = vmatprep.mubr.f32.mxu0 0.0
    %2169 = vmatmul.mubr.f32.gmra.mrb[0].mxu0 %v1862
    %v2170 = vpop.f32.mrb[0].mxu0
    %v2171 = vadd.f32 %v1940, %v2170
    %v2172 = vpop.f32.mrb[0].mxu0
    %v2173 = vadd.f32 %v1944, %v2172
    %2174 = vdwg.mxu0
    %v2175 = vld [vmem:[#allocation10] sm:$0xff]
    %v2176 = vld [vmem:[#allocation10 + $0x8] sm:$0xff]
    %v2177 = vld [vmem:[#allocation10 + $0x10] sm:$0xff]
    %v2178 = vld [vmem:[#allocation10 + $0x18] sm:$0xff]
    %v2179 = vld [vmem:[#allocation10 + $0x20] sm:$0xff]
    %v2180 = vld [vmem:[#allocation10 + $0x28] sm:$0xff]
    %v2181 = vld [vmem:[#allocation10 + $0x30] sm:$0xff]
    %v2182 = vld [vmem:[#allocation10 + $0x38] sm:$0xff]
    %v2183 = vld [vmem:[#allocation10 + $0x40] sm:$0xff]
    %v2184 = vld [vmem:[#allocation10 + $0x48] sm:$0xff]
    %v2185 = vld [vmem:[#allocation10 + $0x50] sm:$0xff]
    %v2186 = vld [vmem:[#allocation10 + $0x58] sm:$0xff]
    %v2187 = vld [vmem:[#allocation10 + $0x60] sm:$0xff]
    %v2188 = vld [vmem:[#allocation10 + $0x68] sm:$0xff]
    %v2189 = vld [vmem:[#allocation10 + $0x70] sm:$0xff]
    %v2190 = vld [vmem:[#allocation10 + $0x78] sm:$0xff]
    %v2191 = vld [vmem:[#allocation10 + $0x80] sm:$0xff]
    %v2192 = vld [vmem:[#allocation10 + $0x88] sm:$0xff]
    %v2193 = vld [vmem:[#allocation10 + $0x90] sm:$0xff]
    %v2194 = vld [vmem:[#allocation10 + $0x98] sm:$0xff]
    %v2195 = vld [vmem:[#allocation10 + $0xa0] sm:$0xff]
    %v2196 = vld [vmem:[#allocation10 + $0xa8] sm:$0xff]
    %v2197 = vld [vmem:[#allocation10 + $0xb0] sm:$0xff]
    %v2198 = vld [vmem:[#allocation10 + $0xb8] sm:$0xff]
    %v2199 = vld [vmem:[#allocation10 + $0xc0] sm:$0xff]
    %v2200 = vld [vmem:[#allocation10 + $0xc8] sm:$0xff]
    %v2201 = vld [vmem:[#allocation10 + $0xd0] sm:$0xff]
    %v2202 = vld [vmem:[#allocation10 + $0xd8] sm:$0xff]
    %v2203 = vld [vmem:[#allocation10 + $0xe0] sm:$0xff]
    %v2204 = vld [vmem:[#allocation10 + $0xe8] sm:$0xff]
    %v2205 = vld [vmem:[#allocation10 + $0xf0] sm:$0xff]
    %v2206 = vld [vmem:[#allocation10 + $0xf8] sm:$0xff]
    %v2207 = vld [vmem:[#allocation10 + $0x100] sm:$0xff]
    %v2208 = vld [vmem:[#allocation10 + $0x108] sm:$0xff]
    %v2209 = vld [vmem:[#allocation10 + $0x110] sm:$0xff]
    %v2210 = vld [vmem:[#allocation10 + $0x118] sm:$0xff]
    %v2211 = vld [vmem:[#allocation10 + $0x120] sm:$0xff]
    %v2212 = vld [vmem:[#allocation10 + $0x128] sm:$0xff]
    %v2213 = vld [vmem:[#allocation10 + $0x130] sm:$0xff]
    %v2214 = vld [vmem:[#allocation10 + $0x138] sm:$0xff]
    %v2215 = vld [vmem:[#allocation10 + $0x140] sm:$0xff]
    %v2216 = vld [vmem:[#allocation10 + $0x148] sm:$0xff]
    %v2217 = vld [vmem:[#allocation10 + $0x150] sm:$0xff]
    %v2218 = vld [vmem:[#allocation10 + $0x158] sm:$0xff]
    %v2219 = vld [vmem:[#allocation10 + $0x160] sm:$0xff]
    %v2220 = vld [vmem:[#allocation10 + $0x168] sm:$0xff]
    %v2221 = vld [vmem:[#allocation10 + $0x170] sm:$0xff]
    %v2222 = vld [vmem:[#allocation10 + $0x178] sm:$0xff]
    %v2223 = vld [vmem:[#allocation10 + $0x180] sm:$0xff]
    %v2224 = vld [vmem:[#allocation10 + $0x188] sm:$0xff]
    %v2225 = vld [vmem:[#allocation10 + $0x190] sm:$0xff]
    %v2226 = vld [vmem:[#allocation10 + $0x198] sm:$0xff]
    %v2227 = vld [vmem:[#allocation10 + $0x1a0] sm:$0xff]
    %v2228 = vld [vmem:[#allocation10 + $0x1a8] sm:$0xff]
    %v2229 = vld [vmem:[#allocation10 + $0x1b0] sm:$0xff]
    %v2230 = vld [vmem:[#allocation10 + $0x1b8] sm:$0xff]
    %v2231 = vld [vmem:[#allocation10 + $0x1c0] sm:$0xff]
    %v2232 = vld [vmem:[#allocation10 + $0x1c8] sm:$0xff]
    %v2233 = vld [vmem:[#allocation10 + $0x1d0] sm:$0xff]
    %v2234 = vld [vmem:[#allocation10 + $0x1d8] sm:$0xff]
    %v2235 = vld [vmem:[#allocation10 + $0x1e0] sm:$0xff]
    %v2236 = vld [vmem:[#allocation10 + $0x1e8] sm:$0xff]
    %v2237 = vld [vmem:[#allocation10 + $0x1f0] sm:$0xff]
    %v2238 = vld [vmem:[#allocation10 + $0x1f8] sm:$0xff]
    %2239 = vmatprep.subr.mxu0 %v2176
    %2240 = vmatpush1.msra.mxu0 %v2175
    %2241 = vmatprep.subr.mxu0 %v2180
    %2242 = vmatpush1.msra.mxu0 %v2179
    %2243 = vmatprep.subr.mxu0 %v2184
    %2244 = vmatpush1.msra.mxu0 %v2183
    %2245 = vmatprep.subr.mxu0 %v2188
    %2246 = vmatpush1.msra.mxu0 %v2187
    %2247 = vmatprep.subr.mxu0 %v2192
    %2248 = vmatpush1.msra.mxu0 %v2191
    %2249 = vmatprep.subr.mxu0 %v2196
    %2250 = vmatpush1.msra.mxu0 %v2195
    %2251 = vmatprep.subr.mxu0 %v2200
    %2252 = vmatpush1.msra.mxu0 %v2199
    %2253 = vmatprep.subr.mxu0 %v2204
    %2254 = vmatpush1.msra.mxu0 %v2203
    %2255 = vmatprep.subr.mxu0 %v2208
    %2256 = vmatpush1.msra.mxu0 %v2207
    %2257 = vmatprep.subr.mxu0 %v2212
    %2258 = vmatpush1.msra.mxu0 %v2211
    %2259 = vmatprep.subr.mxu0 %v2216
    %2260 = vmatpush1.msra.mxu0 %v2215
    %2261 = vmatprep.subr.mxu0 %v2220
    %2262 = vmatpush1.msra.mxu0 %v2219
    %2263 = vmatprep.subr.mxu0 %v2224
    %2264 = vmatpush1.msra.mxu0 %v2223
    %2265 = vmatprep.subr.mxu0 %v2228
    %2266 = vmatpush1.msra.mxu0 %v2227
    %2267 = vmatprep.subr.mxu0 %v2232
    %2268 = vmatpush1.msra.mxu0 %v2231
    %2269 = vmatprep.subr.mxu0 %v2236
    %2270 = vmatpush1.msra.mxu0 %v2235
    %2271 = vmatprep.subr.mxu0 0.0
    %2272 = vmatpush1.msra.mxu0 0.0
    %2273 = vmatprep.subr.mxu0 0.0
    %2274 = vmatpush1.msra.mxu0 0.0
    %2275 = vmatprep.subr.mxu0 0.0
    %2276 = vmatpush1.msra.mxu0 0.0
    %2277 = vmatprep.subr.mxu0 0.0
    %2278 = vmatpush1.msra.mxu0 0.0
    %2279 = vmatprep.subr.mxu0 0.0
    %2280 = vmatpush1.msra.mxu0 0.0
    %2281 = vmatprep.subr.mxu0 0.0
    %2282 = vmatpush1.msra.mxu0 0.0
    %2283 = vmatprep.subr.mxu0 0.0
    %2284 = vmatpush1.msra.mxu0 0.0
    %2285 = vmatprep.subr.mxu0 0.0
    %2286 = vmatpush1.msra.mxu0 0.0
    %2287 = vmatprep.subr.mxu0 0.0
    %2288 = vmatpush1.msra.mxu0 0.0
    %2289 = vmatprep.subr.mxu0 0.0
    %2290 = vmatpush1.msra.mxu0 0.0
    %2291 = vmatprep.subr.mxu0 0.0
    %2292 = vmatpush1.msra.mxu0 0.0
    %2293 = vmatprep.subr.mxu0 0.0
    %2294 = vmatpush1.msra.mxu0 0.0
    %2295 = vmatprep.subr.mxu0 0.0
    %2296 = vmatpush1.msra.mxu0 0.0
    %2297 = vmatprep.subr.mxu0 0.0
    %2298 = vmatpush1.msra.mxu0 0.0
    %2299 = vmatprep.subr.mxu0 0.0
    %2300 = vmatpush1.msra.mxu0 0.0
    %2301 = vmatprep.subr.mxu0 0.0
    %2302 = vmatpush1.msra.mxu0 0.0
    %2303 = vmatprep.mubr.f32.mxu0 0.0
    %2304 = vmatmul.mubr.f32.gmra.mrb[0].mxu0 0.0
    %v2305 = vpop.f32.mrb[0].mxu0
    %v2306 = vadd.f32 0.0, %v2305
    %v2307 = vpop.f32.mrb[0].mxu0
    %v2308 = vadd.f32 0.0, %v2307
    %2309 = vdwg.mxu0
    %2310 = vmatprep.subr.mxu0 %v2178
    %2311 = vmatpush1.msra.mxu0 %v2177
    %2312 = vmatprep.subr.mxu0 %v2182
    %2313 = vmatpush1.msra.mxu0 %v2181
    %2314 = vmatprep.subr.mxu0 %v2186
    %2315 = vmatpush1.msra.mxu0 %v2185
    %2316 = vmatprep.subr.mxu0 %v2190
    %2317 = vmatpush1.msra.mxu0 %v2189
    %2318 = vmatprep.subr.mxu0 %v2194
    %2319 = vmatpush1.msra.mxu0 %v2193
    %2320 = vmatprep.subr.mxu0 %v2198
    %2321 = vmatpush1.msra.mxu0 %v2197
    %2322 = vmatprep.subr.mxu0 %v2202
    %2323 = vmatpush1.msra.mxu0 %v2201
    %2324 = vmatprep.subr.mxu0 %v2206
    %2325 = vmatpush1.msra.mxu0 %v2205
    %2326 = vmatprep.subr.mxu0 %v2210
    %2327 = vmatpush1.msra.mxu0 %v2209
    %2328 = vmatprep.subr.mxu0 %v2214
    %2329 = vmatpush1.msra.mxu0 %v2213
    %2330 = vmatprep.subr.mxu0 %v2218
    %2331 = vmatpush1.msra.mxu0 %v2217
    %2332 = vmatprep.subr.mxu0 %v2222
    %2333 = vmatpush1.msra.mxu0 %v2221
    %2334 = vmatprep.subr.mxu0 %v2226
    %2335 = vmatpush1.msra.mxu0 %v2225
    %2336 = vmatprep.subr.mxu0 %v2230
    %2337 = vmatpush1.msra.mxu0 %v2229
    %2338 = vmatprep.subr.mxu0 %v2234
    %2339 = vmatpush1.msra.mxu0 %v2233
    %2340 = vmatprep.subr.mxu0 %v2238
    %2341 = vmatpush1.msra.mxu0 %v2237
    %2342 = vmatprep.subr.mxu0 0.0
    %2343 = vmatpush1.msra.mxu0 0.0
    %2344 = vmatprep.subr.mxu0 0.0
    %2345 = vmatpush1.msra.mxu0 0.0
    %2346 = vmatprep.subr.mxu0 0.0
    %2347 = vmatpush1.msra.mxu0 0.0
    %2348 = vmatprep.subr.mxu0 0.0
    %2349 = vmatpush1.msra.mxu0 0.0
    %2350 = vmatprep.subr.mxu0 0.0
    %2351 = vmatpush1.msra.mxu0 0.0
    %2352 = vmatprep.subr.mxu0 0.0
    %2353 = vmatpush1.msra.mxu0 0.0
    %2354 = vmatprep.subr.mxu0 0.0
    %2355 = vmatpush1.msra.mxu0 0.0
    %2356 = vmatprep.subr.mxu0 0.0
    %2357 = vmatpush1.msra.mxu0 0.0
    %2358 = vmatprep.subr.mxu0 0.0
    %2359 = vmatpush1.msra.mxu0 0.0
    %2360 = vmatprep.subr.mxu0 0.0
    %2361 = vmatpush1.msra.mxu0 0.0
    %2362 = vmatprep.subr.mxu0 0.0
    %2363 = vmatpush1.msra.mxu0 0.0
    %2364 = vmatprep.subr.mxu0 0.0
    %2365 = vmatpush1.msra.mxu0 0.0
    %2366 = vmatprep.subr.mxu0 0.0
    %2367 = vmatpush1.msra.mxu0 0.0
    %2368 = vmatprep.subr.mxu0 0.0
    %2369 = vmatpush1.msra.mxu0 0.0
    %2370 = vmatprep.subr.mxu0 0.0
    %2371 = vmatpush1.msra.mxu0 0.0
    %2372 = vmatprep.subr.mxu0 0.0
    %2373 = vmatpush1.msra.mxu0 0.0
    %2374 = vmatprep.mubr.f32.mxu0 0.0
    %2375 = vmatmul.mubr.f32.gmra.mrb[0].mxu0 0.0
    %v2376 = vpop.f32.mrb[0].mxu0
    %v2377 = vadd.f32 0.0, %v2376
    %v2378 = vpop.f32.mrb[0].mxu0
    %v2379 = vadd.f32 0.0, %v2378
    %2380 = vdwg.mxu0
    %v2381 = vadd.f32 %v2016, %v2306
    %v2382 = vadd.f32 %v2018, %v2308
    %v2383 = vadd.f32 %v2129, %v2377
    %v2384 = vadd.f32 %v2131, %v2379
    %v2385 = vxor.u32 %v2381, 2147483648
    %v2386 = vmul.f32 %v2385, 1.442695
    %v2387 = vpow.pop %v2386
    %v2388 = vadd.f32 %v2387, 1.0
    %v2389 = vrcp.pop %v2388
    %v2390 = vmul.f32 1.0, %v2389
    %v2391 = vxor.u32 %v2382, 2147483648
    %v2392 = vmul.f32 %v2391, 1.442695
    %v2393 = vpow.pop %v2392
    %v2394 = vadd.f32 %v2393, 1.0
    %v2395 = vrcp.pop %v2394
    %v2396 = vmul.f32 1.0, %v2395
    %v2397 = vtanh.pop %v2383
    %v2398 = vxor.u32 %v2384, 2147483648
    %v2399 = vmul.f32 %v2398, 1.442695
    %v2400 = vpow.pop %v2399
    %v2401 = vadd.f32 %v2400, 1.0
    %v2402 = vrcp.pop %v2401
    %v2403 = vmul.f32 1.0, %v2402
    %v2404 = vmul.f32 %v2396, 0.0
    %v2405 = vmul.f32 %v2390, %v2397
    %v2406 = vadd.f32 %v2404, %v2405
    %v2407 = vtanh.pop %v2406
    %v2408 = vmul.f32 %v2403, %v2407
    %2409 = vmatprep.subr.mxu0 %v2176
    %2410 = vmatpush1.msra.mxu0 %v2175
    %2411 = vmatprep.subr.mxu0 %v2180
    %2412 = vmatpush1.msra.mxu0 %v2179
    %2413 = vmatprep.subr.mxu0 %v2184
    %2414 = vmatpush1.msra.mxu0 %v2183
    %2415 = vmatprep.subr.mxu0 %v2188
    %2416 = vmatpush1.msra.mxu0 %v2187
    %2417 = vmatprep.subr.mxu0 %v2192
    %2418 = vmatpush1.msra.mxu0 %v2191
    %2419 = vmatprep.subr.mxu0 %v2196
    %2420 = vmatpush1.msra.mxu0 %v2195
    %2421 = vmatprep.subr.mxu0 %v2200
    %2422 = vmatpush1.msra.mxu0 %v2199
    %2423 = vmatprep.subr.mxu0 %v2204
    %2424 = vmatpush1.msra.mxu0 %v2203
    %2425 = vmatprep.subr.mxu0 %v2208
    %2426 = vmatpush1.msra.mxu0 %v2207
    %2427 = vmatprep.subr.mxu0 %v2212
    %2428 = vmatpush1.msra.mxu0 %v2211
    %2429 = vmatprep.subr.mxu0 %v2216
    %2430 = vmatpush1.msra.mxu0 %v2215
    %2431 = vmatprep.subr.mxu0 %v2220
    %2432 = vmatpush1.msra.mxu0 %v2219
    %2433 = vmatprep.subr.mxu0 %v2224
    %2434 = vmatpush1.msra.mxu0 %v2223
    %2435 = vmatprep.subr.mxu0 %v2228
    %2436 = vmatpush1.msra.mxu0 %v2227
    %2437 = vmatprep.subr.mxu0 %v2232
    %2438 = vmatpush1.msra.mxu0 %v2231
    %2439 = vmatprep.subr.mxu0 %v2236
    %2440 = vmatpush1.msra.mxu0 %v2235
    %2441 = vmatprep.subr.mxu0 0.0
    %2442 = vmatpush1.msra.mxu0 0.0
    %2443 = vmatprep.subr.mxu0 0.0
    %2444 = vmatpush1.msra.mxu0 0.0
    %2445 = vmatprep.subr.mxu0 0.0
    %2446 = vmatpush1.msra.mxu0 0.0
    %2447 = vmatprep.subr.mxu0 0.0
    %2448 = vmatpush1.msra.mxu0 0.0
    %2449 = vmatprep.subr.mxu0 0.0
    %2450 = vmatpush1.msra.mxu0 0.0
    %2451 = vmatprep.subr.mxu0 0.0
    %2452 = vmatpush1.msra.mxu0 0.0
    %2453 = vmatprep.subr.mxu0 0.0
    %2454 = vmatpush1.msra.mxu0 0.0
    %2455 = vmatprep.subr.mxu0 0.0
    %2456 = vmatpush1.msra.mxu0 0.0
    %2457 = vmatprep.subr.mxu0 0.0
    %2458 = vmatpush1.msra.mxu0 0.0
    %2459 = vmatprep.subr.mxu0 0.0
    %2460 = vmatpush1.msra.mxu0 0.0
    %2461 = vmatprep.subr.mxu0 0.0
    %2462 = vmatpush1.msra.mxu0 0.0
    %2463 = vmatprep.subr.mxu0 0.0
    %2464 = vmatpush1.msra.mxu0 0.0
    %2465 = vmatprep.subr.mxu0 0.0
    %2466 = vmatpush1.msra.mxu0 0.0
    %2467 = vmatprep.subr.mxu0 0.0
    %2468 = vmatpush1.msra.mxu0 0.0
    %2469 = vmatprep.subr.mxu0 0.0
    %2470 = vmatpush1.msra.mxu0 0.0
    %2471 = vmatprep.subr.mxu0 0.0
    %2472 = vmatpush1.msra.mxu0 0.0
    %2473 = vmatprep.mubr.f32.mxu0 0.0
    %2474 = vmatmul.mubr.f32.gmra.mrb[0].mxu0 %v2408
    %v2475 = vpop.f32.mrb[0].mxu0
    %v2476 = vadd.f32 0.0, %v2475
    %v2477 = vpop.f32.mrb[0].mxu0
    %v2478 = vadd.f32 0.0, %v2477
    %2479 = vdwg.mxu0
    %2480 = vmatprep.subr.mxu0 %v2178
    %2481 = vmatpush1.msra.mxu0 %v2177
    %2482 = vmatprep.subr.mxu0 %v2182
    %2483 = vmatpush1.msra.mxu0 %v2181
    %2484 = vmatprep.subr.mxu0 %v2186
    %2485 = vmatpush1.msra.mxu0 %v2185
    %2486 = vmatprep.subr.mxu0 %v2190
    %2487 = vmatpush1.msra.mxu0 %v2189
    %2488 = vmatprep.subr.mxu0 %v2194
    %2489 = vmatpush1.msra.mxu0 %v2193
    %2490 = vmatprep.subr.mxu0 %v2198
    %2491 = vmatpush1.msra.mxu0 %v2197
    %2492 = vmatprep.subr.mxu0 %v2202
    %2493 = vmatpush1.msra.mxu0 %v2201
    %2494 = vmatprep.subr.mxu0 %v2206
    %2495 = vmatpush1.msra.mxu0 %v2205
    %2496 = vmatprep.subr.mxu0 %v2210
    %2497 = vmatpush1.msra.mxu0 %v2209
    %2498 = vmatprep.subr.mxu0 %v2214
    %2499 = vmatpush1.msra.mxu0 %v2213
    %2500 = vmatprep.subr.mxu0 %v2218
    %2501 = vmatpush1.msra.mxu0 %v2217
    %2502 = vmatprep.subr.mxu0 %v2222
    %2503 = vmatpush1.msra.mxu0 %v2221
    %2504 = vmatprep.subr.mxu0 %v2226
    %2505 = vmatpush1.msra.mxu0 %v2225
    %2506 = vmatprep.subr.mxu0 %v2230
    %2507 = vmatpush1.msra.mxu0 %v2229
    %2508 = vmatprep.subr.mxu0 %v2234
    %2509 = vmatpush1.msra.mxu0 %v2233
    %2510 = vmatprep.subr.mxu0 %v2238
    %2511 = vmatpush1.msra.mxu0 %v2237
    %2512 = vmatprep.subr.mxu0 0.0
    %2513 = vmatpush1.msra.mxu0 0.0
    %2514 = vmatprep.subr.mxu0 0.0
    %2515 = vmatpush1.msra.mxu0 0.0
    %2516 = vmatprep.subr.mxu0 0.0
    %2517 = vmatpush1.msra.mxu0 0.0
    %2518 = vmatprep.subr.mxu0 0.0
    %2519 = vmatpush1.msra.mxu0 0.0
    %2520 = vmatprep.subr.mxu0 0.0
    %2521 = vmatpush1.msra.mxu0 0.0
    %2522 = vmatprep.subr.mxu0 0.0
    %2523 = vmatpush1.msra.mxu0 0.0
    %2524 = vmatprep.subr.mxu0 0.0
    %2525 = vmatpush1.msra.mxu0 0.0
    %2526 = vmatprep.subr.mxu0 0.0
    %2527 = vmatpush1.msra.mxu0 0.0
    %2528 = vmatprep.subr.mxu0 0.0
    %2529 = vmatpush1.msra.mxu0 0.0
    %2530 = vmatprep.subr.mxu0 0.0
    %2531 = vmatpush1.msra.mxu0 0.0
    %2532 = vmatprep.subr.mxu0 0.0
    %2533 = vmatpush1.msra.mxu0 0.0
    %2534 = vmatprep.subr.mxu0 0.0
    %2535 = vmatpush1.msra.mxu0 0.0
    %2536 = vmatprep.subr.mxu0 0.0
    %2537 = vmatpush1.msra.mxu0 0.0
    %2538 = vmatprep.subr.mxu0 0.0
    %2539 = vmatpush1.msra.mxu0 0.0
    %2540 = vmatprep.subr.mxu0 0.0
    %2541 = vmatpush1.msra.mxu0 0.0
    %2542 = vmatprep.subr.mxu0 0.0
    %2543 = vmatpush1.msra.mxu0 0.0
    %2544 = vmatprep.mubr.f32.mxu0 0.0
    %2545 = vmatmul.mubr.f32.gmra.mrb[0].mxu0 %v2408
    %v2546 = vpop.f32.mrb[0].mxu0
    %v2547 = vadd.f32 0.0, %v2546
    %v2548 = vpop.f32.mrb[0].mxu0
    %v2549 = vadd.f32 0.0, %v2548
    %2550 = vdwg.mxu0
    %v2551 = vadd.f32 %v2022, %v2476
    %v2552 = vadd.f32 %v2024, %v2478
    %v2553 = vadd.f32 %v2135, %v2547
    %v2554 = vadd.f32 %v2137, %v2549
    %v2555 = vxor.u32 %v2551, 2147483648
    %v2556 = vmul.f32 %v2555, 1.442695
    %v2557 = vpow.pop %v2556
    %v2558 = vadd.f32 %v2557, 1.0
    %v2559 = vrcp.pop %v2558
    %v2560 = vmul.f32 1.0, %v2559
    %v2561 = vxor.u32 %v2552, 2147483648
    %v2562 = vmul.f32 %v2561, 1.442695
    %v2563 = vpow.pop %v2562
    %v2564 = vadd.f32 %v2563, 1.0
    %v2565 = vrcp.pop %v2564
    %v2566 = vmul.f32 1.0, %v2565
    %v2567 = vtanh.pop %v2553
    %v2568 = vxor.u32 %v2554, 2147483648
    %v2569 = vmul.f32 %v2568, 1.442695
    %v2570 = vpow.pop %v2569
    %v2571 = vadd.f32 %v2570, 1.0
    %v2572 = vrcp.pop %v2571
    %v2573 = vmul.f32 1.0, %v2572
    %v2574 = vmul.f32 %v2566, %v2406
    %v2575 = vmul.f32 %v2560, %v2567
    %v2576 = vadd.f32 %v2574, %v2575
    %v2577 = vtanh.pop %v2576
    %v2578 = vmul.f32 %v2573, %v2577
    %2579 = vmatprep.subr.mxu0 %v2176
    %2580 = vmatpush1.msra.mxu0 %v2175
    %2581 = vmatprep.subr.mxu0 %v2180
    %2582 = vmatpush1.msra.mxu0 %v2179
    %2583 = vmatprep.subr.mxu0 %v2184
    %2584 = vmatpush1.msra.mxu0 %v2183
    %2585 = vmatprep.subr.mxu0 %v2188
    %2586 = vmatpush1.msra.mxu0 %v2187
    %2587 = vmatprep.subr.mxu0 %v2192
    %2588 = vmatpush1.msra.mxu0 %v2191
    %2589 = vmatprep.subr.mxu0 %v2196
    %2590 = vmatpush1.msra.mxu0 %v2195
    %2591 = vmatprep.subr.mxu0 %v2200
    %2592 = vmatpush1.msra.mxu0 %v2199
    %2593 = vmatprep.subr.mxu0 %v2204
    %2594 = vmatpush1.msra.mxu0 %v2203
    %2595 = vmatprep.subr.mxu0 %v2208
    %2596 = vmatpush1.msra.mxu0 %v2207
    %2597 = vmatprep.subr.mxu0 %v2212
    %2598 = vmatpush1.msra.mxu0 %v2211
    %2599 = vmatprep.subr.mxu0 %v2216
    %2600 = vmatpush1.msra.mxu0 %v2215
    %2601 = vmatprep.subr.mxu0 %v2220
    %2602 = vmatpush1.msra.mxu0 %v2219
    %2603 = vmatprep.subr.mxu0 %v2224
    %2604 = vmatpush1.msra.mxu0 %v2223
    %2605 = vmatprep.subr.mxu0 %v2228
    %2606 = vmatpush1.msra.mxu0 %v2227
    %2607 = vmatprep.subr.mxu0 %v2232
    %2608 = vmatpush1.msra.mxu0 %v2231
    %2609 = vmatprep.subr.mxu0 %v2236
    %2610 = vmatpush1.msra.mxu0 %v2235
    %2611 = vmatprep.subr.mxu0 0.0
    %2612 = vmatpush1.msra.mxu0 0.0
    %2613 = vmatprep.subr.mxu0 0.0
    %2614 = vmatpush1.msra.mxu0 0.0
    %2615 = vmatprep.subr.mxu0 0.0
    %2616 = vmatpush1.msra.mxu0 0.0
    %2617 = vmatprep.subr.mxu0 0.0
    %2618 = vmatpush1.msra.mxu0 0.0
    %2619 = vmatprep.subr.mxu0 0.0
    %2620 = vmatpush1.msra.mxu0 0.0
    %2621 = vmatprep.subr.mxu0 0.0
    %2622 = vmatpush1.msra.mxu0 0.0
    %2623 = vmatprep.subr.mxu0 0.0
    %2624 = vmatpush1.msra.mxu0 0.0
    %2625 = vmatprep.subr.mxu0 0.0
    %2626 = vmatpush1.msra.mxu0 0.0
    %2627 = vmatprep.subr.mxu0 0.0
    %2628 = vmatpush1.msra.mxu0 0.0
    %2629 = vmatprep.subr.mxu0 0.0
    %2630 = vmatpush1.msra.mxu0 0.0
    %2631 = vmatprep.subr.mxu0 0.0
    %2632 = vmatpush1.msra.mxu0 0.0
    %2633 = vmatprep.subr.mxu0 0.0
    %2634 = vmatpush1.msra.mxu0 0.0
    %2635 = vmatprep.subr.mxu0 0.0
    %2636 = vmatpush1.msra.mxu0 0.0
    %2637 = vmatprep.subr.mxu0 0.0
    %2638 = vmatpush1.msra.mxu0 0.0
    %2639 = vmatprep.subr.mxu0 0.0
    %2640 = vmatpush1.msra.mxu0 0.0
    %2641 = vmatprep.subr.mxu0 0.0
    %2642 = vmatpush1.msra.mxu0 0.0
    %2643 = vmatprep.mubr.f32.mxu0 0.0
    %2644 = vmatmul.mubr.f32.gmra.mrb[0].mxu0 %v2578
    %v2645 = vpop.f32.mrb[0].mxu0
    %v2646 = vadd.f32 0.0, %v2645
    %v2647 = vpop.f32.mrb[0].mxu0
    %v2648 = vadd.f32 0.0, %v2647
    %2649 = vdwg.mxu0
    %2650 = vmatprep.subr.mxu0 %v2178
    %2651 = vmatpush1.msra.mxu0 %v2177
    %2652 = vmatprep.subr.mxu0 %v2182
    %2653 = vmatpush1.msra.mxu0 %v2181
    %2654 = vmatprep.subr.mxu0 %v2186
    %2655 = vmatpush1.msra.mxu0 %v2185
    %2656 = vmatprep.subr.mxu0 %v2190
    %2657 = vmatpush1.msra.mxu0 %v2189
    %2658 = vmatprep.subr.mxu0 %v2194
    %2659 = vmatpush1.msra.mxu0 %v2193
    %2660 = vmatprep.subr.mxu0 %v2198
    %2661 = vmatpush1.msra.mxu0 %v2197
    %2662 = vmatprep.subr.mxu0 %v2202
    %2663 = vmatpush1.msra.mxu0 %v2201
    %2664 = vmatprep.subr.mxu0 %v2206
    %2665 = vmatpush1.msra.mxu0 %v2205
    %2666 = vmatprep.subr.mxu0 %v2210
    %2667 = vmatpush1.msra.mxu0 %v2209
    %2668 = vmatprep.subr.mxu0 %v2214
    %2669 = vmatpush1.msra.mxu0 %v2213
    %2670 = vmatprep.subr.mxu0 %v2218
    %2671 = vmatpush1.msra.mxu0 %v2217
    %2672 = vmatprep.subr.mxu0 %v2222
    %2673 = vmatpush1.msra.mxu0 %v2221
    %2674 = vmatprep.subr.mxu0 %v2226
    %2675 = vmatpush1.msra.mxu0 %v2225
    %2676 = vmatprep.subr.mxu0 %v2230
    %2677 = vmatpush1.msra.mxu0 %v2229
    %2678 = vmatprep.subr.mxu0 %v2234
    %2679 = vmatpush1.msra.mxu0 %v2233
    %2680 = vmatprep.subr.mxu0 %v2238
    %2681 = vmatpush1.msra.mxu0 %v2237
    %2682 = vmatprep.subr.mxu0 0.0
    %2683 = vmatpush1.msra.mxu0 0.0
    %2684 = vmatprep.subr.mxu0 0.0
    %2685 = vmatpush1.msra.mxu0 0.0
    %2686 = vmatprep.subr.mxu0 0.0
    %2687 = vmatpush1.msra.mxu0 0.0
    %2688 = vmatprep.subr.mxu0 0.0
    %2689 = vmatpush1.msra.mxu0 0.0
    %2690 = vmatprep.subr.mxu0 0.0
    %2691 = vmatpush1.msra.mxu0 0.0
    %2692 = vmatprep.subr.mxu0 0.0
    %2693 = vmatpush1.msra.mxu0 0.0
    %2694 = vmatprep.subr.mxu0 0.0
    %2695 = vmatpush1.msra.mxu0 0.0
    %2696 = vmatprep.subr.mxu0 0.0
    %2697 = vmatpush1.msra.mxu0 0.0
    %2698 = vmatprep.subr.mxu0 0.0
    %2699 = vmatpush1.msra.mxu0 0.0
    %2700 = vmatprep.subr.mxu0 0.0
    %2701 = vmatpush1.msra.mxu0 0.0
    %2702 = vmatprep.subr.mxu0 0.0
    %2703 = vmatpush1.msra.mxu0 0.0
    %2704 = vmatprep.subr.mxu0 0.0
    %2705 = vmatpush1.msra.mxu0 0.0
    %2706 = vmatprep.subr.mxu0 0.0
    %2707 = vmatpush1.msra.mxu0 0.0
    %2708 = vmatprep.subr.mxu0 0.0
    %2709 = vmatpush1.msra.mxu0 0.0
    %2710 = vmatprep.subr.mxu0 0.0
    %2711 = vmatpush1.msra.mxu0 0.0
    %2712 = vmatprep.subr.mxu0 0.0
    %2713 = vmatpush1.msra.mxu0 0.0
    %2714 = vmatprep.mubr.f32.mxu0 0.0
    %2715 = vmatmul.mubr.f32.gmra.mrb[0].mxu0 %v2578
    %v2716 = vpop.f32.mrb[0].mxu0
    %v2717 = vadd.f32 0.0, %v2716
    %v2718 = vpop.f32.mrb[0].mxu0
    %v2719 = vadd.f32 0.0, %v2718
    %2720 = vdwg.mxu0
    %v2721 = vadd.f32 %v2028, %v2646
    %v2722 = vadd.f32 %v2030, %v2648
    %v2723 = vadd.f32 %v2141, %v2717
    %v2724 = vadd.f32 %v2143, %v2719
    %v2725 = vxor.u32 %v2721, 2147483648
    %v2726 = vmul.f32 %v2725, 1.442695
    %v2727 = vpow.pop %v2726
    %v2728 = vadd.f32 %v2727, 1.0
    %v2729 = vrcp.pop %v2728
    %v2730 = vmul.f32 1.0, %v2729
    %v2731 = vxor.u32 %v2722, 2147483648
    %v2732 = vmul.f32 %v2731, 1.442695
    %v2733 = vpow.pop %v2732
    %v2734 = vadd.f32 %v2733, 1.0
    %v2735 = vrcp.pop %v2734
    %v2736 = vmul.f32 1.0, %v2735
    %v2737 = vtanh.pop %v2723
    %v2738 = vxor.u32 %v2724, 2147483648
    %v2739 = vmul.f32 %v2738, 1.442695
    %v2740 = vpow.pop %v2739
    %v2741 = vadd.f32 %v2740, 1.0
    %v2742 = vrcp.pop %v2741
    %v2743 = vmul.f32 1.0, %v2742
    %v2744 = vmul.f32 %v2736, %v2576
    %v2745 = vmul.f32 %v2730, %v2737
    %v2746 = vadd.f32 %v2744, %v2745
    %v2747 = vtanh.pop %v2746
    %v2748 = vmul.f32 %v2743, %v2747
    %2749 = vmatprep.subr.mxu0 %v2176
    %2750 = vmatpush1.msra.mxu0 %v2175
    %2751 = vmatprep.subr.mxu0 %v2180
    %2752 = vmatpush1.msra.mxu0 %v2179
    %2753 = vmatprep.subr.mxu0 %v2184
    %2754 = vmatpush1.msra.mxu0 %v2183
    %2755 = vmatprep.subr.mxu0 %v2188
    %2756 = vmatpush1.msra.mxu0 %v2187
    %2757 = vmatprep.subr.mxu0 %v2192
    %2758 = vmatpush1.msra.mxu0 %v2191
    %2759 = vmatprep.subr.mxu0 %v2196
    %2760 = vmatpush1.msra.mxu0 %v2195
    %2761 = vmatprep.subr.mxu0 %v2200
    %2762 = vmatpush1.msra.mxu0 %v2199
    %2763 = vmatprep.subr.mxu0 %v2204
    %2764 = vmatpush1.msra.mxu0 %v2203
    %2765 = vmatprep.subr.mxu0 %v2208
    %2766 = vmatpush1.msra.mxu0 %v2207
    %2767 = vmatprep.subr.mxu0 %v2212
    %2768 = vmatpush1.msra.mxu0 %v2211
    %2769 = vmatprep.subr.mxu0 %v2216
    %2770 = vmatpush1.msra.mxu0 %v2215
    %2771 = vmatprep.subr.mxu0 %v2220
    %2772 = vmatpush1.msra.mxu0 %v2219
    %2773 = vmatprep.subr.mxu0 %v2224
    %2774 = vmatpush1.msra.mxu0 %v2223
    %2775 = vmatprep.subr.mxu0 %v2228
    %2776 = vmatpush1.msra.mxu0 %v2227
    %2777 = vmatprep.subr.mxu0 %v2232
    %2778 = vmatpush1.msra.mxu0 %v2231
    %2779 = vmatprep.subr.mxu0 %v2236
    %2780 = vmatpush1.msra.mxu0 %v2235
    %2781 = vmatprep.subr.mxu0 0.0
    %2782 = vmatpush1.msra.mxu0 0.0
    %2783 = vmatprep.subr.mxu0 0.0
    %2784 = vmatpush1.msra.mxu0 0.0
    %2785 = vmatprep.subr.mxu0 0.0
    %2786 = vmatpush1.msra.mxu0 0.0
    %2787 = vmatprep.subr.mxu0 0.0
    %2788 = vmatpush1.msra.mxu0 0.0
    %2789 = vmatprep.subr.mxu0 0.0
    %2790 = vmatpush1.msra.mxu0 0.0
    %2791 = vmatprep.subr.mxu0 0.0
    %2792 = vmatpush1.msra.mxu0 0.0
    %2793 = vmatprep.subr.mxu0 0.0
    %2794 = vmatpush1.msra.mxu0 0.0
    %2795 = vmatprep.subr.mxu0 0.0
    %2796 = vmatpush1.msra.mxu0 0.0
    %2797 = vmatprep.subr.mxu0 0.0
    %2798 = vmatpush1.msra.mxu0 0.0
    %2799 = vmatprep.subr.mxu0 0.0
    %2800 = vmatpush1.msra.mxu0 0.0
    %2801 = vmatprep.subr.mxu0 0.0
    %2802 = vmatpush1.msra.mxu0 0.0
    %2803 = vmatprep.subr.mxu0 0.0
    %2804 = vmatpush1.msra.mxu0 0.0
    %2805 = vmatprep.subr.mxu0 0.0
    %2806 = vmatpush1.msra.mxu0 0.0
    %2807 = vmatprep.subr.mxu0 0.0
    %2808 = vmatpush1.msra.mxu0 0.0
    %2809 = vmatprep.subr.mxu0 0.0
    %2810 = vmatpush1.msra.mxu0 0.0
    %2811 = vmatprep.subr.mxu0 0.0
    %2812 = vmatpush1.msra.mxu0 0.0
    %2813 = vmatprep.mubr.f32.mxu0 0.0
    %2814 = vmatmul.mubr.f32.gmra.mrb[0].mxu0 %v2748
    %v2815 = vpop.f32.mrb[0].mxu0
    %v2816 = vadd.f32 0.0, %v2815
    %v2817 = vpop.f32.mrb[0].mxu0
    %v2818 = vadd.f32 0.0, %v2817
    %2819 = vdwg.mxu0
    %2820 = vmatprep.subr.mxu0 %v2178
    %2821 = vmatpush1.msra.mxu0 %v2177
    %2822 = vmatprep.subr.mxu0 %v2182
    %2823 = vmatpush1.msra.mxu0 %v2181
    %2824 = vmatprep.subr.mxu0 %v2186
    %2825 = vmatpush1.msra.mxu0 %v2185
    %2826 = vmatprep.subr.mxu0 %v2190
    %2827 = vmatpush1.msra.mxu0 %v2189
    %2828 = vmatprep.subr.mxu0 %v2194
    %2829 = vmatpush1.msra.mxu0 %v2193
    %2830 = vmatprep.subr.mxu0 %v2198
    %2831 = vmatpush1.msra.mxu0 %v2197
    %2832 = vmatprep.subr.mxu0 %v2202
    %2833 = vmatpush1.msra.mxu0 %v2201
    %2834 = vmatprep.subr.mxu0 %v2206
    %2835 = vmatpush1.msra.mxu0 %v2205
    %2836 = vmatprep.subr.mxu0 %v2210
    %2837 = vmatpush1.msra.mxu0 %v2209
    %2838 = vmatprep.subr.mxu0 %v2214
    %2839 = vmatpush1.msra.mxu0 %v2213
    %2840 = vmatprep.subr.mxu0 %v2218
    %2841 = vmatpush1.msra.mxu0 %v2217
    %2842 = vmatprep.subr.mxu0 %v2222
    %2843 = vmatpush1.msra.mxu0 %v2221
    %2844 = vmatprep.subr.mxu0 %v2226
    %2845 = vmatpush1.msra.mxu0 %v2225
    %2846 = vmatprep.subr.mxu0 %v2230
    %2847 = vmatpush1.msra.mxu0 %v2229
    %2848 = vmatprep.subr.mxu0 %v2234
    %2849 = vmatpush1.msra.mxu0 %v2233
    %2850 = vmatprep.subr.mxu0 %v2238
    %2851 = vmatpush1.msra.mxu0 %v2237
    %2852 = vmatprep.subr.mxu0 0.0
    %2853 = vmatpush1.msra.mxu0 0.0
    %2854 = vmatprep.subr.mxu0 0.0
    %2855 = vmatpush1.msra.mxu0 0.0
    %2856 = vmatprep.subr.mxu0 0.0
    %2857 = vmatpush1.msra.mxu0 0.0
    %2858 = vmatprep.subr.mxu0 0.0
    %2859 = vmatpush1.msra.mxu0 0.0
    %2860 = vmatprep.subr.mxu0 0.0
    %2861 = vmatpush1.msra.mxu0 0.0
    %2862 = vmatprep.subr.mxu0 0.0
    %2863 = vmatpush1.msra.mxu0 0.0
    %2864 = vmatprep.subr.mxu0 0.0
    %2865 = vmatpush1.msra.mxu0 0.0
    %2866 = vmatprep.subr.mxu0 0.0
    %2867 = vmatpush1.msra.mxu0 0.0
    %2868 = vmatprep.subr.mxu0 0.0
    %2869 = vmatpush1.msra.mxu0 0.0
    %2870 = vmatprep.subr.mxu0 0.0
    %2871 = vmatpush1.msra.mxu0 0.0
    %2872 = vmatprep.subr.mxu0 0.0
    %2873 = vmatpush1.msra.mxu0 0.0
    %2874 = vmatprep.subr.mxu0 0.0
    %2875 = vmatpush1.msra.mxu0 0.0
    %2876 = vmatprep.subr.mxu0 0.0
    %2877 = vmatpush1.msra.mxu0 0.0
    %2878 = vmatprep.subr.mxu0 0.0
    %2879 = vmatpush1.msra.mxu0 0.0
    %2880 = vmatprep.subr.mxu0 0.0
    %2881 = vmatpush1.msra.mxu0 0.0
    %2882 = vmatprep.subr.mxu0 0.0
    %2883 = vmatpush1.msra.mxu0 0.0
    %2884 = vmatprep.mubr.f32.mxu0 0.0
    %2885 = vmatmul.mubr.f32.gmra.mrb[0].mxu0 %v2748
    %v2886 = vpop.f32.mrb[0].mxu0
    %v2887 = vadd.f32 0.0, %v2886
    %v2888 = vpop.f32.mrb[0].mxu0
    %v2889 = vadd.f32 0.0, %v2888
    %2890 = vdwg.mxu0
    %v2891 = vadd.f32 %v2034, %v2816
    %v2892 = vadd.f32 %v2036, %v2818
    %v2893 = vadd.f32 %v2147, %v2887
    %v2894 = vadd.f32 %v2149, %v2889
    %v2895 = vxor.u32 %v2891, 2147483648
    %v2896 = vmul.f32 %v2895, 1.442695
    %v2897 = vpow.pop %v2896
    %v2898 = vadd.f32 %v2897, 1.0
    %v2899 = vrcp.pop %v2898
    %v2900 = vmul.f32 1.0, %v2899
    %v2901 = vxor.u32 %v2892, 2147483648
    %v2902 = vmul.f32 %v2901, 1.442695
    %v2903 = vpow.pop %v2902
    %v2904 = vadd.f32 %v2903, 1.0
    %v2905 = vrcp.pop %v2904
    %v2906 = vmul.f32 1.0, %v2905
    %v2907 = vtanh.pop %v2893
    %v2908 = vxor.u32 %v2894, 2147483648
    %v2909 = vmul.f32 %v2908, 1.442695
    %v2910 = vpow.pop %v2909
    %v2911 = vadd.f32 %v2910, 1.0
    %v2912 = vrcp.pop %v2911
    %v2913 = vmul.f32 1.0, %v2912
    %v2914 = vmul.f32 %v2906, %v2746
    %v2915 = vmul.f32 %v2900, %v2907
    %v2916 = vadd.f32 %v2914, %v2915
    %v2917 = vtanh.pop %v2916
    %v2918 = vmul.f32 %v2913, %v2917
    %2919 = vmatprep.subr.mxu0 %v2176
    %2920 = vmatpush1.msra.mxu0 %v2175
    %2921 = vmatprep.subr.mxu0 %v2180
    %2922 = vmatpush1.msra.mxu0 %v2179
    %2923 = vmatprep.subr.mxu0 %v2184
    %2924 = vmatpush1.msra.mxu0 %v2183
    %2925 = vmatprep.subr.mxu0 %v2188
    %2926 = vmatpush1.msra.mxu0 %v2187
    %2927 = vmatprep.subr.mxu0 %v2192
    %2928 = vmatpush1.msra.mxu0 %v2191
    %2929 = vmatprep.subr.mxu0 %v2196
    %2930 = vmatpush1.msra.mxu0 %v2195
    %2931 = vmatprep.subr.mxu0 %v2200
    %2932 = vmatpush1.msra.mxu0 %v2199
    %2933 = vmatprep.subr.mxu0 %v2204
    %2934 = vmatpush1.msra.mxu0 %v2203
    %2935 = vmatprep.subr.mxu0 %v2208
    %2936 = vmatpush1.msra.mxu0 %v2207
    %2937 = vmatprep.subr.mxu0 %v2212
    %2938 = vmatpush1.msra.mxu0 %v2211
    %2939 = vmatprep.subr.mxu0 %v2216
    %2940 = vmatpush1.msra.mxu0 %v2215
    %2941 = vmatprep.subr.mxu0 %v2220
    %2942 = vmatpush1.msra.mxu0 %v2219
    %2943 = vmatprep.subr.mxu0 %v2224
    %2944 = vmatpush1.msra.mxu0 %v2223
    %2945 = vmatprep.subr.mxu0 %v2228
    %2946 = vmatpush1.msra.mxu0 %v2227
    %2947 = vmatprep.subr.mxu0 %v2232
    %2948 = vmatpush1.msra.mxu0 %v2231
    %2949 = vmatprep.subr.mxu0 %v2236
    %2950 = vmatpush1.msra.mxu0 %v2235
    %2951 = vmatprep.subr.mxu0 0.0
    %2952 = vmatpush1.msra.mxu0 0.0
    %2953 = vmatprep.subr.mxu0 0.0
    %2954 = vmatpush1.msra.mxu0 0.0
    %2955 = vmatprep.subr.mxu0 0.0
    %2956 = vmatpush1.msra.mxu0 0.0
    %2957 = vmatprep.subr.mxu0 0.0
    %2958 = vmatpush1.msra.mxu0 0.0
    %2959 = vmatprep.subr.mxu0 0.0
    %2960 = vmatpush1.msra.mxu0 0.0
    %2961 = vmatprep.subr.mxu0 0.0
    %2962 = vmatpush1.msra.mxu0 0.0
    %2963 = vmatprep.subr.mxu0 0.0
    %2964 = vmatpush1.msra.mxu0 0.0
    %2965 = vmatprep.subr.mxu0 0.0
    %2966 = vmatpush1.msra.mxu0 0.0
    %2967 = vmatprep.subr.mxu0 0.0
    %2968 = vmatpush1.msra.mxu0 0.0
    %2969 = vmatprep.subr.mxu0 0.0
    %2970 = vmatpush1.msra.mxu0 0.0
    %2971 = vmatprep.subr.mxu0 0.0
    %2972 = vmatpush1.msra.mxu0 0.0
    %2973 = vmatprep.subr.mxu0 0.0
    %2974 = vmatpush1.msra.mxu0 0.0
    %2975 = vmatprep.subr.mxu0 0.0
    %2976 = vmatpush1.msra.mxu0 0.0
    %2977 = vmatprep.subr.mxu0 0.0
    %2978 = vmatpush1.msra.mxu0 0.0
    %2979 = vmatprep.subr.mxu0 0.0
    %2980 = vmatpush1.msra.mxu0 0.0
    %2981 = vmatprep.subr.mxu0 0.0
    %2982 = vmatpush1.msra.mxu0 0.0
    %2983 = vmatprep.mubr.f32.mxu0 0.0
    %2984 = vmatmul.mubr.f32.gmra.mrb[0].mxu0 %v2918
    %v2985 = vpop.f32.mrb[0].mxu0
    %v2986 = vadd.f32 0.0, %v2985
    %v2987 = vpop.f32.mrb[0].mxu0
    %v2988 = vadd.f32 0.0, %v2987
    %2989 = vdwg.mxu0
    %2990 = vmatprep.subr.mxu0 %v2178
    %2991 = vmatpush1.msra.mxu0 %v2177
    %2992 = vmatprep.subr.mxu0 %v2182
    %2993 = vmatpush1.msra.mxu0 %v2181
    %2994 = vmatprep.subr.mxu0 %v2186
    %2995 = vmatpush1.msra.mxu0 %v2185
    %2996 = vmatprep.subr.mxu0 %v2190
    %2997 = vmatpush1.msra.mxu0 %v2189
    %2998 = vmatprep.subr.mxu0 %v2194
    %2999 = vmatpush1.msra.mxu0 %v2193
    %3000 = vmatprep.subr.mxu0 %v2198
    %3001 = vmatpush1.msra.mxu0 %v2197
    %3002 = vmatprep.subr.mxu0 %v2202
    %3003 = vmatpush1.msra.mxu0 %v2201
    %3004 = vmatprep.subr.mxu0 %v2206
    %3005 = vmatpush1.msra.mxu0 %v2205
    %3006 = vmatprep.subr.mxu0 %v2210
    %3007 = vmatpush1.msra.mxu0 %v2209
    %3008 = vmatprep.subr.mxu0 %v2214
    %3009 = vmatpush1.msra.mxu0 %v2213
    %3010 = vmatprep.subr.mxu0 %v2218
    %3011 = vmatpush1.msra.mxu0 %v2217
    %3012 = vmatprep.subr.mxu0 %v2222
    %3013 = vmatpush1.msra.mxu0 %v2221
    %3014 = vmatprep.subr.mxu0 %v2226
    %3015 = vmatpush1.msra.mxu0 %v2225
    %3016 = vmatprep.subr.mxu0 %v2230
    %3017 = vmatpush1.msra.mxu0 %v2229
    %3018 = vmatprep.subr.mxu0 %v2234
    %3019 = vmatpush1.msra.mxu0 %v2233
    %3020 = vmatprep.subr.mxu0 %v2238
    %3021 = vmatpush1.msra.mxu0 %v2237
    %3022 = vmatprep.subr.mxu0 0.0
    %3023 = vmatpush1.msra.mxu0 0.0
    %3024 = vmatprep.subr.mxu0 0.0
    %3025 = vmatpush1.msra.mxu0 0.0
    %3026 = vmatprep.subr.mxu0 0.0
    %3027 = vmatpush1.msra.mxu0 0.0
    %3028 = vmatprep.subr.mxu0 0.0
    %3029 = vmatpush1.msra.mxu0 0.0
    %3030 = vmatprep.subr.mxu0 0.0
    %3031 = vmatpush1.msra.mxu0 0.0
    %3032 = vmatprep.subr.mxu0 0.0
    %3033 = vmatpush1.msra.mxu0 0.0
    %3034 = vmatprep.subr.mxu0 0.0
    %3035 = vmatpush1.msra.mxu0 0.0
    %3036 = vmatprep.subr.mxu0 0.0
    %3037 = vmatpush1.msra.mxu0 0.0
    %3038 = vmatprep.subr.mxu0 0.0
    %3039 = vmatpush1.msra.mxu0 0.0
    %3040 = vmatprep.subr.mxu0 0.0
    %3041 = vmatpush1.msra.mxu0 0.0
    %3042 = vmatprep.subr.mxu0 0.0
    %3043 = vmatpush1.msra.mxu0 0.0
    %3044 = vmatprep.subr.mxu0 0.0
    %3045 = vmatpush1.msra.mxu0 0.0
    %3046 = vmatprep.subr.mxu0 0.0
    %3047 = vmatpush1.msra.mxu0 0.0
    %3048 = vmatprep.subr.mxu0 0.0
    %3049 = vmatpush1.msra.mxu0 0.0
    %3050 = vmatprep.subr.mxu0 0.0
    %3051 = vmatpush1.msra.mxu0 0.0
    %3052 = vmatprep.subr.mxu0 0.0
    %3053 = vmatpush1.msra.mxu0 0.0
    %3054 = vmatprep.mubr.f32.mxu0 0.0
    %3055 = vmatmul.mubr.f32.gmra.mrb[0].mxu0 %v2918
    %v3056 = vpop.f32.mrb[0].mxu0
    %v3057 = vadd.f32 0.0, %v3056
    %v3058 = vpop.f32.mrb[0].mxu0
    %v3059 = vadd.f32 0.0, %v3058
    %3060 = vdwg.mxu0
    %v3061 = vadd.f32 %v2040, %v2986
    %v3062 = vadd.f32 %v2042, %v2988
    %v3063 = vadd.f32 %v2153, %v3057
    %v3064 = vadd.f32 %v2155, %v3059
    %v3065 = vxor.u32 %v3061, 2147483648
    %v3066 = vmul.f32 %v3065, 1.442695
    %v3067 = vpow.pop %v3066
    %v3068 = vadd.f32 %v3067, 1.0
    %v3069 = vrcp.pop %v3068
    %v3070 = vmul.f32 1.0, %v3069
    %v3071 = vxor.u32 %v3062, 2147483648
    %v3072 = vmul.f32 %v3071, 1.442695
    %v3073 = vpow.pop %v3072
    %v3074 = vadd.f32 %v3073, 1.0
    %v3075 = vrcp.pop %v3074
    %v3076 = vmul.f32 1.0, %v3075
    %v3077 = vtanh.pop %v3063
    %v3078 = vxor.u32 %v3064, 2147483648
    %v3079 = vmul.f32 %v3078, 1.442695
    %v3080 = vpow.pop %v3079
    %v3081 = vadd.f32 %v3080, 1.0
    %v3082 = vrcp.pop %v3081
    %v3083 = vmul.f32 1.0, %v3082
    %v3084 = vmul.f32 %v3076, %v2916
    %v3085 = vmul.f32 %v3070, %v3077
    %v3086 = vadd.f32 %v3084, %v3085
    %v3087 = vtanh.pop %v3086
    %v3088 = vmul.f32 %v3083, %v3087
    %3089 = vmatprep.subr.mxu0 %v2176
    %3090 = vmatpush1.msra.mxu0 %v2175
    %3091 = vmatprep.subr.mxu0 %v2180
    %3092 = vmatpush1.msra.mxu0 %v2179
    %3093 = vmatprep.subr.mxu0 %v2184
    %3094 = vmatpush1.msra.mxu0 %v2183
    %3095 = vmatprep.subr.mxu0 %v2188
    %3096 = vmatpush1.msra.mxu0 %v2187
    %3097 = vmatprep.subr.mxu0 %v2192
    %3098 = vmatpush1.msra.mxu0 %v2191
    %3099 = vmatprep.subr.mxu0 %v2196
    %3100 = vmatpush1.msra.mxu0 %v2195
    %3101 = vmatprep.subr.mxu0 %v2200
    %3102 = vmatpush1.msra.mxu0 %v2199
    %3103 = vmatprep.subr.mxu0 %v2204
    %3104 = vmatpush1.msra.mxu0 %v2203
    %3105 = vmatprep.subr.mxu0 %v2208
    %3106 = vmatpush1.msra.mxu0 %v2207
    %3107 = vmatprep.subr.mxu0 %v2212
    %3108 = vmatpush1.msra.mxu0 %v2211
    %3109 = vmatprep.subr.mxu0 %v2216
    %3110 = vmatpush1.msra.mxu0 %v2215
    %3111 = vmatprep.subr.mxu0 %v2220
    %3112 = vmatpush1.msra.mxu0 %v2219
    %3113 = vmatprep.subr.mxu0 %v2224
    %3114 = vmatpush1.msra.mxu0 %v2223
    %3115 = vmatprep.subr.mxu0 %v2228
    %3116 = vmatpush1.msra.mxu0 %v2227
    %3117 = vmatprep.subr.mxu0 %v2232
    %3118 = vmatpush1.msra.mxu0 %v2231
    %3119 = vmatprep.subr.mxu0 %v2236
    %3120 = vmatpush1.msra.mxu0 %v2235
    %3121 = vmatprep.subr.mxu0 0.0
    %3122 = vmatpush1.msra.mxu0 0.0
    %3123 = vmatprep.subr.mxu0 0.0
    %3124 = vmatpush1.msra.mxu0 0.0
    %3125 = vmatprep.subr.mxu0 0.0
    %3126 = vmatpush1.msra.mxu0 0.0
    %3127 = vmatprep.subr.mxu0 0.0
    %3128 = vmatpush1.msra.mxu0 0.0
    %3129 = vmatprep.subr.mxu0 0.0
    %3130 = vmatpush1.msra.mxu0 0.0
    %3131 = vmatprep.subr.mxu0 0.0
    %3132 = vmatpush1.msra.mxu0 0.0
    %3133 = vmatprep.subr.mxu0 0.0
    %3134 = vmatpush1.msra.mxu0 0.0
    %3135 = vmatprep.subr.mxu0 0.0
    %3136 = vmatpush1.msra.mxu0 0.0
    %3137 = vmatprep.subr.mxu0 0.0
    %3138 = vmatpush1.msra.mxu0 0.0
    %3139 = vmatprep.subr.mxu0 0.0
    %3140 = vmatpush1.msra.mxu0 0.0
    %3141 = vmatprep.subr.mxu0 0.0
    %3142 = vmatpush1.msra.mxu0 0.0
    %3143 = vmatprep.subr.mxu0 0.0
    %3144 = vmatpush1.msra.mxu0 0.0
    %3145 = vmatprep.subr.mxu0 0.0
    %3146 = vmatpush1.msra.mxu0 0.0
    %3147 = vmatprep.subr.mxu0 0.0
    %3148 = vmatpush1.msra.mxu0 0.0
    %3149 = vmatprep.subr.mxu0 0.0
    %3150 = vmatpush1.msra.mxu0 0.0
    %3151 = vmatprep.subr.mxu0 0.0
    %3152 = vmatpush1.msra.mxu0 0.0
    %3153 = vmatprep.mubr.f32.mxu0 0.0
    %3154 = vmatmul.mubr.f32.gmra.mrb[0].mxu0 %v3088
    %v3155 = vpop.f32.mrb[0].mxu0
    %v3156 = vadd.f32 0.0, %v3155
    %v3157 = vpop.f32.mrb[0].mxu0
    %v3158 = vadd.f32 0.0, %v3157
    %3159 = vdwg.mxu0
    %3160 = vmatprep.subr.mxu0 %v2178
    %3161 = vmatpush1.msra.mxu0 %v2177
    %3162 = vmatprep.subr.mxu0 %v2182
    %3163 = vmatpush1.msra.mxu0 %v2181
    %3164 = vmatprep.subr.mxu0 %v2186
    %3165 = vmatpush1.msra.mxu0 %v2185
    %3166 = vmatprep.subr.mxu0 %v2190
    %3167 = vmatpush1.msra.mxu0 %v2189
    %3168 = vmatprep.subr.mxu0 %v2194
    %3169 = vmatpush1.msra.mxu0 %v2193
    %3170 = vmatprep.subr.mxu0 %v2198
    %3171 = vmatpush1.msra.mxu0 %v2197
    %3172 = vmatprep.subr.mxu0 %v2202
    %3173 = vmatpush1.msra.mxu0 %v2201
    %3174 = vmatprep.subr.mxu0 %v2206
    %3175 = vmatpush1.msra.mxu0 %v2205
    %3176 = vmatprep.subr.mxu0 %v2210
    %3177 = vmatpush1.msra.mxu0 %v2209
    %3178 = vmatprep.subr.mxu0 %v2214
    %3179 = vmatpush1.msra.mxu0 %v2213
    %3180 = vmatprep.subr.mxu0 %v2218
    %3181 = vmatpush1.msra.mxu0 %v2217
    %3182 = vmatprep.subr.mxu0 %v2222
    %3183 = vmatpush1.msra.mxu0 %v2221
    %3184 = vmatprep.subr.mxu0 %v2226
    %3185 = vmatpush1.msra.mxu0 %v2225
    %3186 = vmatprep.subr.mxu0 %v2230
    %3187 = vmatpush1.msra.mxu0 %v2229
    %3188 = vmatprep.subr.mxu0 %v2234
    %3189 = vmatpush1.msra.mxu0 %v2233
    %3190 = vmatprep.subr.mxu0 %v2238
    %3191 = vmatpush1.msra.mxu0 %v2237
    %3192 = vmatprep.subr.mxu0 0.0
    %3193 = vmatpush1.msra.mxu0 0.0
    %3194 = vmatprep.subr.mxu0 0.0
    %3195 = vmatpush1.msra.mxu0 0.0
    %3196 = vmatprep.subr.mxu0 0.0
    %3197 = vmatpush1.msra.mxu0 0.0
    %3198 = vmatprep.subr.mxu0 0.0
    %3199 = vmatpush1.msra.mxu0 0.0
    %3200 = vmatprep.subr.mxu0 0.0
    %3201 = vmatpush1.msra.mxu0 0.0
    %3202 = vmatprep.subr.mxu0 0.0
    %3203 = vmatpush1.msra.mxu0 0.0
    %3204 = vmatprep.subr.mxu0 0.0
    %3205 = vmatpush1.msra.mxu0 0.0
    %3206 = vmatprep.subr.mxu0 0.0
    %3207 = vmatpush1.msra.mxu0 0.0
    %3208 = vmatprep.subr.mxu0 0.0
    %3209 = vmatpush1.msra.mxu0 0.0
    %3210 = vmatprep.subr.mxu0 0.0
    %3211 = vmatpush1.msra.mxu0 0.0
    %3212 = vmatprep.subr.mxu0 0.0
    %3213 = vmatpush1.msra.mxu0 0.0
    %3214 = vmatprep.subr.mxu0 0.0
    %3215 = vmatpush1.msra.mxu0 0.0
    %3216 = vmatprep.subr.mxu0 0.0
    %3217 = vmatpush1.msra.mxu0 0.0
    %3218 = vmatprep.subr.mxu0 0.0
    %3219 = vmatpush1.msra.mxu0 0.0
    %3220 = vmatprep.subr.mxu0 0.0
    %3221 = vmatpush1.msra.mxu0 0.0
    %3222 = vmatprep.subr.mxu0 0.0
    %3223 = vmatpush1.msra.mxu0 0.0
    %3224 = vmatprep.mubr.f32.mxu0 0.0
    %3225 = vmatmul.mubr.f32.gmra.mrb[0].mxu0 %v3088
    %v3226 = vpop.f32.mrb[0].mxu0
    %v3227 = vadd.f32 0.0, %v3226
    %v3228 = vpop.f32.mrb[0].mxu0
    %v3229 = vadd.f32 0.0, %v3228
    %3230 = vdwg.mxu0
    %v3231 = vadd.f32 %v2046, %v3156
    %v3232 = vadd.f32 %v2048, %v3158
    %v3233 = vadd.f32 %v2159, %v3227
    %v3234 = vadd.f32 %v2161, %v3229
    %v3235 = vxor.u32 %v3231, 2147483648
    %v3236 = vmul.f32 %v3235, 1.442695
    %v3237 = vpow.pop %v3236
    %v3238 = vadd.f32 %v3237, 1.0
    %v3239 = vrcp.pop %v3238
    %v3240 = vmul.f32 1.0, %v3239
    %v3241 = vxor.u32 %v3232, 2147483648
    %v3242 = vmul.f32 %v3241, 1.442695
    %v3243 = vpow.pop %v3242
    %v3244 = vadd.f32 %v3243, 1.0
    %v3245 = vrcp.pop %v3244
    %v3246 = vmul.f32 1.0, %v3245
    %v3247 = vtanh.pop %v3233
    %v3248 = vxor.u32 %v3234, 2147483648
    %v3249 = vmul.f32 %v3248, 1.442695
    %v3250 = vpow.pop %v3249
    %v3251 = vadd.f32 %v3250, 1.0
    %v3252 = vrcp.pop %v3251
    %v3253 = vmul.f32 1.0, %v3252
    %v3254 = vmul.f32 %v3246, %v3086
    %v3255 = vmul.f32 %v3240, %v3247
    %v3256 = vadd.f32 %v3254, %v3255
    %v3257 = vtanh.pop %v3256
    %v3258 = vmul.f32 %v3253, %v3257
    %3259 = vmatprep.subr.mxu0 %v2176
    %3260 = vmatpush1.msra.mxu0 %v2175
    %3261 = vmatprep.subr.mxu0 %v2180
    %3262 = vmatpush1.msra.mxu0 %v2179
    %3263 = vmatprep.subr.mxu0 %v2184
    %3264 = vmatpush1.msra.mxu0 %v2183
    %3265 = vmatprep.subr.mxu0 %v2188
    %3266 = vmatpush1.msra.mxu0 %v2187
    %3267 = vmatprep.subr.mxu0 %v2192
    %3268 = vmatpush1.msra.mxu0 %v2191
    %3269 = vmatprep.subr.mxu0 %v2196
    %3270 = vmatpush1.msra.mxu0 %v2195
    %3271 = vmatprep.subr.mxu0 %v2200
    %3272 = vmatpush1.msra.mxu0 %v2199
    %3273 = vmatprep.subr.mxu0 %v2204
    %3274 = vmatpush1.msra.mxu0 %v2203
    %3275 = vmatprep.subr.mxu0 %v2208
    %3276 = vmatpush1.msra.mxu0 %v2207
    %3277 = vmatprep.subr.mxu0 %v2212
    %3278 = vmatpush1.msra.mxu0 %v2211
    %3279 = vmatprep.subr.mxu0 %v2216
    %3280 = vmatpush1.msra.mxu0 %v2215
    %3281 = vmatprep.subr.mxu0 %v2220
    %3282 = vmatpush1.msra.mxu0 %v2219
    %3283 = vmatprep.subr.mxu0 %v2224
    %3284 = vmatpush1.msra.mxu0 %v2223
    %3285 = vmatprep.subr.mxu0 %v2228
    %3286 = vmatpush1.msra.mxu0 %v2227
    %3287 = vmatprep.subr.mxu0 %v2232
    %3288 = vmatpush1.msra.mxu0 %v2231
    %3289 = vmatprep.subr.mxu0 %v2236
    %3290 = vmatpush1.msra.mxu0 %v2235
    %3291 = vmatprep.subr.mxu0 0.0
    %3292 = vmatpush1.msra.mxu0 0.0
    %3293 = vmatprep.subr.mxu0 0.0
    %3294 = vmatpush1.msra.mxu0 0.0
    %3295 = vmatprep.subr.mxu0 0.0
    %3296 = vmatpush1.msra.mxu0 0.0
    %3297 = vmatprep.subr.mxu0 0.0
    %3298 = vmatpush1.msra.mxu0 0.0
    %3299 = vmatprep.subr.mxu0 0.0
    %3300 = vmatpush1.msra.mxu0 0.0
    %3301 = vmatprep.subr.mxu0 0.0
    %3302 = vmatpush1.msra.mxu0 0.0
    %3303 = vmatprep.subr.mxu0 0.0
    %3304 = vmatpush1.msra.mxu0 0.0
    %3305 = vmatprep.subr.mxu0 0.0
    %3306 = vmatpush1.msra.mxu0 0.0
    %3307 = vmatprep.subr.mxu0 0.0
    %3308 = vmatpush1.msra.mxu0 0.0
    %3309 = vmatprep.subr.mxu0 0.0
    %3310 = vmatpush1.msra.mxu0 0.0
    %3311 = vmatprep.subr.mxu0 0.0
    %3312 = vmatpush1.msra.mxu0 0.0
    %3313 = vmatprep.subr.mxu0 0.0
    %3314 = vmatpush1.msra.mxu0 0.0
    %3315 = vmatprep.subr.mxu0 0.0
    %3316 = vmatpush1.msra.mxu0 0.0
    %3317 = vmatprep.subr.mxu0 0.0
    %3318 = vmatpush1.msra.mxu0 0.0
    %3319 = vmatprep.subr.mxu0 0.0
    %3320 = vmatpush1.msra.mxu0 0.0
    %3321 = vmatprep.subr.mxu0 0.0
    %3322 = vmatpush1.msra.mxu0 0.0
    %3323 = vmatprep.mubr.f32.mxu0 0.0
    %3324 = vmatmul.mubr.f32.gmra.mrb[0].mxu0 %v3258
    %v3325 = vpop.f32.mrb[0].mxu0
    %v3326 = vadd.f32 0.0, %v3325
    %v3327 = vpop.f32.mrb[0].mxu0
    %v3328 = vadd.f32 0.0, %v3327
    %3329 = vdwg.mxu0
    %3330 = vmatprep.subr.mxu0 %v2178
    %3331 = vmatpush1.msra.mxu0 %v2177
    %3332 = vmatprep.subr.mxu0 %v2182
    %3333 = vmatpush1.msra.mxu0 %v2181
    %3334 = vmatprep.subr.mxu0 %v2186
    %3335 = vmatpush1.msra.mxu0 %v2185
    %3336 = vmatprep.subr.mxu0 %v2190
    %3337 = vmatpush1.msra.mxu0 %v2189
    %3338 = vmatprep.subr.mxu0 %v2194
    %3339 = vmatpush1.msra.mxu0 %v2193
    %3340 = vmatprep.subr.mxu0 %v2198
    %3341 = vmatpush1.msra.mxu0 %v2197
    %3342 = vmatprep.subr.mxu0 %v2202
    %3343 = vmatpush1.msra.mxu0 %v2201
    %3344 = vmatprep.subr.mxu0 %v2206
    %3345 = vmatpush1.msra.mxu0 %v2205
    %3346 = vmatprep.subr.mxu0 %v2210
    %3347 = vmatpush1.msra.mxu0 %v2209
    %3348 = vmatprep.subr.mxu0 %v2214
    %3349 = vmatpush1.msra.mxu0 %v2213
    %3350 = vmatprep.subr.mxu0 %v2218
    %3351 = vmatpush1.msra.mxu0 %v2217
    %3352 = vmatprep.subr.mxu0 %v2222
    %3353 = vmatpush1.msra.mxu0 %v2221
    %3354 = vmatprep.subr.mxu0 %v2226
    %3355 = vmatpush1.msra.mxu0 %v2225
    %3356 = vmatprep.subr.mxu0 %v2230
    %3357 = vmatpush1.msra.mxu0 %v2229
    %3358 = vmatprep.subr.mxu0 %v2234
    %3359 = vmatpush1.msra.mxu0 %v2233
    %3360 = vmatprep.subr.mxu0 %v2238
    %3361 = vmatpush1.msra.mxu0 %v2237
    %3362 = vmatprep.subr.mxu0 0.0
    %3363 = vmatpush1.msra.mxu0 0.0
    %3364 = vmatprep.subr.mxu0 0.0
    %3365 = vmatpush1.msra.mxu0 0.0
    %3366 = vmatprep.subr.mxu0 0.0
    %3367 = vmatpush1.msra.mxu0 0.0
    %3368 = vmatprep.subr.mxu0 0.0
    %3369 = vmatpush1.msra.mxu0 0.0
    %3370 = vmatprep.subr.mxu0 0.0
    %3371 = vmatpush1.msra.mxu0 0.0
    %3372 = vmatprep.subr.mxu0 0.0
    %3373 = vmatpush1.msra.mxu0 0.0
    %3374 = vmatprep.subr.mxu0 0.0
    %3375 = vmatpush1.msra.mxu0 0.0
    %3376 = vmatprep.subr.mxu0 0.0
    %3377 = vmatpush1.msra.mxu0 0.0
    %3378 = vmatprep.subr.mxu0 0.0
    %3379 = vmatpush1.msra.mxu0 0.0
    %3380 = vmatprep.subr.mxu0 0.0
    %3381 = vmatpush1.msra.mxu0 0.0
    %3382 = vmatprep.subr.mxu0 0.0
    %3383 = vmatpush1.msra.mxu0 0.0
    %3384 = vmatprep.subr.mxu0 0.0
    %3385 = vmatpush1.msra.mxu0 0.0
    %3386 = vmatprep.subr.mxu0 0.0
    %3387 = vmatpush1.msra.mxu0 0.0
    %3388 = vmatprep.subr.mxu0 0.0
    %3389 = vmatpush1.msra.mxu0 0.0
    %3390 = vmatprep.subr.mxu0 0.0
    %3391 = vmatpush1.msra.mxu0 0.0
    %3392 = vmatprep.subr.mxu0 0.0
    %3393 = vmatpush1.msra.mxu0 0.0
    %3394 = vmatprep.mubr.f32.mxu0 0.0
    %3395 = vmatmul.mubr.f32.gmra.mrb[0].mxu0 %v3258
    %v3396 = vpop.f32.mrb[0].mxu0
    %v3397 = vadd.f32 0.0, %v3396
    %v3398 = vpop.f32.mrb[0].mxu0
    %v3399 = vadd.f32 0.0, %v3398
    %3400 = vdwg.mxu0
    %v3401 = vadd.f32 %v2052, %v3326
    %v3402 = vadd.f32 %v2054, %v3328
    %v3403 = vadd.f32 %v2165, %v3397
    %v3404 = vadd.f32 %v2167, %v3399
    %v3405 = vxor.u32 %v3401, 2147483648
    %v3406 = vmul.f32 %v3405, 1.442695
    %v3407 = vpow.pop %v3406
    %v3408 = vadd.f32 %v3407, 1.0
    %v3409 = vrcp.pop %v3408
    %v3410 = vmul.f32 1.0, %v3409
    %v3411 = vxor.u32 %v3402, 2147483648
    %v3412 = vmul.f32 %v3411, 1.442695
    %v3413 = vpow.pop %v3412
    %v3414 = vadd.f32 %v3413, 1.0
    %v3415 = vrcp.pop %v3414
    %v3416 = vmul.f32 1.0, %v3415
    %v3417 = vtanh.pop %v3403
    %v3418 = vxor.u32 %v3404, 2147483648
    %v3419 = vmul.f32 %v3418, 1.442695
    %v3420 = vpow.pop %v3419
    %v3421 = vadd.f32 %v3420, 1.0
    %v3422 = vrcp.pop %v3421
    %v3423 = vmul.f32 1.0, %v3422
    %v3424 = vmul.f32 %v3416, %v3256
    %v3425 = vmul.f32 %v3410, %v3417
    %v3426 = vadd.f32 %v3424, %v3425
    %v3427 = vtanh.pop %v3426
    %v3428 = vmul.f32 %v3423, %v3427
    %3429 = vmatprep.subr.mxu0 %v2176
    %3430 = vmatpush1.msra.mxu0 %v2175
    %3431 = vmatprep.subr.mxu0 %v2180
    %3432 = vmatpush1.msra.mxu0 %v2179
    %3433 = vmatprep.subr.mxu0 %v2184
    %3434 = vmatpush1.msra.mxu0 %v2183
    %3435 = vmatprep.subr.mxu0 %v2188
    %3436 = vmatpush1.msra.mxu0 %v2187
    %3437 = vmatprep.subr.mxu0 %v2192
    %3438 = vmatpush1.msra.mxu0 %v2191
    %3439 = vmatprep.subr.mxu0 %v2196
    %3440 = vmatpush1.msra.mxu0 %v2195
    %3441 = vmatprep.subr.mxu0 %v2200
    %3442 = vmatpush1.msra.mxu0 %v2199
    %3443 = vmatprep.subr.mxu0 %v2204
    %3444 = vmatpush1.msra.mxu0 %v2203
    %3445 = vmatprep.subr.mxu0 %v2208
    %3446 = vmatpush1.msra.mxu0 %v2207
    %3447 = vmatprep.subr.mxu0 %v2212
    %3448 = vmatpush1.msra.mxu0 %v2211
    %3449 = vmatprep.subr.mxu0 %v2216
    %3450 = vmatpush1.msra.mxu0 %v2215
    %3451 = vmatprep.subr.mxu0 %v2220
    %3452 = vmatpush1.msra.mxu0 %v2219
    %3453 = vmatprep.subr.mxu0 %v2224
    %3454 = vmatpush1.msra.mxu0 %v2223
    %3455 = vmatprep.subr.mxu0 %v2228
    %3456 = vmatpush1.msra.mxu0 %v2227
    %3457 = vmatprep.subr.mxu0 %v2232
    %3458 = vmatpush1.msra.mxu0 %v2231
    %3459 = vmatprep.subr.mxu0 %v2236
    %3460 = vmatpush1.msra.mxu0 %v2235
    %3461 = vmatprep.subr.mxu0 0.0
    %3462 = vmatpush1.msra.mxu0 0.0
    %3463 = vmatprep.subr.mxu0 0.0
    %3464 = vmatpush1.msra.mxu0 0.0
    %3465 = vmatprep.subr.mxu0 0.0
    %3466 = vmatpush1.msra.mxu0 0.0
    %3467 = vmatprep.subr.mxu0 0.0
    %3468 = vmatpush1.msra.mxu0 0.0
    %3469 = vmatprep.subr.mxu0 0.0
    %3470 = vmatpush1.msra.mxu0 0.0
    %3471 = vmatprep.subr.mxu0 0.0
    %3472 = vmatpush1.msra.mxu0 0.0
    %3473 = vmatprep.subr.mxu0 0.0
    %3474 = vmatpush1.msra.mxu0 0.0
    %3475 = vmatprep.subr.mxu0 0.0
    %3476 = vmatpush1.msra.mxu0 0.0
    %3477 = vmatprep.subr.mxu0 0.0
    %3478 = vmatpush1.msra.mxu0 0.0
    %3479 = vmatprep.subr.mxu0 0.0
    %3480 = vmatpush1.msra.mxu0 0.0
    %3481 = vmatprep.subr.mxu0 0.0
    %3482 = vmatpush1.msra.mxu0 0.0
    %3483 = vmatprep.subr.mxu0 0.0
    %3484 = vmatpush1.msra.mxu0 0.0
    %3485 = vmatprep.subr.mxu0 0.0
    %3486 = vmatpush1.msra.mxu0 0.0
    %3487 = vmatprep.subr.mxu0 0.0
    %3488 = vmatpush1.msra.mxu0 0.0
    %3489 = vmatprep.subr.mxu0 0.0
    %3490 = vmatpush1.msra.mxu0 0.0
    %3491 = vmatprep.subr.mxu0 0.0
    %3492 = vmatpush1.msra.mxu0 0.0
    %3493 = vmatprep.mubr.f32.mxu0 0.0
    %3494 = vmatmul.mubr.f32.gmra.mrb[0].mxu0 %v3428
    %v3495 = vpop.f32.mrb[0].mxu0
    %v3496 = vadd.f32 0.0, %v3495
    %v3497 = vpop.f32.mrb[0].mxu0
    %v3498 = vadd.f32 0.0, %v3497
    %3499 = vdwg.mxu0
    %3500 = vmatprep.subr.mxu0 %v2178
    %3501 = vmatpush1.msra.mxu0 %v2177
    %3502 = vmatprep.subr.mxu0 %v2182
    %3503 = vmatpush1.msra.mxu0 %v2181
    %3504 = vmatprep.subr.mxu0 %v2186
    %3505 = vmatpush1.msra.mxu0 %v2185
    %3506 = vmatprep.subr.mxu0 %v2190
    %3507 = vmatpush1.msra.mxu0 %v2189
    %3508 = vmatprep.subr.mxu0 %v2194
    %3509 = vmatpush1.msra.mxu0 %v2193
    %3510 = vmatprep.subr.mxu0 %v2198
    %3511 = vmatpush1.msra.mxu0 %v2197
    %3512 = vmatprep.subr.mxu0 %v2202
    %3513 = vmatpush1.msra.mxu0 %v2201
    %3514 = vmatprep.subr.mxu0 %v2206
    %3515 = vmatpush1.msra.mxu0 %v2205
    %3516 = vmatprep.subr.mxu0 %v2210
    %3517 = vmatpush1.msra.mxu0 %v2209
    %3518 = vmatprep.subr.mxu0 %v2214
    %3519 = vmatpush1.msra.mxu0 %v2213
    %3520 = vmatprep.subr.mxu0 %v2218
    %3521 = vmatpush1.msra.mxu0 %v2217
    %3522 = vmatprep.subr.mxu0 %v2222
    %3523 = vmatpush1.msra.mxu0 %v2221
    %3524 = vmatprep.subr.mxu0 %v2226
    %3525 = vmatpush1.msra.mxu0 %v2225
    %3526 = vmatprep.subr.mxu0 %v2230
    %3527 = vmatpush1.msra.mxu0 %v2229
    %3528 = vmatprep.subr.mxu0 %v2234
    %3529 = vmatpush1.msra.mxu0 %v2233
    %3530 = vmatprep.subr.mxu0 %v2238
    %3531 = vmatpush1.msra.mxu0 %v2237
    %3532 = vmatprep.subr.mxu0 0.0
    %3533 = vmatpush1.msra.mxu0 0.0
    %3534 = vmatprep.subr.mxu0 0.0
    %3535 = vmatpush1.msra.mxu0 0.0
    %3536 = vmatprep.subr.mxu0 0.0
    %3537 = vmatpush1.msra.mxu0 0.0
    %3538 = vmatprep.subr.mxu0 0.0
    %3539 = vmatpush1.msra.mxu0 0.0
    %3540 = vmatprep.subr.mxu0 0.0
    %3541 = vmatpush1.msra.mxu0 0.0
    %3542 = vmatprep.subr.mxu0 0.0
    %3543 = vmatpush1.msra.mxu0 0.0
    %3544 = vmatprep.subr.mxu0 0.0
    %3545 = vmatpush1.msra.mxu0 0.0
    %3546 = vmatprep.subr.mxu0 0.0
    %3547 = vmatpush1.msra.mxu0 0.0
    %3548 = vmatprep.subr.mxu0 0.0
    %3549 = vmatpush1.msra.mxu0 0.0
    %3550 = vmatprep.subr.mxu0 0.0
    %3551 = vmatpush1.msra.mxu0 0.0
    %3552 = vmatprep.subr.mxu0 0.0
    %3553 = vmatpush1.msra.mxu0 0.0
    %3554 = vmatprep.subr.mxu0 0.0
    %3555 = vmatpush1.msra.mxu0 0.0
    %3556 = vmatprep.subr.mxu0 0.0
    %3557 = vmatpush1.msra.mxu0 0.0
    %3558 = vmatprep.subr.mxu0 0.0
    %3559 = vmatpush1.msra.mxu0 0.0
    %3560 = vmatprep.subr.mxu0 0.0
    %3561 = vmatpush1.msra.mxu0 0.0
    %3562 = vmatprep.subr.mxu0 0.0
    %3563 = vmatpush1.msra.mxu0 0.0
    %3564 = vmatprep.mubr.f32.mxu0 0.0
    %3565 = vmatmul.mubr.f32.gmra.mrb[0].mxu0 %v3428
    %v3566 = vpop.f32.mrb[0].mxu0
    %v3567 = vadd.f32 0.0, %v3566
    %v3568 = vpop.f32.mrb[0].mxu0
    %v3569 = vadd.f32 0.0, %v3568
    %3570 = vdwg.mxu0
    %v3571 = vadd.f32 %v2058, %v3496
    %v3572 = vadd.f32 %v2060, %v3498
    %v3573 = vadd.f32 %v2171, %v3567
    %v3574 = vadd.f32 %v2173, %v3569
    %v3575 = vxor.u32 %v3571, 2147483648
    %v3576 = vmul.f32 %v3575, 1.442695
    %v3577 = vpow.pop %v3576
    %v3578 = vadd.f32 %v3577, 1.0
    %v3579 = vrcp.pop %v3578
    %v3580 = vmul.f32 1.0, %v3579
    %v3581 = vxor.u32 %v3572, 2147483648
    %v3582 = vmul.f32 %v3581, 1.442695
    %v3583 = vpow.pop %v3582
    %v3584 = vadd.f32 %v3583, 1.0
    %v3585 = vrcp.pop %v3584
    %v3586 = vmul.f32 1.0, %v3585
    %v3587 = vtanh.pop %v3573
    %v3588 = vxor.u32 %v3574, 2147483648
    %v3589 = vmul.f32 %v3588, 1.442695
    %v3590 = vpow.pop %v3589
    %v3591 = vadd.f32 %v3590, 1.0
    %v3592 = vrcp.pop %v3591
    %v3593 = vmul.f32 1.0, %v3592
    %v3594 = vmul.f32 %v3586, %v3426
    %v3595 = vmul.f32 %v3580, %v3587
    %v3596 = vadd.f32 %v3594, %v3595
    %v3597 = vtanh.pop %v3596
    %v3598 = vmul.f32 %v3593, %v3597
    %v3599 = vld [vmem:[%s7] sm:$0xff]
    %v3600 = vld [vmem:[%s7 + $0x8] sm:$0xff]
    %v3601 = vld [vmem:[%s7 + $0x10] sm:$0xff]
    %v3602 = vld [vmem:[%s7 + $0x18] sm:$0xff]
    %v3603 = vld [vmem:[%s7 + $0x20] sm:$0xff]
    %v3604 = vld [vmem:[%s7 + $0x28] sm:$0xff]
    %v3605 = vld [vmem:[%s7 + $0x30] sm:$0xff]
    %v3606 = vld [vmem:[%s7 + $0x38] sm:$0xff]
    %v3607 = vld [vmem:[%s7 + $0x40] sm:$0xff]
    %v3608 = vld [vmem:[%s7 + $0x48] sm:$0xff]
    %v3609 = vld [vmem:[%s7 + $0x50] sm:$0xff]
    %v3610 = vld [vmem:[%s7 + $0x58] sm:$0xff]
    %v3611 = vld [vmem:[%s7 + $0x60] sm:$0xff]
    %v3612 = vld [vmem:[%s7 + $0x68] sm:$0xff]
    %v3613 = vld [vmem:[%s7 + $0x70] sm:$0xff]
    %v3614 = vld [vmem:[%s7 + $0x78] sm:$0xff]
    %v3615 = vld [vmem:[%s8] sm:$0x1]
    %v3617 = vlaneseq
    %v3618 = vshrl.u32 %v3617, 7
    %v3619 = vsub.s32 0, %v3618
    %v3620 = vrot.slane %v3615, %v3619
    %3622 = vmatprep.subr.mxu0 0.0
    %3623 = vmatpush1.msra.mxu0 %v3599
    %3624 = vmatprep.subr.mxu0 0.0
    %3625 = vmatpush1.msra.mxu0 %v3600
    %3626 = vmatprep.subr.mxu0 0.0
    %3627 = vmatpush1.msra.mxu0 %v3601
    %3628 = vmatprep.subr.mxu0 0.0
    %3629 = vmatpush1.msra.mxu0 %v3602
    %3630 = vmatprep.subr.mxu0 0.0
    %3631 = vmatpush1.msra.mxu0 %v3603
    %3632 = vmatprep.subr.mxu0 0.0
    %3633 = vmatpush1.msra.mxu0 %v3604
    %3634 = vmatprep.subr.mxu0 0.0
    %3635 = vmatpush1.msra.mxu0 %v3605
    %3636 = vmatprep.subr.mxu0 0.0
    %3637 = vmatpush1.msra.mxu0 %v3606
    %3638 = vmatprep.subr.mxu0 0.0
    %3639 = vmatpush1.msra.mxu0 %v3607
    %3640 = vmatprep.subr.mxu0 0.0
    %3641 = vmatpush1.msra.mxu0 %v3608
    %3642 = vmatprep.subr.mxu0 0.0
    %3643 = vmatpush1.msra.mxu0 %v3609
    %3644 = vmatprep.subr.mxu0 0.0
    %3645 = vmatpush1.msra.mxu0 %v3610
    %3646 = vmatprep.subr.mxu0 0.0
    %3647 = vmatpush1.msra.mxu0 %v3611
    %3648 = vmatprep.subr.mxu0 0.0
    %3649 = vmatpush1.msra.mxu0 %v3612
    %3650 = vmatprep.subr.mxu0 0.0
    %3651 = vmatpush1.msra.mxu0 %v3613
    %3652 = vmatprep.subr.mxu0 0.0
    %3653 = vmatpush1.msra.mxu0 %v3614
    %3654 = vmatprep.subr.mxu0 0.0
    %3655 = vmatpush1.msra.mxu0 0.0
    %3656 = vmatprep.subr.mxu0 0.0
    %3657 = vmatpush1.msra.mxu0 0.0
    %3658 = vmatprep.subr.mxu0 0.0
    %3659 = vmatpush1.msra.mxu0 0.0
    %3660 = vmatprep.subr.mxu0 0.0
    %3661 = vmatpush1.msra.mxu0 0.0
    %3662 = vmatprep.subr.mxu0 0.0
    %3663 = vmatpush1.msra.mxu0 0.0
    %3664 = vmatprep.subr.mxu0 0.0
    %3665 = vmatpush1.msra.mxu0 0.0
    %3666 = vmatprep.subr.mxu0 0.0
    %3667 = vmatpush1.msra.mxu0 0.0
    %3668 = vmatprep.subr.mxu0 0.0
    %3669 = vmatpush1.msra.mxu0 0.0
    %3670 = vmatprep.subr.mxu0 0.0
    %3671 = vmatpush1.msra.mxu0 0.0
    %3672 = vmatprep.subr.mxu0 0.0
    %3673 = vmatpush1.msra.mxu0 0.0
    %3674 = vmatprep.subr.mxu0 0.0
    %3675 = vmatpush1.msra.mxu0 0.0
    %3676 = vmatprep.subr.mxu0 0.0
    %3677 = vmatpush1.msra.mxu0 0.0
    %3678 = vmatprep.subr.mxu0 0.0
    %3679 = vmatpush1.msra.mxu0 0.0
    %3680 = vmatprep.subr.mxu0 0.0
    %3681 = vmatpush1.msra.mxu0 0.0
    %3682 = vmatprep.subr.mxu0 0.0
    %3683 = vmatpush1.msra.mxu0 0.0
    %3684 = vmatprep.subr.mxu0 0.0
    %3685 = vmatpush1.msra.mxu0 0.0
    %3686 = vmatprep.mubr.f32.mxu0 0.0
    %3687 = vmatmul.mubr.f32.gmra.mrb[0].mxu0 %v3598
    %v3688 = vpop.f32.mrb[0].mxu0
    %v3689 = vadd.f32 %v3620, %v3688
    %v3690 = vpop.f32.mrb[0].mxu0
    %3691 = vdwg.mxu0
    %3692 = vst [vmem:[%s9] sm:$0xff] %v3689
    // Predicated region
    $region62: #{rnn_classifier_forward.1} parent=1 // pred_check
      _
    $region63: #{rnn_classifier_forward.1} parent=1 // pred_check_branch
      %3694 = sbr.rel (0) target = $region65
    $region64: #{rnn_classifier_forward.1} parent=1 // pred_region
      _
    $region65: #{rnn_classifier_forward.1} parent=1 // pred_fallthru
      _
    // Predicated region
    $region66: #{rnn_classifier_forward.1} parent=1 // pred_check
      _
    $region67: #{rnn_classifier_forward.1} parent=1 // pred_check_branch
      %3696 = sbr.rel (0) target = $region69
    $region68: #{rnn_classifier_forward.1} parent=1 // pred_region
      _
    $region69: #{rnn_classifier_forward.1} parent=1 // pred_fallthru
      _
    %3697 = vsyncpa [#allocation4], 1
    %3698 = vsyncpa [#allocation6], 1
    %3699 = vsyncpa [#allocation9], 1
    %3700 = vsyncpa [#allocation12], 1

</llo_original>
